<compile_context>
chip_gen: v7x
topology: tpu7x:2x2x1
jax: 0.10.0
libtpu: 0.0.40
codegen_flags: <defaults>
</compile_context>

<pallas_src>
import functools

import jax
import jax.numpy as jnp
from jax import lax
from jax.experimental import pallas as pl
from jax.experimental.pallas import tpu as pltpu


# ----------------------------------------------------------------------------
# Tiling helpers
# ----------------------------------------------------------------------------
def _round_up(x, m):
    return ((x + m - 1) // m) * m


def _row_tile(m, cap):
    """Row tile for a (padded) flattened row dim: cap, or m rounded up to 8."""
    if m >= cap:
        return cap
    return max(8, _round_up(m, 8))


def _div_tile(n, cap, quantum):
    """Largest divisor of n that is a multiple of `quantum` and <= cap; else n."""
    t = min(cap, n)
    t = (t // quantum) * quantum
    while t >= quantum:
        if n % t == 0:
            return t
        t -= quantum
    return n  # full dimension (always legal for BlockSpec)


# ----------------------------------------------------------------------------
# Pairwise negative squared distance (row- and column-tiled, bf16 gram)
# ----------------------------------------------------------------------------
def _pairwise_kernel(xr_ref, xc_ref, csq_ref, o_ref):
    # xr_ref: (1, tr, C) bf16   xc_ref: (1, tc, C) bf16   csq_ref: (1, 1, tc) f32
    xr = xr_ref[0]                                            # (tr, C)
    xc = xc_ref[0]                                            # (tc, C)
    # bf16 MXU gram, f32 accumulation; contraction on the last axes of both.
    g = lax.dot_general(xr, xc, (((1,), (1,)), ((), ())),
                        preferred_element_type=jnp.float32)   # (tr, tc)
    xrf = xr.astype(jnp.float32)
    rsq = jnp.sum(xrf * xrf, axis=-1, keepdims=True)          # (tr, 1)
    # negative squared distance: 2*xi.xj - ||xi||^2 - ||xj||^2
    o_ref[0] = 2.0 * g - rsq - csq_ref[0]


def pairwise_neg_dist(x_bf16, csq):
    """x_bf16: (B, N, C) bf16, csq: (B, 1, N) f32 -> (B, N, N) f32."""
    B, N, C = x_bf16.shape
    tr = _div_tile(N, 256, 8)       # output row tile (sublane-aligned)
    tc = _div_tile(N, 1024, 128)    # output column tile (lane-aligned)
    return pl.pallas_call(
        _pairwise_kernel,
        out_shape=jax.ShapeDtypeStruct((B, N, N), jnp.float32),
        grid=(B, N // tr, N // tc),
        in_specs=[
            pl.BlockSpec((1, tr, C), lambda b, i, j: (b, i, 0)),
            pl.BlockSpec((1, tc, C), lambda b, i, j: (b, j, 0)),
            pl.BlockSpec((1, 1, tc), lambda b, i, j: (b, 0, j)),
        ],
        out_specs=pl.BlockSpec((1, tr, tc), lambda b, i, j: (b, i, j)),
        compiler_params=pltpu.CompilerParams(
            dimension_semantics=("parallel", "parallel", "parallel")),
    )(x_bf16, x_bf16, csq)


# ----------------------------------------------------------------------------
# Per-point EdgeConv matmuls: z = s*(x@W1), c = s*(x@(W2-W1)) + b   (bf16 out)
# ----------------------------------------------------------------------------
def _pointwise_kernel(x_ref, w1_ref, wd_ref, s_ref, b_ref, z_ref, c_ref):
    x = x_ref[...]                                            # (tm, C) bf16
    s = s_ref[...]                                            # (1, Cout) f32
    cin = x.shape[1]
    if cin <= 8:
        # Stage 1 (C=3): 3-deep MXU contraction wastes the array; use VPU FMAs.
        xf = x.astype(jnp.float32)
        w1 = w1_ref[...].astype(jnp.float32)
        wd = wd_ref[...].astype(jnp.float32)
        z = xf[:, 0:1] * w1[0:1, :]
        c = xf[:, 0:1] * wd[0:1, :]
        for q in range(1, cin):                               # static unroll (<=8)
            z = z + xf[:, q:q + 1] * w1[q:q + 1, :]
            c = c + xf[:, q:q + 1] * wd[q:q + 1, :]
    else:
        z = jnp.dot(x, w1_ref[...], preferred_element_type=jnp.float32)
        c = jnp.dot(x, wd_ref[...], preferred_element_type=jnp.float32)
    z_ref[...] = (z * s).astype(z_ref.dtype)
    c_ref[...] = (c * s + b_ref[...]).astype(c_ref.dtype)


def pointwise_conv(x2d, w1, wd, scale, shift, tile_cap=512):
    """x2d: (M, C) bf16 -> z, c: (M, Cout) bf16."""
    M, C = x2d.shape
    cout = w1.shape[1]
    tm = _row_tile(M, tile_cap)
    Mp = _round_up(M, tm)
    if Mp != M:
        x2d = jnp.pad(x2d, ((0, Mp - M), (0, 0)))
    z, c = pl.pallas_call(
        _pointwise_kernel,
        out_shape=(jax.ShapeDtypeStruct((Mp, cout), jnp.bfloat16),
                   jax.ShapeDtypeStruct((Mp, cout), jnp.bfloat16)),
        grid=(Mp // tm,),
        in_specs=[
            pl.BlockSpec((tm, C), lambda i: (i, 0)),
            pl.BlockSpec((C, cout), lambda i: (0, 0)),
            pl.BlockSpec((C, cout), lambda i: (0, 0)),
            pl.BlockSpec((1, cout), lambda i: (0, 0)),
            pl.BlockSpec((1, cout), lambda i: (0, 0)),
        ],
        out_specs=(pl.BlockSpec((tm, cout), lambda i: (i, 0)),
                   pl.BlockSpec((tm, cout), lambda i: (i, 0))),
        compiler_params=pltpu.CompilerParams(
            dimension_semantics=("parallel",)),
    )(x2d, w1, wd, scale, shift)
    return z[:M], c[:M]


# ----------------------------------------------------------------------------
# conv5: accumulate the 4 stage outputs against row-chunks of W5 (no concat)
# ----------------------------------------------------------------------------
def _conv5_kernel(x1_ref, x2_ref, x3_ref, x4_ref,
                  w1_ref, w2_ref, w3_ref, w4_ref, s_ref, b_ref, o_ref):
    y = jnp.dot(x1_ref[...], w1_ref[...], preferred_element_type=jnp.float32)
    y = y + jnp.dot(x2_ref[...], w2_ref[...], preferred_element_type=jnp.float32)
    y = y + jnp.dot(x3_ref[...], w3_ref[...], preferred_element_type=jnp.float32)
    y = y + jnp.dot(x4_ref[...], w4_ref[...], preferred_element_type=jnp.float32)
    y = y * s_ref[...] + b_ref[...]
    o_ref[...] = jnp.where(y >= 0.0, y, 0.2 * y)


def conv5(feats, ws, scale, shift, tile_cap=1024):
    """feats: 4 arrays (M, Ci) bf16; ws: 4 arrays (Ci, emb) bf16 -> (M, emb) f32."""
    M = feats[0].shape[0]
    emb = ws[0].shape[1]
    tm = _row_tile(M, tile_cap)
    Mp = _round_up(M, tm)
    if Mp != M:
        feats = [jnp.pad(f, ((0, Mp - M), (0, 0))) for f in feats]
    in_specs = [pl.BlockSpec((tm, f.shape[1]), lambda i: (i, 0)) for f in feats]
    in_specs += [pl.BlockSpec(w.shape, lambda i: (0, 0)) for w in ws]
    in_specs += [pl.BlockSpec((1, emb), lambda i: (0, 0)),
                 pl.BlockSpec((1, emb), lambda i: (0, 0))]
    out = pl.pallas_call(
        _conv5_kernel,
        out_shape=jax.ShapeDtypeStruct((Mp, emb), jnp.float32),
        grid=(Mp // tm,),
        in_specs=in_specs,
        out_specs=pl.BlockSpec((tm, emb), lambda i: (i, 0)),
        compiler_params=pltpu.CompilerParams(
            dimension_semantics=("parallel",)),
    )(*feats, *ws, scale, shift)
    return out[:M]


# ----------------------------------------------------------------------------
# One EdgeConv stage (kNN + per-point matmuls + neighborhood max + LeakyReLU)
# ----------------------------------------------------------------------------
def edge_stage(x_pts, stage_params, k):
    """x_pts: (B, N, C) bf16 -> (B, N, Cout) bf16."""
    B, N, C = x_pts.shape
    w1, wd, s, b = stage_params
    cout = w1.shape[1]

    xf = x_pts.astype(jnp.float32)
    csq = jnp.sum(xf * xf, axis=-1).reshape(B, 1, N)          # column-side norms
    neg_dist = pairwise_neg_dist(x_pts, csq)                  # (B, N, N) f32
    # TODO(synk): exact top-k stays in XLA; fuse (or approx_max_k) for large N.
    _, idx = lax.top_k(neg_dist, k)                           # (B, N, k) int32

    z2d, c2d = pointwise_conv(x_pts.reshape(B * N, C), w1, wd, s, b)
    z = z2d.reshape(B, N, cout)                               # s * (x @ W1)
    c = c2d.reshape(B, N, cout)                               # s * (x @ (W2-W1)) + b

    # max_j LeakyReLU(z_j + c_i) == LeakyReLU(max_j z_j + c_i): the k-expanded
    # edge tensor is never formed and no per-edge matmul runs.
    # TODO(synk): gather+max runs in XLA (fused gather->reduce); no vectorized
    # arbitrary-row VMEM gather exists for an in-kernel version.
    gathered = jax.vmap(lambda zb, ib: zb[ib])(z, idx)        # (B, N, k, Cout) bf16
    m = jnp.max(gathered, axis=2).astype(jnp.float32)         # (B, N, Cout)
    y = m + c.astype(jnp.float32)
    return jnp.where(y >= 0.0, y, 0.2 * y).astype(jnp.bfloat16)


# ----------------------------------------------------------------------------
# Parameters (deterministic synthetic init; eval-mode BN folded to scale/shift)
# ----------------------------------------------------------------------------
def _fold_bn(key, cout, eps=1e-5):
    k2, k3, k4, k5 = jax.random.split(key, 4)
    gamma = 1.0 + 0.1 * jax.random.normal(k2, (cout,), jnp.float32)
    beta = 0.1 * jax.random.normal(k3, (cout,), jnp.float32)
    rmean = 0.1 * jax.random.normal(k4, (cout,), jnp.float32)
    rvar = 1.0 + 0.1 * jax.random.uniform(k5, (cout,), jnp.float32)
    scale = gamma / jnp.sqrt(rvar + eps)
    shift = beta - rmean * scale
    return scale.reshape(1, cout), shift.reshape(1, cout)


def init_params(key, emb_dims):
    stage_io = [(3, 64), (64, 64), (64, 128), (128, 256)]   # (C, Cout); W is (2C, Cout)
    edge = []
    for cin, cout in stage_io:
        kw, kb, key = jax.random.split(key, 3)
        w = jax.random.normal(kw, (2 * cin, cout), jnp.float32) / jnp.sqrt(
            jnp.float32(2 * cin))
        w1 = w[:cin]                 # applied to neighbor features x_j
        wd = w[cin:] - w[:cin]       # applied to center features x_i: W2 - W1
        scale, shift = _fold_bn(kb, cout)
        edge.append((w1.astype(jnp.bfloat16), wd.astype(jnp.bfloat16),
                     scale, shift))
    kw, kb, key = jax.random.split(key, 3)
    w5 = jax.random.normal(kw, (512, emb_dims), jnp.float32) / jnp.sqrt(512.0)
    w5_chunks = tuple(chunk.astype(jnp.bfloat16)
                      for chunk in (w5[:64], w5[64:128], w5[128:256], w5[256:512]))
    scale5, shift5 = _fold_bn(kb, emb_dims)
    return {"edge": edge, "conv5": (w5_chunks, scale5, shift5)}


# ----------------------------------------------------------------------------
# Full DGCNN encoder forward
# ----------------------------------------------------------------------------
def dgcnn_encoder(x, params, k):
    """x: (B, 3, N) f32 -> (B, emb_dims, N) f32."""
    B, _, N = x.shape
    cur = jnp.transpose(x, (0, 2, 1)).astype(jnp.bfloat16)    # (B, N, 3)
    feats = []
    for stage_params in params["edge"]:
        cur = edge_stage(cur, stage_params, k)                # (B, N, Cout) bf16
        feats.append(cur.reshape(B * N, cur.shape[-1]))
    w5_chunks, s5, b5 = params["conv5"]
    out = conv5(feats, list(w5_chunks), s5, b5)               # (B*N, emb) f32
    return jnp.transpose(out.reshape(B, N, -1), (0, 2, 1))    # (B, emb, N)


if __name__ == "__main__":
    key = jax.random.PRNGKey(0)
    B, C0, N, K, EMB = 2, 3, 32, 20, 64   # small shapes; k=20 as in the module
    kx, kp = jax.random.split(key)
    x = jax.random.normal(kx, (B, C0, N), dtype=jnp.float32)
    params = init_params(kp, EMB)

    fwd = jax.jit(functools.partial(dgcnn_encoder, k=K))
    out = fwd(x, params)
    out = jax.block_until_ready(out)

    assert out.shape == (B, EMB, N), out.shape
    assert out.dtype == jnp.float32
    assert bool(jnp.all(jnp.isfinite(out)))
    print("KERNEL_OK")
</pallas_src>

<mosaic_0001>
module attributes {stable_mosaic.version = 11 : i64} {
  func.func @_pairwise_kernel(%arg0: i32, %arg1: i32, %arg2: i32, %arg3: memref<1x32x3xbf16, #tpu.memory_space<vmem>>, %arg4: memref<1x32x3xbf16, #tpu.memory_space<vmem>>, %arg5: memref<1x1x32xf32, #tpu.memory_space<vmem>>, %arg6: memref<1x32x32xf32, #tpu.memory_space<vmem>>) attributes {dimension_semantics = [#tpu.dimension_semantics<parallel>, #tpu.dimension_semantics<parallel>, #tpu.dimension_semantics<parallel>], iteration_bounds = array<i64: 2, 1, 1>, scalar_prefetch = 0 : i64, scratch_operands = 0 : i64, tpu.core_type = #tpu.core_type<tc>, window_params = [{transform_indices = @transform_0, window_bounds = array<i64: 1, 32, 3>}, {transform_indices = @transform_1, window_bounds = array<i64: 1, 32, 3>}, {transform_indices = @transform_2, window_bounds = array<i64: 1, 1, 32>}, {transform_indices = @transform_3, window_bounds = array<i64: 1, 32, 32>}]} {
    %c0 = arith.constant 0 : index
    %c0_0 = arith.constant 0 : index
    %c0_1 = arith.constant 0 : index
    %0 = vector.load %arg3[%c0, %c0_0, %c0_1] : memref<1x32x3xbf16, #tpu.memory_space<vmem>>, vector<1x32x3xbf16>
    %1 = vector.shape_cast %0 : vector<1x32x3xbf16> to vector<32x3xbf16>
    %c0_2 = arith.constant 0 : index
    %c0_3 = arith.constant 0 : index
    %c0_4 = arith.constant 0 : index
    %2 = vector.load %arg4[%c0_2, %c0_3, %c0_4] : memref<1x32x3xbf16, #tpu.memory_space<vmem>>, vector<1x32x3xbf16>
    %3 = vector.shape_cast %2 : vector<1x32x3xbf16> to vector<32x3xbf16>
    %cst = arith.constant dense<0.000000e+00> : vector<32x32xf32>
    %4 = tpu.matmul %1, %3, %cst {dimension_numbers = #tpu.dot_dimension_numbers<[1], [1], [0], [0], [0, 0, 1, 0], [], []>} : vector<32x3xbf16>, vector<32x3xbf16>, vector<32x32xf32> -> vector<32x32xf32>
    %5 = arith.extf %1 : vector<32x3xbf16> to vector<32x3xf32>
    %6 = arith.mulf %5, %5 : vector<32x3xf32>
    %cst_5 = arith.constant dense<0.000000e+00> : vector<32xf32>
    %7 = vector.multi_reduction <add>, %6, %cst_5 [1] : vector<32x3xf32> to vector<32xf32>
    %8 = vector.shape_cast %7 : vector<32xf32> to vector<32x1xf32>
    %cst_6 = arith.constant 2.000000e+00 : f32
    %9 = vector.broadcast %cst_6 : f32 to vector<32x32xf32>
    %10 = arith.mulf %9, %4 : vector<32x32xf32>
    %11 = vector.broadcast %8 : vector<32x1xf32> to vector<32x32xf32>
    %12 = arith.subf %10, %11 : vector<32x32xf32>
    %c0_7 = arith.constant 0 : index
    %c0_8 = arith.constant 0 : index
    %c0_9 = arith.constant 0 : index
    %13 = vector.load %arg5[%c0_7, %c0_8, %c0_9] : memref<1x1x32xf32, #tpu.memory_space<vmem>>, vector<1x1x32xf32>
    %14 = vector.shape_cast %13 : vector<1x1x32xf32> to vector<1x32xf32>
    %15 = vector.broadcast %14 : vector<1x32xf32> to vector<32x32xf32>
    %16 = arith.subf %12, %15 : vector<32x32xf32>
    %c0_10 = arith.constant 0 : index
    %c0_11 = arith.constant 0 : index
    %c0_12 = arith.constant 0 : index
    %17 = vector.load %arg6[%c0_10, %c0_11, %c0_12] : memref<1x32x32xf32, #tpu.memory_space<vmem>>, vector<1x32x32xf32>
    %18 = vector.shape_cast %17 : vector<1x32x32xf32> to vector<32x32xf32>
    %19 = vector.shape_cast %16 : vector<32x32xf32> to vector<1x32x32xf32>
    tpu.vector_store %arg6[%c0_10, %c0_11, %c0_12], %19 {strides = array<i32>} : memref<1x32x32xf32, #tpu.memory_space<vmem>>, vector<1x32x32xf32>,
    return
  }
  func.func @transform_0(%arg0: i32, %arg1: i32, %arg2: i32) -> (i32, i32, i32) {
    %c0_i32 = arith.constant 0 : i32
    %c0_i32_0 = arith.constant 0 : i32
    return %arg0, %arg1, %c0_i32 : i32, i32, i32
  }
  func.func @transform_1(%arg0: i32, %arg1: i32, %arg2: i32) -> (i32, i32, i32) {
    %c0_i32 = arith.constant 0 : i32
    %c0_i32_0 = arith.constant 0 : i32
    return %arg0, %arg2, %c0_i32 : i32, i32, i32
  }
  func.func @transform_2(%arg0: i32, %arg1: i32, %arg2: i32) -> (i32, i32, i32) {
    %c0_i32 = arith.constant 0 : i32
    %c0_i32_0 = arith.constant 0 : i32
    return %arg0, %c0_i32, %arg2 : i32, i32, i32
  }
  func.func @transform_3(%arg0: i32, %arg1: i32, %arg2: i32) -> (i32, i32, i32) {
    %c0_i32 = arith.constant 0 : i32
    return %arg0, %arg1, %arg2 : i32, i32, i32
  }
}

module attributes {stable_mosaic.version = 11 : i64} {
  func.func @_pointwise_kernel(%arg0: i32, %arg1: memref<64x3xbf16, #tpu.memory_space<vmem>>, %arg2: memref<3x64xbf16, #tpu.memory_space<vmem>>, %arg3: memref<3x64xbf16, #tpu.memory_space<vmem>>, %arg4: memref<1x64xf32, #tpu.memory_space<vmem>>, %arg5: memref<1x64xf32, #tpu.memory_space<vmem>>, %arg6: memref<64x64xbf16, #tpu.memory_space<vmem>>, %arg7: memref<64x64xbf16, #tpu.memory_space<vmem>>) attributes {dimension_semantics = [#tpu.dimension_semantics<parallel>], iteration_bounds = array<i64: 1>, scalar_prefetch = 0 : i64, scratch_operands = 0 : i64, tpu.core_type = #tpu.core_type<tc>, window_params = [{transform_indices = @transform_0, window_bounds = array<i64: 64, 3>}, {pipeline_mode = #tpu.pipeline_mode<synchronous>, transform_indices = @transform_1, window_bounds = array<i64: 3, 64>}, {pipeline_mode = #tpu.pipeline_mode<synchronous>, transform_indices = @transform_2, window_bounds = array<i64: 3, 64>}, {pipeline_mode = #tpu.pipeline_mode<synchronous>, transform_indices = @transform_3, window_bounds = array<i64: 1, 64>}, {pipeline_mode = #tpu.pipeline_mode<synchronous>, transform_indices = @transform_4, window_bounds = array<i64: 1, 64>}, {transform_indices = @transform_5, window_bounds = array<i64: 64, 64>}, {transform_indices = @transform_6, window_bounds = array<i64: 64, 64>}]} {
    %c0 = arith.constant 0 : index
    %c0_0 = arith.constant 0 : index
    %0 = vector.load %arg1[%c0, %c0_0] : memref<64x3xbf16, #tpu.memory_space<vmem>>, vector<64x3xbf16>
    %c0_1 = arith.constant 0 : index
    %c0_2 = arith.constant 0 : index
    %1 = vector.load %arg4[%c0_1, %c0_2] : memref<1x64xf32, #tpu.memory_space<vmem>>, vector<1x64xf32>
    %2 = arith.extf %0 : vector<64x3xbf16> to vector<64x3xf32>
    %c0_3 = arith.constant 0 : index
    %c0_4 = arith.constant 0 : index
    %3 = vector.load %arg2[%c0_3, %c0_4] : memref<3x64xbf16, #tpu.memory_space<vmem>>, vector<3x64xbf16>
    %4 = arith.extf %3 : vector<3x64xbf16> to vector<3x64xf32>
    %c0_5 = arith.constant 0 : index
    %c0_6 = arith.constant 0 : index
    %5 = vector.load %arg3[%c0_5, %c0_6] : memref<3x64xbf16, #tpu.memory_space<vmem>>, vector<3x64xbf16>
    %6 = arith.extf %5 : vector<3x64xbf16> to vector<3x64xf32>
    %7 = vector.extract_strided_slice %2 {offsets = [0, 0], sizes = [64, 1], strides = [1, 1]} : vector<64x3xf32> to vector<64x1xf32>
    %8 = vector.extract_strided_slice %4 {offsets = [0, 0], sizes = [1, 64], strides = [1, 1]} : vector<3x64xf32> to vector<1x64xf32>
    %9 = vector.broadcast %7 : vector<64x1xf32> to vector<64x64xf32>
    %10 = vector.broadcast %8 : vector<1x64xf32> to vector<64x64xf32>
    %11 = arith.mulf %9, %10 : vector<64x64xf32>
    %12 = vector.extract_strided_slice %2 {offsets = [0, 0], sizes = [64, 1], strides = [1, 1]} : vector<64x3xf32> to vector<64x1xf32>
    %13 = vector.extract_strided_slice %6 {offsets = [0, 0], sizes = [1, 64], strides = [1, 1]} : vector<3x64xf32> to vector<1x64xf32>
    %14 = vector.broadcast %12 : vector<64x1xf32> to vector<64x64xf32>
    %15 = vector.broadcast %13 : vector<1x64xf32> to vector<64x64xf32>
    %16 = arith.mulf %14, %15 : vector<64x64xf32>
    %17 = vector.extract_strided_slice %2 {offsets = [0, 1], sizes = [64, 1], strides = [1, 1]} : vector<64x3xf32> to vector<64x1xf32>
    %18 = vector.extract_strided_slice %4 {offsets = [1, 0], sizes = [1, 64], strides = [1, 1]} : vector<3x64xf32> to vector<1x64xf32>
    %19 = vector.broadcast %17 : vector<64x1xf32> to vector<64x64xf32>
    %20 = vector.broadcast %18 : vector<1x64xf32> to vector<64x64xf32>
    %21 = arith.mulf %19, %20 : vector<64x64xf32>
    %22 = arith.addf %11, %21 : vector<64x64xf32>
    %23 = vector.extract_strided_slice %2 {offsets = [0, 1], sizes = [64, 1], strides = [1, 1]} : vector<64x3xf32> to vector<64x1xf32>
    %24 = vector.extract_strided_slice %6 {offsets = [1, 0], sizes = [1, 64], strides = [1, 1]} : vector<3x64xf32> to vector<1x64xf32>
    %25 = vector.broadcast %23 : vector<64x1xf32> to vector<64x64xf32>
    %26 = vector.broadcast %24 : vector<1x64xf32> to vector<64x64xf32>
    %27 = arith.mulf %25, %26 : vector<64x64xf32>
    %28 = arith.addf %16, %27 : vector<64x64xf32>
    %29 = vector.extract_strided_slice %2 {offsets = [0, 2], sizes = [64, 1], strides = [1, 1]} : vector<64x3xf32> to vector<64x1xf32>
    %30 = vector.extract_strided_slice %4 {offsets = [2, 0], sizes = [1, 64], strides = [1, 1]} : vector<3x64xf32> to vector<1x64xf32>
    %31 = vector.broadcast %29 : vector<64x1xf32> to vector<64x64xf32>
    %32 = vector.broadcast %30 : vector<1x64xf32> to vector<64x64xf32>
    %33 = arith.mulf %31, %32 : vector<64x64xf32>
    %34 = arith.addf %22, %33 : vector<64x64xf32>
    %35 = vector.extract_strided_slice %2 {offsets = [0, 2], sizes = [64, 1], strides = [1, 1]} : vector<64x3xf32> to vector<64x1xf32>
    %36 = vector.extract_strided_slice %6 {offsets = [2, 0], sizes = [1, 64], strides = [1, 1]} : vector<3x64xf32> to vector<1x64xf32>
    %37 = vector.broadcast %35 : vector<64x1xf32> to vector<64x64xf32>
    %38 = vector.broadcast %36 : vector<1x64xf32> to vector<64x64xf32>
    %39 = arith.mulf %37, %38 : vector<64x64xf32>
    %40 = arith.addf %28, %39 : vector<64x64xf32>
    %41 = vector.broadcast %1 : vector<1x64xf32> to vector<64x64xf32>
    %42 = arith.mulf %34, %41 : vector<64x64xf32>
    %43 = arith.truncf %42 : vector<64x64xf32> to vector<64x64xbf16>
    %c0_7 = arith.constant 0 : index
    %c0_8 = arith.constant 0 : index
    %44 = vector.load %arg6[%c0_7, %c0_8] : memref<64x64xbf16, #tpu.memory_space<vmem>>, vector<64x64xbf16>
    tpu.vector_store %arg6[%c0_7, %c0_8], %43 {strides = array<i32>} : memref<64x64xbf16, #tpu.memory_space<vmem>>, vector<64x64xbf16>,
    %45 = vector.broadcast %1 : vector<1x64xf32> to vector<64x64xf32>
    %46 = arith.mulf %40, %45 : vector<64x64xf32>
    %c0_9 = arith.constant 0 : index
    %c0_10 = arith.constant 0 : index
    %47 = vector.load %arg5[%c0_9, %c0_10] : memref<1x64xf32, #tpu.memory_space<vmem>>, vector<1x64xf32>
    %48 = vector.broadcast %47 : vector<1x64xf32> to vector<64x64xf32>
    %49 = arith.addf %46, %48 : vector<64x64xf32>
    %50 = arith.truncf %49 : vector<64x64xf32> to vector<64x64xbf16>
    %c0_11 = arith.constant 0 : index
    %c0_12 = arith.constant 0 : index
    %51 = vector.load %arg7[%c0_11, %c0_12] : memref<64x64xbf16, #tpu.memory_space<vmem>>, vector<64x64xbf16>
    tpu.vector_store %arg7[%c0_11, %c0_12], %50 {strides = array<i32>} : memref<64x64xbf16, #tpu.memory_space<vmem>>, vector<64x64xbf16>,
    return
  }
  func.func @transform_0(%arg0: i32) -> (i32, i32) {
    %c0_i32 = arith.constant 0 : i32
    %c0_i32_0 = arith.constant 0 : i32
    return %arg0, %c0_i32 : i32, i32
  }
  func.func @transform_1(%arg0: i32) -> (i32, i32) {
    %c0_i32 = arith.constant 0 : i32
    %c0_i32_0 = arith.constant 0 : i32
    %c0_i32_1 = arith.constant 0 : i32
    return %c0_i32, %c0_i32_0 : i32, i32
  }
  func.func @transform_2(%arg0: i32) -> (i32, i32) {
    %c0_i32 = arith.constant 0 : i32
    %c0_i32_0 = arith.constant 0 : i32
    %c0_i32_1 = arith.constant 0 : i32
    return %c0_i32, %c0_i32_0 : i32, i32
  }
  func.func @transform_3(%arg0: i32) -> (i32, i32) {
    %c0_i32 = arith.constant 0 : i32
    %c0_i32_0 = arith.constant 0 : i32
    %c0_i32_1 = arith.constant 0 : i32
    return %c0_i32, %c0_i32_0 : i32, i32
  }
  func.func @transform_4(%arg0: i32) -> (i32, i32) {
    %c0_i32 = arith.constant 0 : i32
    %c0_i32_0 = arith.constant 0 : i32
    %c0_i32_1 = arith.constant 0 : i32
    return %c0_i32, %c0_i32_0 : i32, i32
  }
  func.func @transform_5(%arg0: i32) -> (i32, i32) {
    %c0_i32 = arith.constant 0 : i32
    %c0_i32_0 = arith.constant 0 : i32
    return %arg0, %c0_i32 : i32, i32
  }
  func.func @transform_6(%arg0: i32) -> (i32, i32) {
    %c0_i32 = arith.constant 0 : i32
    %c0_i32_0 = arith.constant 0 : i32
    return %arg0, %c0_i32 : i32, i32
  }
}

module attributes {stable_mosaic.version = 11 : i64} {
  func.func @_pairwise_kernel(%arg0: i32, %arg1: i32, %arg2: i32, %arg3: memref<1x32x64xbf16, #tpu.memory_space<vmem>>, %arg4: memref<1x32x64xbf16, #tpu.memory_space<vmem>>, %arg5: memref<1x1x32xf32, #tpu.memory_space<vmem>>, %arg6: memref<1x32x32xf32, #tpu.memory_space<vmem>>) attributes {dimension_semantics = [#tpu.dimension_semantics<parallel>, #tpu.dimension_semantics<parallel>, #tpu.dimension_semantics<parallel>], iteration_bounds = array<i64: 2, 1, 1>, scalar_prefetch = 0 : i64, scratch_operands = 0 : i64, tpu.core_type = #tpu.core_type<tc>, window_params = [{transform_indices = @transform_0, window_bounds = array<i64: 1, 32, 64>}, {transform_indices = @transform_1, window_bounds = array<i64: 1, 32, 64>}, {transform_indices = @transform_2, window_bounds = array<i64: 1, 1, 32>}, {transform_indices = @transform_3, window_bounds = array<i64: 1, 32, 32>}]} {
    %c0 = arith.constant 0 : index
    %c0_0 = arith.constant 0 : index
    %c0_1 = arith.constant 0 : index
    %0 = vector.load %arg3[%c0, %c0_0, %c0_1] : memref<1x32x64xbf16, #tpu.memory_space<vmem>>, vector<1x32x64xbf16>
    %1 = vector.shape_cast %0 : vector<1x32x64xbf16> to vector<32x64xbf16>
    %c0_2 = arith.constant 0 : index
    %c0_3 = arith.constant 0 : index
    %c0_4 = arith.constant 0 : index
    %2 = vector.load %arg4[%c0_2, %c0_3, %c0_4] : memref<1x32x64xbf16, #tpu.memory_space<vmem>>, vector<1x32x64xbf16>
    %3 = vector.shape_cast %2 : vector<1x32x64xbf16> to vector<32x64xbf16>
    %cst = arith.constant dense<0.000000e+00> : vector<32x32xf32>
    %4 = tpu.matmul %1, %3, %cst {dimension_numbers = #tpu.dot_dimension_numbers<[1], [1], [0], [0], [0, 0, 1, 0], [], []>} : vector<32x64xbf16>, vector<32x64xbf16>, vector<32x32xf32> -> vector<32x32xf32>
    %5 = arith.extf %1 : vector<32x64xbf16> to vector<32x64xf32>
    %6 = arith.mulf %5, %5 : vector<32x64xf32>
    %cst_5 = arith.constant dense<0.000000e+00> : vector<32xf32>
    %7 = vector.multi_reduction <add>, %6, %cst_5 [1] : vector<32x64xf32> to vector<32xf32>
    %8 = vector.shape_cast %7 : vector<32xf32> to vector<32x1xf32>
    %cst_6 = arith.constant 2.000000e+00 : f32
    %9 = vector.broadcast %cst_6 : f32 to vector<32x32xf32>
    %10 = arith.mulf %9, %4 : vector<32x32xf32>
    %11 = vector.broadcast %8 : vector<32x1xf32> to vector<32x32xf32>
    %12 = arith.subf %10, %11 : vector<32x32xf32>
    %c0_7 = arith.constant 0 : index
    %c0_8 = arith.constant 0 : index
    %c0_9 = arith.constant 0 : index
    %13 = vector.load %arg5[%c0_7, %c0_8, %c0_9] : memref<1x1x32xf32, #tpu.memory_space<vmem>>, vector<1x1x32xf32>
    %14 = vector.shape_cast %13 : vector<1x1x32xf32> to vector<1x32xf32>
    %15 = vector.broadcast %14 : vector<1x32xf32> to vector<32x32xf32>
    %16 = arith.subf %12, %15 : vector<32x32xf32>
    %c0_10 = arith.constant 0 : index
    %c0_11 = arith.constant 0 : index
    %c0_12 = arith.constant 0 : index
    %17 = vector.load %arg6[%c0_10, %c0_11, %c0_12] : memref<1x32x32xf32, #tpu.memory_space<vmem>>, vector<1x32x32xf32>
    %18 = vector.shape_cast %17 : vector<1x32x32xf32> to vector<32x32xf32>
    %19 = vector.shape_cast %16 : vector<32x32xf32> to vector<1x32x32xf32>
    tpu.vector_store %arg6[%c0_10, %c0_11, %c0_12], %19 {strides = array<i32>} : memref<1x32x32xf32, #tpu.memory_space<vmem>>, vector<1x32x32xf32>,
    return
  }
  func.func @transform_0(%arg0: i32, %arg1: i32, %arg2: i32) -> (i32, i32, i32) {
    %c0_i32 = arith.constant 0 : i32
    %c0_i32_0 = arith.constant 0 : i32
    return %arg0, %arg1, %c0_i32 : i32, i32, i32
  }
  func.func @transform_1(%arg0: i32, %arg1: i32, %arg2: i32) -> (i32, i32, i32) {
    %c0_i32 = arith.constant 0 : i32
    %c0_i32_0 = arith.constant 0 : i32
    return %arg0, %arg2, %c0_i32 : i32, i32, i32
  }
  func.func @transform_2(%arg0: i32, %arg1: i32, %arg2: i32) -> (i32, i32, i32) {
    %c0_i32 = arith.constant 0 : i32
    %c0_i32_0 = arith.constant 0 : i32
    return %arg0, %c0_i32, %arg2 : i32, i32, i32
  }
  func.func @transform_3(%arg0: i32, %arg1: i32, %arg2: i32) -> (i32, i32, i32) {
    %c0_i32 = arith.constant 0 : i32
    return %arg0, %arg1, %arg2 : i32, i32, i32
  }
}

module attributes {stable_mosaic.version = 11 : i64} {
  func.func @_pointwise_kernel(%arg0: i32, %arg1: memref<64x64xbf16, #tpu.memory_space<vmem>>, %arg2: memref<64x128xbf16, #tpu.memory_space<vmem>>, %arg3: memref<64x128xbf16, #tpu.memory_space<vmem>>, %arg4: memref<1x128xf32, #tpu.memory_space<vmem>>, %arg5: memref<1x128xf32, #tpu.memory_space<vmem>>, %arg6: memref<64x128xbf16, #tpu.memory_space<vmem>>, %arg7: memref<64x128xbf16, #tpu.memory_space<vmem>>) attributes {dimension_semantics = [#tpu.dimension_semantics<parallel>], iteration_bounds = array<i64: 1>, scalar_prefetch = 0 : i64, scratch_operands = 0 : i64, tpu.core_type = #tpu.core_type<tc>, window_params = [{transform_indices = @transform_0, window_bounds = array<i64: 64, 64>}, {pipeline_mode = #tpu.pipeline_mode<synchronous>, transform_indices = @transform_1, window_bounds = array<i64: 64, 128>}, {pipeline_mode = #tpu.pipeline_mode<synchronous>, transform_indices = @transform_2, window_bounds = array<i64: 64, 128>}, {pipeline_mode = #tpu.pipeline_mode<synchronous>, transform_indices = @transform_3, window_bounds = array<i64: 1, 128>}, {pipeline_mode = #tpu.pipeline_mode<synchronous>, transform_indices = @transform_4, window_bounds = array<i64: 1, 128>}, {transform_indices = @transform_5, window_bounds = array<i64: 64, 128>}, {transform_indices = @transform_6, window_bounds = array<i64: 64, 128>}]} {
    %c0 = arith.constant 0 : index
    %c0_0 = arith.constant 0 : index
    %0 = vector.load %arg1[%c0, %c0_0] : memref<64x64xbf16, #tpu.memory_space<vmem>>, vector<64x64xbf16>
    %c0_1 = arith.constant 0 : index
    %c0_2 = arith.constant 0 : index
    %1 = vector.load %arg4[%c0_1, %c0_2] : memref<1x128xf32, #tpu.memory_space<vmem>>, vector<1x128xf32>
    %c0_3 = arith.constant 0 : index
    %c0_4 = arith.constant 0 : index
    %2 = vector.load %arg2[%c0_3, %c0_4] : memref<64x128xbf16, #tpu.memory_space<vmem>>, vector<64x128xbf16>
    %cst = arith.constant dense<0.000000e+00> : vector<64x128xf32>
    %3 = tpu.matmul %0, %2, %cst {dimension_numbers = #tpu.dot_dimension_numbers<[1], [0], [0], [1], [0, 0, 1, 1], [], []>} : vector<64x64xbf16>, vector<64x128xbf16>, vector<64x128xf32> -> vector<64x128xf32>
    %c0_5 = arith.constant 0 : index
    %c0_6 = arith.constant 0 : index
    %4 = vector.load %arg3[%c0_5, %c0_6] : memref<64x128xbf16, #tpu.memory_space<vmem>>, vector<64x128xbf16>
    %cst_7 = arith.constant dense<0.000000e+00> : vector<64x128xf32>
    %5 = tpu.matmul %0, %4, %cst_7 {dimension_numbers = #tpu.dot_dimension_numbers<[1], [0], [0], [1], [0, 0, 1, 1], [], []>} : vector<64x64xbf16>, vector<64x128xbf16>, vector<64x128xf32> -> vector<64x128xf32>
    %6 = vector.broadcast %1 : vector<1x128xf32> to vector<64x128xf32>
    %7 = arith.mulf %3, %6 : vector<64x128xf32>
    %8 = arith.truncf %7 : vector<64x128xf32> to vector<64x128xbf16>
    %c0_8 = arith.constant 0 : index
    %c0_9 = arith.constant 0 : index
    %9 = vector.load %arg6[%c0_8, %c0_9] : memref<64x128xbf16, #tpu.memory_space<vmem>>, vector<64x128xbf16>
    tpu.vector_store %arg6[%c0_8, %c0_9], %8 {strides = array<i32>} : memref<64x128xbf16, #tpu.memory_space<vmem>>, vector<64x128xbf16>,
    %10 = vector.broadcast %1 : vector<1x128xf32> to vector<64x128xf32>
    %11 = arith.mulf %5, %10 : vector<64x128xf32>
    %c0_10 = arith.constant 0 : index
    %c0_11 = arith.constant 0 : index
    %12 = vector.load %arg5[%c0_10, %c0_11] : memref<1x128xf32, #tpu.memory_space<vmem>>, vector<1x128xf32>
    %13 = vector.broadcast %12 : vector<1x128xf32> to vector<64x128xf32>
    %14 = arith.addf %11, %13 : vector<64x128xf32>
    %15 = arith.truncf %14 : vector<64x128xf32> to vector<64x128xbf16>
    %c0_12 = arith.constant 0 : index
    %c0_13 = arith.constant 0 : index
    %16 = vector.load %arg7[%c0_12, %c0_13] : memref<64x128xbf16, #tpu.memory_space<vmem>>, vector<64x128xbf16>
    tpu.vector_store %arg7[%c0_12, %c0_13], %15 {strides = array<i32>} : memref<64x128xbf16, #tpu.memory_space<vmem>>, vector<64x128xbf16>,
    return
  }
  func.func @transform_0(%arg0: i32) -> (i32, i32) {
    %c0_i32 = arith.constant 0 : i32
    %c0_i32_0 = arith.constant 0 : i32
    return %arg0, %c0_i32 : i32, i32
  }
  func.func @transform_1(%arg0: i32) -> (i32, i32) {
    %c0_i32 = arith.constant 0 : i32
    %c0_i32_0 = arith.constant 0 : i32
    %c0_i32_1 = arith.constant 0 : i32
    return %c0_i32, %c0_i32_0 : i32, i32
  }
  func.func @transform_2(%arg0: i32) -> (i32, i32) {
    %c0_i32 = arith.constant 0 : i32
    %c0_i32_0 = arith.constant 0 : i32
    %c0_i32_1 = arith.constant 0 : i32
    return %c0_i32, %c0_i32_0 : i32, i32
  }
  func.func @transform_3(%arg0: i32) -> (i32, i32) {
    %c0_i32 = arith.constant 0 : i32
    %c0_i32_0 = arith.constant 0 : i32
    %c0_i32_1 = arith.constant 0 : i32
    return %c0_i32, %c0_i32_0 : i32, i32
  }
  func.func @transform_4(%arg0: i32) -> (i32, i32) {
    %c0_i32 = arith.constant 0 : i32
    %c0_i32_0 = arith.constant 0 : i32
    %c0_i32_1 = arith.constant 0 : i32
    return %c0_i32, %c0_i32_0 : i32, i32
  }
  func.func @transform_5(%arg0: i32) -> (i32, i32) {
    %c0_i32 = arith.constant 0 : i32
    %c0_i32_0 = arith.constant 0 : i32
    return %arg0, %c0_i32 : i32, i32
  }
  func.func @transform_6(%arg0: i32) -> (i32, i32) {
    %c0_i32 = arith.constant 0 : i32
    %c0_i32_0 = arith.constant 0 : i32
    return %arg0, %c0_i32 : i32, i32
  }
}

module attributes {stable_mosaic.version = 11 : i64} {
  func.func @_pointwise_kernel(%arg0: i32, %arg1: memref<64x64xbf16, #tpu.memory_space<vmem>>, %arg2: memref<64x64xbf16, #tpu.memory_space<vmem>>, %arg3: memref<64x64xbf16, #tpu.memory_space<vmem>>, %arg4: memref<1x64xf32, #tpu.memory_space<vmem>>, %arg5: memref<1x64xf32, #tpu.memory_space<vmem>>, %arg6: memref<64x64xbf16, #tpu.memory_space<vmem>>, %arg7: memref<64x64xbf16, #tpu.memory_space<vmem>>) attributes {dimension_semantics = [#tpu.dimension_semantics<parallel>], iteration_bounds = array<i64: 1>, scalar_prefetch = 0 : i64, scratch_operands = 0 : i64, tpu.core_type = #tpu.core_type<tc>, window_params = [{transform_indices = @transform_0, window_bounds = array<i64: 64, 64>}, {pipeline_mode = #tpu.pipeline_mode<synchronous>, transform_indices = @transform_1, window_bounds = array<i64: 64, 64>}, {pipeline_mode = #tpu.pipeline_mode<synchronous>, transform_indices = @transform_2, window_bounds = array<i64: 64, 64>}, {pipeline_mode = #tpu.pipeline_mode<synchronous>, transform_indices = @transform_3, window_bounds = array<i64: 1, 64>}, {pipeline_mode = #tpu.pipeline_mode<synchronous>, transform_indices = @transform_4, window_bounds = array<i64: 1, 64>}, {transform_indices = @transform_5, window_bounds = array<i64: 64, 64>}, {transform_indices = @transform_6, window_bounds = array<i64: 64, 64>}]} {
    %c0 = arith.constant 0 : index
    %c0_0 = arith.constant 0 : index
    %0 = vector.load %arg1[%c0, %c0_0] : memref<64x64xbf16, #tpu.memory_space<vmem>>, vector<64x64xbf16>
    %c0_1 = arith.constant 0 : index
    %c0_2 = arith.constant 0 : index
    %1 = vector.load %arg4[%c0_1, %c0_2] : memref<1x64xf32, #tpu.memory_space<vmem>>, vector<1x64xf32>
    %c0_3 = arith.constant 0 : index
    %c0_4 = arith.constant 0 : index
    %2 = vector.load %arg2[%c0_3, %c0_4] : memref<64x64xbf16, #tpu.memory_space<vmem>>, vector<64x64xbf16>
    %cst = arith.constant dense<0.000000e+00> : vector<64x64xf32>
    %3 = tpu.matmul %0, %2, %cst {dimension_numbers = #tpu.dot_dimension_numbers<[1], [0], [0], [1], [0, 0, 1, 1], [], []>} : vector<64x64xbf16>, vector<64x64xbf16>, vector<64x64xf32> -> vector<64x64xf32>
    %c0_5 = arith.constant 0 : index
    %c0_6 = arith.constant 0 : index
    %4 = vector.load %arg3[%c0_5, %c0_6] : memref<64x64xbf16, #tpu.memory_space<vmem>>, vector<64x64xbf16>
    %cst_7 = arith.constant dense<0.000000e+00> : vector<64x64xf32>
    %5 = tpu.matmul %0, %4, %cst_7 {dimension_numbers = #tpu.dot_dimension_numbers<[1], [0], [0], [1], [0, 0, 1, 1], [], []>} : vector<64x64xbf16>, vector<64x64xbf16>, vector<64x64xf32> -> vector<64x64xf32>
    %6 = vector.broadcast %1 : vector<1x64xf32> to vector<64x64xf32>
    %7 = arith.mulf %3, %6 : vector<64x64xf32>
    %8 = arith.truncf %7 : vector<64x64xf32> to vector<64x64xbf16>
    %c0_8 = arith.constant 0 : index
    %c0_9 = arith.constant 0 : index
    %9 = vector.load %arg6[%c0_8, %c0_9] : memref<64x64xbf16, #tpu.memory_space<vmem>>, vector<64x64xbf16>
    tpu.vector_store %arg6[%c0_8, %c0_9], %8 {strides = array<i32>} : memref<64x64xbf16, #tpu.memory_space<vmem>>, vector<64x64xbf16>,
    %10 = vector.broadcast %1 : vector<1x64xf32> to vector<64x64xf32>
    %11 = arith.mulf %5, %10 : vector<64x64xf32>
    %c0_10 = arith.constant 0 : index
    %c0_11 = arith.constant 0 : index
    %12 = vector.load %arg5[%c0_10, %c0_11] : memref<1x64xf32, #tpu.memory_space<vmem>>, vector<1x64xf32>
    %13 = vector.broadcast %12 : vector<1x64xf32> to vector<64x64xf32>
    %14 = arith.addf %11, %13 : vector<64x64xf32>
    %15 = arith.truncf %14 : vector<64x64xf32> to vector<64x64xbf16>
    %c0_12 = arith.constant 0 : index
    %c0_13 = arith.constant 0 : index
    %16 = vector.load %arg7[%c0_12, %c0_13] : memref<64x64xbf16, #tpu.memory_space<vmem>>, vector<64x64xbf16>
    tpu.vector_store %arg7[%c0_12, %c0_13], %15 {strides = array<i32>} : memref<64x64xbf16, #tpu.memory_space<vmem>>, vector<64x64xbf16>,
    return
  }
  func.func @transform_0(%arg0: i32) -> (i32, i32) {
    %c0_i32 = arith.constant 0 : i32
    %c0_i32_0 = arith.constant 0 : i32
    return %arg0, %c0_i32 : i32, i32
  }
  func.func @transform_1(%arg0: i32) -> (i32, i32) {
    %c0_i32 = arith.constant 0 : i32
    %c0_i32_0 = arith.constant 0 : i32
    %c0_i32_1 = arith.constant 0 : i32
    return %c0_i32, %c0_i32_0 : i32, i32
  }
  func.func @transform_2(%arg0: i32) -> (i32, i32) {
    %c0_i32 = arith.constant 0 : i32
    %c0_i32_0 = arith.constant 0 : i32
    %c0_i32_1 = arith.constant 0 : i32
    return %c0_i32, %c0_i32_0 : i32, i32
  }
  func.func @transform_3(%arg0: i32) -> (i32, i32) {
    %c0_i32 = arith.constant 0 : i32
    %c0_i32_0 = arith.constant 0 : i32
    %c0_i32_1 = arith.constant 0 : i32
    return %c0_i32, %c0_i32_0 : i32, i32
  }
  func.func @transform_4(%arg0: i32) -> (i32, i32) {
    %c0_i32 = arith.constant 0 : i32
    %c0_i32_0 = arith.constant 0 : i32
    %c0_i32_1 = arith.constant 0 : i32
    return %c0_i32, %c0_i32_0 : i32, i32
  }
  func.func @transform_5(%arg0: i32) -> (i32, i32) {
    %c0_i32 = arith.constant 0 : i32
    %c0_i32_0 = arith.constant 0 : i32
    return %arg0, %c0_i32 : i32, i32
  }
  func.func @transform_6(%arg0: i32) -> (i32, i32) {
    %c0_i32 = arith.constant 0 : i32
    %c0_i32_0 = arith.constant 0 : i32
    return %arg0, %c0_i32 : i32, i32
  }
}

module attributes {stable_mosaic.version = 11 : i64} {
  func.func @_pointwise_kernel(%arg0: i32, %arg1: memref<64x128xbf16, #tpu.memory_space<vmem>>, %arg2: memref<128x256xbf16, #tpu.memory_space<vmem>>, %arg3: memref<128x256xbf16, #tpu.memory_space<vmem>>, %arg4: memref<1x256xf32, #tpu.memory_space<vmem>>, %arg5: memref<1x256xf32, #tpu.memory_space<vmem>>, %arg6: memref<64x256xbf16, #tpu.memory_space<vmem>>, %arg7: memref<64x256xbf16, #tpu.memory_space<vmem>>) attributes {dimension_semantics = [#tpu.dimension_semantics<parallel>], iteration_bounds = array<i64: 1>, scalar_prefetch = 0 : i64, scratch_operands = 0 : i64, tpu.core_type = #tpu.core_type<tc>, window_params = [{transform_indices = @transform_0, window_bounds = array<i64: 64, 128>}, {pipeline_mode = #tpu.pipeline_mode<synchronous>, transform_indices = @transform_1, window_bounds = array<i64: 128, 256>}, {pipeline_mode = #tpu.pipeline_mode<synchronous>, transform_indices = @transform_2, window_bounds = array<i64: 128, 256>}, {pipeline_mode = #tpu.pipeline_mode<synchronous>, transform_indices = @transform_3, window_bounds = array<i64: 1, 256>}, {pipeline_mode = #tpu.pipeline_mode<synchronous>, transform_indices = @transform_4, window_bounds = array<i64: 1, 256>}, {transform_indices = @transform_5, window_bounds = array<i64: 64, 256>}, {transform_indices = @transform_6, window_bounds = array<i64: 64, 256>}]} {
    %c0 = arith.constant 0 : index
    %c0_0 = arith.constant 0 : index
    %0 = vector.load %arg1[%c0, %c0_0] : memref<64x128xbf16, #tpu.memory_space<vmem>>, vector<64x128xbf16>
    %c0_1 = arith.constant 0 : index
    %c0_2 = arith.constant 0 : index
    %1 = vector.load %arg4[%c0_1, %c0_2] : memref<1x256xf32, #tpu.memory_space<vmem>>, vector<1x256xf32>
    %c0_3 = arith.constant 0 : index
    %c0_4 = arith.constant 0 : index
    %2 = vector.load %arg2[%c0_3, %c0_4] : memref<128x256xbf16, #tpu.memory_space<vmem>>, vector<128x256xbf16>
    %cst = arith.constant dense<0.000000e+00> : vector<64x256xf32>
    %3 = tpu.matmul %0, %2, %cst {dimension_numbers = #tpu.dot_dimension_numbers<[1], [0], [0], [1], [0, 0, 1, 1], [], []>} : vector<64x128xbf16>, vector<128x256xbf16>, vector<64x256xf32> -> vector<64x256xf32>
    %c0_5 = arith.constant 0 : index
    %c0_6 = arith.constant 0 : index
    %4 = vector.load %arg3[%c0_5, %c0_6] : memref<128x256xbf16, #tpu.memory_space<vmem>>, vector<128x256xbf16>
    %cst_7 = arith.constant dense<0.000000e+00> : vector<64x256xf32>
    %5 = tpu.matmul %0, %4, %cst_7 {dimension_numbers = #tpu.dot_dimension_numbers<[1], [0], [0], [1], [0, 0, 1, 1], [], []>} : vector<64x128xbf16>, vector<128x256xbf16>, vector<64x256xf32> -> vector<64x256xf32>
    %6 = vector.broadcast %1 : vector<1x256xf32> to vector<64x256xf32>
    %7 = arith.mulf %3, %6 : vector<64x256xf32>
    %8 = arith.truncf %7 : vector<64x256xf32> to vector<64x256xbf16>
    %c0_8 = arith.constant 0 : index
    %c0_9 = arith.constant 0 : index
    %9 = vector.load %arg6[%c0_8, %c0_9] : memref<64x256xbf16, #tpu.memory_space<vmem>>, vector<64x256xbf16>
    tpu.vector_store %arg6[%c0_8, %c0_9], %8 {strides = array<i32>} : memref<64x256xbf16, #tpu.memory_space<vmem>>, vector<64x256xbf16>,
    %10 = vector.broadcast %1 : vector<1x256xf32> to vector<64x256xf32>
    %11 = arith.mulf %5, %10 : vector<64x256xf32>
    %c0_10 = arith.constant 0 : index
    %c0_11 = arith.constant 0 : index
    %12 = vector.load %arg5[%c0_10, %c0_11] : memref<1x256xf32, #tpu.memory_space<vmem>>, vector<1x256xf32>
    %13 = vector.broadcast %12 : vector<1x256xf32> to vector<64x256xf32>
    %14 = arith.addf %11, %13 : vector<64x256xf32>
    %15 = arith.truncf %14 : vector<64x256xf32> to vector<64x256xbf16>
    %c0_12 = arith.constant 0 : index
    %c0_13 = arith.constant 0 : index
    %16 = vector.load %arg7[%c0_12, %c0_13] : memref<64x256xbf16, #tpu.memory_space<vmem>>, vector<64x256xbf16>
    tpu.vector_store %arg7[%c0_12, %c0_13], %15 {strides = array<i32>} : memref<64x256xbf16, #tpu.memory_space<vmem>>, vector<64x256xbf16>,
    return
  }
  func.func @transform_0(%arg0: i32) -> (i32, i32) {
    %c0_i32 = arith.constant 0 : i32
    %c0_i32_0 = arith.constant 0 : i32
    return %arg0, %c0_i32 : i32, i32
  }
  func.func @transform_1(%arg0: i32) -> (i32, i32) {
    %c0_i32 = arith.constant 0 : i32
    %c0_i32_0 = arith.constant 0 : i32
    %c0_i32_1 = arith.constant 0 : i32
    return %c0_i32, %c0_i32_0 : i32, i32
  }
  func.func @transform_2(%arg0: i32) -> (i32, i32) {
    %c0_i32 = arith.constant 0 : i32
    %c0_i32_0 = arith.constant 0 : i32
    %c0_i32_1 = arith.constant 0 : i32
    return %c0_i32, %c0_i32_0 : i32, i32
  }
  func.func @transform_3(%arg0: i32) -> (i32, i32) {
    %c0_i32 = arith.constant 0 : i32
    %c0_i32_0 = arith.constant 0 : i32
    %c0_i32_1 = arith.constant 0 : i32
    return %c0_i32, %c0_i32_0 : i32, i32
  }
  func.func @transform_4(%arg0: i32) -> (i32, i32) {
    %c0_i32 = arith.constant 0 : i32
    %c0_i32_0 = arith.constant 0 : i32
    %c0_i32_1 = arith.constant 0 : i32
    return %c0_i32, %c0_i32_0 : i32, i32
  }
  func.func @transform_5(%arg0: i32) -> (i32, i32) {
    %c0_i32 = arith.constant 0 : i32
    %c0_i32_0 = arith.constant 0 : i32
    return %arg0, %c0_i32 : i32, i32
  }
  func.func @transform_6(%arg0: i32) -> (i32, i32) {
    %c0_i32 = arith.constant 0 : i32
    %c0_i32_0 = arith.constant 0 : i32
    return %arg0, %c0_i32 : i32, i32
  }
}

module attributes {stable_mosaic.version = 11 : i64} {
  func.func @_pairwise_kernel(%arg0: i32, %arg1: i32, %arg2: i32, %arg3: memref<1x32x128xbf16, #tpu.memory_space<vmem>>, %arg4: memref<1x32x128xbf16, #tpu.memory_space<vmem>>, %arg5: memref<1x1x32xf32, #tpu.memory_space<vmem>>, %arg6: memref<1x32x32xf32, #tpu.memory_space<vmem>>) attributes {dimension_semantics = [#tpu.dimension_semantics<parallel>, #tpu.dimension_semantics<parallel>, #tpu.dimension_semantics<parallel>], iteration_bounds = array<i64: 2, 1, 1>, scalar_prefetch = 0 : i64, scratch_operands = 0 : i64, tpu.core_type = #tpu.core_type<tc>, window_params = [{transform_indices = @transform_0, window_bounds = array<i64: 1, 32, 128>}, {transform_indices = @transform_1, window_bounds = array<i64: 1, 32, 128>}, {transform_indices = @transform_2, window_bounds = array<i64: 1, 1, 32>}, {transform_indices = @transform_3, window_bounds = array<i64: 1, 32, 32>}]} {
    %c0 = arith.constant 0 : index
    %c0_0 = arith.constant 0 : index
    %c0_1 = arith.constant 0 : index
    %0 = vector.load %arg3[%c0, %c0_0, %c0_1] : memref<1x32x128xbf16, #tpu.memory_space<vmem>>, vector<1x32x128xbf16>
    %1 = vector.shape_cast %0 : vector<1x32x128xbf16> to vector<32x128xbf16>
    %c0_2 = arith.constant 0 : index
    %c0_3 = arith.constant 0 : index
    %c0_4 = arith.constant 0 : index
    %2 = vector.load %arg4[%c0_2, %c0_3, %c0_4] : memref<1x32x128xbf16, #tpu.memory_space<vmem>>, vector<1x32x128xbf16>
    %3 = vector.shape_cast %2 : vector<1x32x128xbf16> to vector<32x128xbf16>
    %cst = arith.constant dense<0.000000e+00> : vector<32x32xf32>
    %4 = tpu.matmul %1, %3, %cst {dimension_numbers = #tpu.dot_dimension_numbers<[1], [1], [0], [0], [0, 0, 1, 0], [], []>} : vector<32x128xbf16>, vector<32x128xbf16>, vector<32x32xf32> -> vector<32x32xf32>
    %5 = arith.extf %1 : vector<32x128xbf16> to vector<32x128xf32>
    %6 = arith.mulf %5, %5 : vector<32x128xf32>
    %cst_5 = arith.constant dense<0.000000e+00> : vector<32xf32>
    %7 = vector.multi_reduction <add>, %6, %cst_5 [1] : vector<32x128xf32> to vector<32xf32>
    %8 = vector.shape_cast %7 : vector<32xf32> to vector<32x1xf32>
    %cst_6 = arith.constant 2.000000e+00 : f32
    %9 = vector.broadcast %cst_6 : f32 to vector<32x32xf32>
    %10 = arith.mulf %9, %4 : vector<32x32xf32>
    %11 = vector.broadcast %8 : vector<32x1xf32> to vector<32x32xf32>
    %12 = arith.subf %10, %11 : vector<32x32xf32>
    %c0_7 = arith.constant 0 : index
    %c0_8 = arith.constant 0 : index
    %c0_9 = arith.constant 0 : index
    %13 = vector.load %arg5[%c0_7, %c0_8, %c0_9] : memref<1x1x32xf32, #tpu.memory_space<vmem>>, vector<1x1x32xf32>
    %14 = vector.shape_cast %13 : vector<1x1x32xf32> to vector<1x32xf32>
    %15 = vector.broadcast %14 : vector<1x32xf32> to vector<32x32xf32>
    %16 = arith.subf %12, %15 : vector<32x32xf32>
    %c0_10 = arith.constant 0 : index
    %c0_11 = arith.constant 0 : index
    %c0_12 = arith.constant 0 : index
    %17 = vector.load %arg6[%c0_10, %c0_11, %c0_12] : memref<1x32x32xf32, #tpu.memory_space<vmem>>, vector<1x32x32xf32>
    %18 = vector.shape_cast %17 : vector<1x32x32xf32> to vector<32x32xf32>
    %19 = vector.shape_cast %16 : vector<32x32xf32> to vector<1x32x32xf32>
    tpu.vector_store %arg6[%c0_10, %c0_11, %c0_12], %19 {strides = array<i32>} : memref<1x32x32xf32, #tpu.memory_space<vmem>>, vector<1x32x32xf32>,
    return
  }
  func.func @transform_0(%arg0: i32, %arg1: i32, %arg2: i32) -> (i32, i32, i32) {
    %c0_i32 = arith.constant 0 : i32
    %c0_i32_0 = arith.constant 0 : i32
    return %arg0, %arg1, %c0_i32 : i32, i32, i32
  }
  func.func @transform_1(%arg0: i32, %arg1: i32, %arg2: i32) -> (i32, i32, i32) {
    %c0_i32 = arith.constant 0 : i32
    %c0_i32_0 = arith.constant 0 : i32
    return %arg0, %arg2, %c0_i32 : i32, i32, i32
  }
  func.func @transform_2(%arg0: i32, %arg1: i32, %arg2: i32) -> (i32, i32, i32) {
    %c0_i32 = arith.constant 0 : i32
    %c0_i32_0 = arith.constant 0 : i32
    return %arg0, %c0_i32, %arg2 : i32, i32, i32
  }
  func.func @transform_3(%arg0: i32, %arg1: i32, %arg2: i32) -> (i32, i32, i32) {
    %c0_i32 = arith.constant 0 : i32
    return %arg0, %arg1, %arg2 : i32, i32, i32
  }
}

module attributes {stable_mosaic.version = 11 : i64} {
  func.func @_conv5_kernel(%arg0: i32, %arg1: memref<64x64xbf16, #tpu.memory_space<vmem>>, %arg2: memref<64x64xbf16, #tpu.memory_space<vmem>>, %arg3: memref<64x128xbf16, #tpu.memory_space<vmem>>, %arg4: memref<64x256xbf16, #tpu.memory_space<vmem>>, %arg5: memref<64x64xbf16, #tpu.memory_space<vmem>>, %arg6: memref<64x64xbf16, #tpu.memory_space<vmem>>, %arg7: memref<128x64xbf16, #tpu.memory_space<vmem>>, %arg8: memref<256x64xbf16, #tpu.memory_space<vmem>>, %arg9: memref<1x64xf32, #tpu.memory_space<vmem>>, %arg10: memref<1x64xf32, #tpu.memory_space<vmem>>, %arg11: memref<64x64xf32, #tpu.memory_space<vmem>>) attributes {dimension_semantics = [#tpu.dimension_semantics<parallel>], iteration_bounds = array<i64: 1>, scalar_prefetch = 0 : i64, scratch_operands = 0 : i64, tpu.core_type = #tpu.core_type<tc>, window_params = [{transform_indices = @transform_0, window_bounds = array<i64: 64, 64>}, {transform_indices = @transform_1, window_bounds = array<i64: 64, 64>}, {transform_indices = @transform_2, window_bounds = array<i64: 64, 128>}, {transform_indices = @transform_3, window_bounds = array<i64: 64, 256>}, {pipeline_mode = #tpu.pipeline_mode<synchronous>, transform_indices = @transform_4, window_bounds = array<i64: 64, 64>}, {pipeline_mode = #tpu.pipeline_mode<synchronous>, transform_indices = @transform_5, window_bounds = array<i64: 64, 64>}, {pipeline_mode = #tpu.pipeline_mode<synchronous>, transform_indices = @transform_6, window_bounds = array<i64: 128, 64>}, {pipeline_mode = #tpu.pipeline_mode<synchronous>, transform_indices = @transform_7, window_bounds = array<i64: 256, 64>}, {pipeline_mode = #tpu.pipeline_mode<synchronous>, transform_indices = @transform_8, window_bounds = array<i64: 1, 64>}, {pipeline_mode = #tpu.pipeline_mode<synchronous>, transform_indices = @transform_9, window_bounds = array<i64: 1, 64>}, {transform_indices = @transform_10, window_bounds = array<i64: 64, 64>}]} {
    %c0 = arith.constant 0 : index
    %c0_0 = arith.constant 0 : index
    %0 = vector.load %arg1[%c0, %c0_0] : memref<64x64xbf16, #tpu.memory_space<vmem>>, vector<64x64xbf16>
    %c0_1 = arith.constant 0 : index
    %c0_2 = arith.constant 0 : index
    %1 = vector.load %arg5[%c0_1, %c0_2] : memref<64x64xbf16, #tpu.memory_space<vmem>>, vector<64x64xbf16>
    %cst = arith.constant dense<0.000000e+00> : vector<64x64xf32>
    %2 = tpu.matmul %0, %1, %cst {dimension_numbers = #tpu.dot_dimension_numbers<[1], [0], [0], [1], [0, 0, 1, 1], [], []>} : vector<64x64xbf16>, vector<64x64xbf16>, vector<64x64xf32> -> vector<64x64xf32>
    %c0_3 = arith.constant 0 : index
    %c0_4 = arith.constant 0 : index
    %3 = vector.load %arg2[%c0_3, %c0_4] : memref<64x64xbf16, #tpu.memory_space<vmem>>, vector<64x64xbf16>
    %c0_5 = arith.constant 0 : index
    %c0_6 = arith.constant 0 : index
    %4 = vector.load %arg6[%c0_5, %c0_6] : memref<64x64xbf16, #tpu.memory_space<vmem>>, vector<64x64xbf16>
    %cst_7 = arith.constant dense<0.000000e+00> : vector<64x64xf32>
    %5 = tpu.matmul %3, %4, %cst_7 {dimension_numbers = #tpu.dot_dimension_numbers<[1], [0], [0], [1], [0, 0, 1, 1], [], []>} : vector<64x64xbf16>, vector<64x64xbf16>, vector<64x64xf32> -> vector<64x64xf32>
    %6 = arith.addf %2, %5 : vector<64x64xf32>
    %c0_8 = arith.constant 0 : index
    %c0_9 = arith.constant 0 : index
    %7 = vector.load %arg3[%c0_8, %c0_9] : memref<64x128xbf16, #tpu.memory_space<vmem>>, vector<64x128xbf16>
    %c0_10 = arith.constant 0 : index
    %c0_11 = arith.constant 0 : index
    %8 = vector.load %arg7[%c0_10, %c0_11] : memref<128x64xbf16, #tpu.memory_space<vmem>>, vector<128x64xbf16>
    %cst_12 = arith.constant dense<0.000000e+00> : vector<64x64xf32>
    %9 = tpu.matmul %7, %8, %cst_12 {dimension_numbers = #tpu.dot_dimension_numbers<[1], [0], [0], [1], [0, 0, 1, 1], [], []>} : vector<64x128xbf16>, vector<128x64xbf16>, vector<64x64xf32> -> vector<64x64xf32>
    %10 = arith.addf %6, %9 : vector<64x64xf32>
    %c0_13 = arith.constant 0 : index
    %c0_14 = arith.constant 0 : index
    %11 = vector.load %arg4[%c0_13, %c0_14] : memref<64x256xbf16, #tpu.memory_space<vmem>>, vector<64x256xbf16>
    %c0_15 = arith.constant 0 : index
    %c0_16 = arith.constant 0 : index
    %12 = vector.load %arg8[%c0_15, %c0_16] : memref<256x64xbf16, #tpu.memory_space<vmem>>, vector<256x64xbf16>
    %cst_17 = arith.constant dense<0.000000e+00> : vector<64x64xf32>
    %13 = tpu.matmul %11, %12, %cst_17 {dimension_numbers = #tpu.dot_dimension_numbers<[1], [0], [0], [1], [0, 0, 1, 1], [], []>} : vector<64x256xbf16>, vector<256x64xbf16>, vector<64x64xf32> -> vector<64x64xf32>
    %14 = arith.addf %10, %13 : vector<64x64xf32>
    %c0_18 = arith.constant 0 : index
    %c0_19 = arith.constant 0 : index
    %15 = vector.load %arg9[%c0_18, %c0_19] : memref<1x64xf32, #tpu.memory_space<vmem>>, vector<1x64xf32>
    %16 = vector.broadcast %15 : vector<1x64xf32> to vector<64x64xf32>
    %17 = arith.mulf %14, %16 : vector<64x64xf32>
    %c0_20 = arith.constant 0 : index
    %c0_21 = arith.constant 0 : index
    %18 = vector.load %arg10[%c0_20, %c0_21] : memref<1x64xf32, #tpu.memory_space<vmem>>, vector<1x64xf32>
    %19 = vector.broadcast %18 : vector<1x64xf32> to vector<64x64xf32>
    %20 = arith.addf %17, %19 : vector<64x64xf32>
    %cst_22 = arith.constant 0.000000e+00 : f32
    %21 = vector.broadcast %cst_22 : f32 to vector<64x64xf32>
    %22 = arith.cmpf oge, %20, %21 : vector<64x64xf32>
    %cst_23 = arith.constant 2.000000e-01 : f32
    %23 = vector.broadcast %cst_23 : f32 to vector<64x64xf32>
    %24 = arith.mulf %23, %20 : vector<64x64xf32>
    %25 = arith.select %22, %20, %24 : vector<64x64xi1>, vector<64x64xf32>
    %c0_24 = arith.constant 0 : index
    %c0_25 = arith.constant 0 : index
    %26 = vector.load %arg11[%c0_24, %c0_25] : memref<64x64xf32, #tpu.memory_space<vmem>>, vector<64x64xf32>
    tpu.vector_store %arg11[%c0_24, %c0_25], %25 {strides = array<i32>} : memref<64x64xf32, #tpu.memory_space<vmem>>, vector<64x64xf32>,
    return
  }
  func.func @transform_0(%arg0: i32) -> (i32, i32) {
    %c0_i32 = arith.constant 0 : i32
    %c0_i32_0 = arith.constant 0 : i32
    return %arg0, %c0_i32 : i32, i32
  }
  func.func @transform_1(%arg0: i32) -> (i32, i32) {
    %c0_i32 = arith.constant 0 : i32
    %c0_i32_0 = arith.constant 0 : i32
    return %arg0, %c0_i32 : i32, i32
  }
  func.func @transform_2(%arg0: i32) -> (i32, i32) {
    %c0_i32 = arith.constant 0 : i32
    %c0_i32_0 = arith.constant 0 : i32
    return %arg0, %c0_i32 : i32, i32
  }
  func.func @transform_3(%arg0: i32) -> (i32, i32) {
    %c0_i32 = arith.constant 0 : i32
    %c0_i32_0 = arith.constant 0 : i32
    return %arg0, %c0_i32 : i32, i32
  }
  func.func @transform_4(%arg0: i32) -> (i32, i32) {
    %c0_i32 = arith.constant 0 : i32
    %c0_i32_0 = arith.constant 0 : i32
    %c0_i32_1 = arith.constant 0 : i32
    return %c0_i32, %c0_i32_0 : i32, i32
  }
  func.func @transform_5(%arg0: i32) -> (i32, i32) {
    %c0_i32 = arith.constant 0 : i32
    %c0_i32_0 = arith.constant 0 : i32
    %c0_i32_1 = arith.constant 0 : i32
    return %c0_i32, %c0_i32_0 : i32, i32
  }
  func.func @transform_6(%arg0: i32) -> (i32, i32) {
    %c0_i32 = arith.constant 0 : i32
    %c0_i32_0 = arith.constant 0 : i32
    %c0_i32_1 = arith.constant 0 : i32
    return %c0_i32, %c0_i32_0 : i32, i32
  }
  func.func @transform_7(%arg0: i32) -> (i32, i32) {
    %c0_i32 = arith.constant 0 : i32
    %c0_i32_0 = arith.constant 0 : i32
    %c0_i32_1 = arith.constant 0 : i32
    return %c0_i32, %c0_i32_0 : i32, i32
  }
  func.func @transform_8(%arg0: i32) -> (i32, i32) {
    %c0_i32 = arith.constant 0 : i32
    %c0_i32_0 = arith.constant 0 : i32
    %c0_i32_1 = arith.constant 0 : i32
    return %c0_i32, %c0_i32_0 : i32, i32
  }
  func.func @transform_9(%arg0: i32) -> (i32, i32) {
    %c0_i32 = arith.constant 0 : i32
    %c0_i32_0 = arith.constant 0 : i32
    %c0_i32_1 = arith.constant 0 : i32
    return %c0_i32, %c0_i32_0 : i32, i32
  }
  func.func @transform_10(%arg0: i32) -> (i32, i32) {
    %c0_i32 = arith.constant 0 : i32
    %c0_i32_0 = arith.constant 0 : i32
    return %arg0, %c0_i32 : i32, i32
  }
}

</mosaic_0001>

<llo_original>
// kernel: dgcnn_encoder.9
$region0: #{dgcnn_encoder.9}
  #allocation0 [shape = 'u32[]', space=smem, size = 0x4, offset = 0x4, fixed_abs, tag = 'smem constant byte address 0x4 - core index']
  #allocation1 [shape = 'u32[144,128]{1,0:T(1,128)}', space=vmem, size = 0x12000, scoped, tag = 'internal scratch']
  %s0 = inlined_call_operand.vmem [shape: bf16[2,32,3], index: 0, kind: input, shape index: {}, may-alias: {0,1}]
  %s1 = inlined_call_operand.vmem [shape: bf16[2,32,3], index: 1, kind: input, shape index: {}, may-alias: {0,1}]
  %s2 = inlined_call_operand.vmem [shape: f32[2,1,32], index: 2, kind: input, shape index: {}]
  %s3 = inlined_call_operand.vmem [shape: f32[2,32,32], index: 3, kind: output, shape index: {}]
  %s4 = sld [smem:[#allocation0]]
  $region45: #{dgcnn_encoder.9} parent=0
    _
  %s6 = ssub.s32 1, %s4
  %s7 = scalar_select 0, %s6, %s4
  loop: start=0, step=1, limit=4
  $region2: #{dgcnn_encoder.9} parent=0 // loop_pre_header
    _
  $region3: #{dgcnn_encoder.9} parent=0 // loop_header
    %s9 = sphi 0, %s13
    %p10 = scmp.ge.s32.totalorder %s9, 4
    %s16 = sphi 0, %s35
    %s17 = sphi 0, %s31
    %s18 = sphi 0, %s27
    %s19 = sphi 0, %s16
    %s20 = sphi 0, %s17
    %s21 = sphi 0, %s18
    %s22 = sphi 0, %s19
    %s23 = sphi 0, %s20
    %s24 = sphi 0, %s21
    %s40 = sphi 0, %s42
    %s43 = sphi 0, %s40
    %s44 = sphi 0, %s43
    %s60 = sphi 0, %s44
    %s68 = sphi 0, %s70
    %s71 = sphi 0, %s68
    %s72 = sphi 0, %s71
    %s88 = sphi 0, %s72
    %s96 = sphi 0, %s98
    %s99 = sphi 0, %s96
    %s100 = sphi 0, %s99
    %s116 = sphi 0, %s100
    %s126 = sphi 0, %s128
    %s129 = sphi 0, %s126
    %s130 = sphi 0, %s129
    %s146 = sphi 0, %s130
  $region4: #{dgcnn_encoder.9} parent=0 // loop_header_branch
    %12 = sbr.rel (%p10) target = $region8
  $region5: #{dgcnn_encoder.9} parent=0 // loop_body
    %s14 = ssub.s32 %s9, 1
    %s15 = ssub.s32 %s9, 2
    %s25 = sadd.s32 1, %s18
    %p26 = scmp.ge.s32.totalorder %s25, 1
    %s27 = scalar_select %p26, 0, %s25
    %s28 = sadd.s32 1, %s17
    %s29 = scalar_select %p26, %s28, %s17
    %p30 = scmp.ge.s32.totalorder %s29, 1
    %s31 = scalar_select %p30, 0, %s29
    %s32 = sadd.s32 1, %s16
    %s33 = scalar_select %p30, %s32, %s16
    %p34 = scmp.ge.s32.totalorder %s33, 2
    %s35 = scalar_select %p34, 0, %s33
    %s36 = ssub.s32 %s16, %s35
    %s37 = ssub.s32 %s17, %s31
    %s38 = sor.u32 %s36, %s37
    %p39 = scmp.eq.s32.totalorder %s38, 0
    %s41 = sadd.s32 %s40, 1
    %s42 = scalar_select %p39, %s40, %s41
    %p45 = pneg %p39
    %p46 = scmp.eq.s32.totalorder %s9, 1
    %p47 = por %p45, %p46
    %p48 = scmp.ne.s32.totalorder %s40, %s43
    %p49 = scmp.eq.s32.totalorder %s9, 0
    %p50 = por %p48, %p49
    %p51 = scmp.ne.s32.totalorder %s40, %s43
    %p52 = scmp.eq.s32.totalorder %s14, 1
    %p53 = por %p51, %p52
    %p54 = scmp.ne.s32.totalorder %s43, %s44
    %p55 = scmp.eq.s32.totalorder %s14, 0
    %p56 = por %p54, %p55
    %p57 = scmp.ne.s32.totalorder %s43, %s44
    %p58 = scmp.eq.s32.totalorder %s15, 1
    %p59 = por %p57, %p58
    %p61 = scmp.ne.s32.totalorder %s44, %s60
    %p62 = scmp.eq.s32.totalorder %s15, 0
    %p63 = por %p61, %p62
    %s64 = ssub.s32 %s16, %s35
    %s65 = ssub.s32 %s18, %s27
    %s66 = sor.u32 %s64, %s65
    %p67 = scmp.eq.s32.totalorder %s66, 0
    %s69 = sadd.s32 %s68, 1
    %s70 = scalar_select %p67, %s68, %s69
    %p73 = pneg %p67
    %p74 = scmp.eq.s32.totalorder %s9, 1
    %p75 = por %p73, %p74
    %p76 = scmp.ne.s32.totalorder %s68, %s71
    %p77 = scmp.eq.s32.totalorder %s9, 0
    %p78 = por %p76, %p77
    %p79 = scmp.ne.s32.totalorder %s68, %s71
    %p80 = scmp.eq.s32.totalorder %s14, 1
    %p81 = por %p79, %p80
    %p82 = scmp.ne.s32.totalorder %s71, %s72
    %p83 = scmp.eq.s32.totalorder %s14, 0
    %p84 = por %p82, %p83
    %p85 = scmp.ne.s32.totalorder %s71, %s72
    %p86 = scmp.eq.s32.totalorder %s15, 1
    %p87 = por %p85, %p86
    %p89 = scmp.ne.s32.totalorder %s72, %s88
    %p90 = scmp.eq.s32.totalorder %s15, 0
    %p91 = por %p89, %p90
    %s92 = ssub.s32 %s16, %s35
    %s93 = ssub.s32 %s18, %s27
    %s94 = sor.u32 %s92, %s93
    %p95 = scmp.eq.s32.totalorder %s94, 0
    %s97 = sadd.s32 %s96, 1
    %s98 = scalar_select %p95, %s96, %s97
    %p101 = pneg %p95
    %p102 = scmp.eq.s32.totalorder %s9, 1
    %p103 = por %p101, %p102
    %p104 = scmp.ne.s32.totalorder %s96, %s99
    %p105 = scmp.eq.s32.totalorder %s9, 0
    %p106 = por %p104, %p105
    %p107 = scmp.ne.s32.totalorder %s96, %s99
    %p108 = scmp.eq.s32.totalorder %s14, 1
    %p109 = por %p107, %p108
    %p110 = scmp.ne.s32.totalorder %s99, %s100
    %p111 = scmp.eq.s32.totalorder %s14, 0
    %p112 = por %p110, %p111
    %p113 = scmp.ne.s32.totalorder %s99, %s100
    %p114 = scmp.eq.s32.totalorder %s15, 1
    %p115 = por %p113, %p114
    %p117 = scmp.ne.s32.totalorder %s100, %s116
    %p118 = scmp.eq.s32.totalorder %s15, 0
    %p119 = por %p117, %p118
    %s120 = ssub.s32 %s16, %s35
    %s121 = ssub.s32 %s17, %s31
    %s122 = sor.u32 %s120, %s121
    %s123 = ssub.s32 %s18, %s27
    %s124 = sor.u32 %s122, %s123
    %p125 = scmp.eq.s32.totalorder %s124, 0
    %s127 = sadd.s32 %s126, 1
    %s128 = scalar_select %p125, %s126, %s127
    %p131 = pneg %p125
    %p132 = scmp.eq.s32.totalorder %s9, 1
    %p133 = por %p131, %p132
    %p134 = scmp.ne.s32.totalorder %s126, %s129
    %p135 = scmp.eq.s32.totalorder %s9, 0
    %p136 = por %p134, %p135
    %p137 = scmp.ne.s32.totalorder %s126, %s129
    %p138 = scmp.eq.s32.totalorder %s14, 1
    %p139 = por %p137, %p138
    %p140 = scmp.ne.s32.totalorder %s129, %s130
    %p141 = scmp.eq.s32.totalorder %s14, 0
    %p142 = por %p140, %p141
    %p143 = scmp.ne.s32.totalorder %s129, %s130
    %p144 = scmp.eq.s32.totalorder %s15, 1
    %p145 = por %p143, %p144
    %p147 = scmp.ne.s32.totalorder %s130, %s146
    %p148 = scmp.eq.s32.totalorder %s15, 0
    %p149 = por %p147, %p148
    %p150 = scmp.le.s32.totalorder 1, %s9
    %p151 = scmp.lt.s32.totalorder %s9, 3
    %p152 = pnand %p150, %p151
    %p153 = pneg %p152
    // Predicated region
    $region9: #{dgcnn_encoder.9} parent=5 // pred_check
      _
    $region10: #{dgcnn_encoder.9} parent=5 // pred_check_branch
      %155 = sbr.rel (%p152) target = $region12
    $region11: #{dgcnn_encoder.9} parent=5 // pred_region
      %s156 = ssub.s32 %s9, 1
    $region12: #{dgcnn_encoder.9} parent=5 // pred_fallthru
      _
    %p157 = scmp.lt.s32.totalorder %s9, 2
    // Predicated region
    $region13: #{dgcnn_encoder.9} parent=5 // pred_check
      %p158 = pneg %p157
    $region14: #{dgcnn_encoder.9} parent=5 // pred_check_branch
      %160 = sbr.rel (%p158) target = $region16
    $region15: #{dgcnn_encoder.9} parent=5 // pred_region
      // Predicated region
      $region17: #{dgcnn_encoder.9} parent=15 // pred_check
        %p161 = pneg %p50
      $region18: #{dgcnn_encoder.9} parent=15 // pred_check_branch
        %163 = sbr.rel (%p161) target = $region20
      $region19: #{dgcnn_encoder.9} parent=15 // pred_region
        %s164 = smul.u32 4, %s17
        %p165 = scmp.lt.s32.totalorder %s16, 1
        %s166 = scalar_select %p165, %s16, 1
        %p167 = scmp.lt.s32.totalorder %s164, 3
        %s168 = scalar_select %p167, %s164, 3
        %s169 = smul.addr %s166, 4
        %s170 = sadd.s32 %s168, %s169
        %s171 = smul.addr %s170, 4
        %s172 = scalar_lea.vmem %s0, %s171
        %s173 = smul.u32 4, %s17
      $region20: #{dgcnn_encoder.9} parent=15 // pred_fallthru
        _
      // Predicated region
      $region21: #{dgcnn_encoder.9} parent=15 // pred_check
        %p174 = pneg %p78
      $region22: #{dgcnn_encoder.9} parent=15 // pred_check_branch
        %176 = sbr.rel (%p174) target = $region24
      $region23: #{dgcnn_encoder.9} parent=15 // pred_region
        %s177 = smul.u32 4, %s18
        %p178 = scmp.lt.s32.totalorder %s16, 1
        %s179 = scalar_select %p178, %s16, 1
        %p180 = scmp.lt.s32.totalorder %s177, 3
        %s181 = scalar_select %p180, %s177, 3
        %s182 = smul.addr %s179, 4
        %s183 = sadd.s32 %s181, %s182
        %s184 = smul.addr %s183, 4
        %s185 = scalar_lea.vmem %s1, %s184
        %s186 = smul.u32 4, %s18
      $region24: #{dgcnn_encoder.9} parent=15 // pred_fallthru
        _
      // Predicated region
      $region25: #{dgcnn_encoder.9} parent=15 // pred_check
        %p187 = pneg %p106
      $region26: #{dgcnn_encoder.9} parent=15 // pred_check_branch
        %189 = sbr.rel (%p187) target = $region28
      $region27: #{dgcnn_encoder.9} parent=15 // pred_region
        %p190 = scmp.lt.s32.totalorder %s16, 1
        %s191 = scalar_select %p190, %s16, 1
        %p192 = scmp.lt.s32.totalorder %s18, 0
        %s193 = scalar_select %p192, %s18, 0
        %s194 = sadd.s32 %s193, %s191
        %s195 = scalar_lea.vmem %s2, %s194
      $region28: #{dgcnn_encoder.9} parent=15 // pred_fallthru
        _
    $region16: #{dgcnn_encoder.9} parent=5 // pred_fallthru
      _
    %p196 = scmp.le.s32.totalorder 1, %s9
    %p197 = scmp.lt.s32.totalorder %s9, 3
    %p198 = pnand %p196, %p197
    %p199 = pneg %p198
    // Predicated region
    $region29: #{dgcnn_encoder.9} parent=5 // pred_check
      _
    $region30: #{dgcnn_encoder.9} parent=5 // pred_check_branch
      %201 = sbr.rel (%p198) target = $region32
    $region31: #{dgcnn_encoder.9} parent=5 // pred_region
      %s202 = ssub.s32 %s9, 1
      %s203 = smul.u32 4, %s20
      %p204 = scmp.lt.s32.totalorder %s19, 1
      %s205 = scalar_select %p204, %s19, 1
      %p206 = scmp.lt.s32.totalorder %s203, 3
      %s207 = scalar_select %p206, %s203, 3
      %s208 = smul.addr %s205, 4
      %s209 = sadd.s32 %s207, %s208
      %s210 = smul.addr %s209, 4
      %s211 = scalar_lea.vmem %s0, %s210
      %p212 = pneg %p56
      %p213 = pneg %p53
      %s214 = smul.u32 4, %s21
      %p215 = scmp.lt.s32.totalorder %s19, 1
      %s216 = scalar_select %p215, %s19, 1
      %p217 = scmp.lt.s32.totalorder %s214, 3
      %s218 = scalar_select %p217, %s214, 3
      %s219 = smul.addr %s216, 4
      %s220 = sadd.s32 %s218, %s219
      %s221 = smul.addr %s220, 4
      %s222 = scalar_lea.vmem %s1, %s221
      %p223 = pneg %p84
      %p224 = pneg %p81
      %p225 = scmp.lt.s32.totalorder %s19, 1
      %s226 = scalar_select %p225, %s19, 1
      %p227 = scmp.lt.s32.totalorder %s21, 0
      %s228 = scalar_select %p227, %s21, 0
      %s229 = sadd.s32 %s228, %s226
      %s230 = scalar_lea.vmem %s2, %s229
      %p231 = pneg %p112
      %p232 = pneg %p109
      %p233 = pneg %p142
      %p234 = pneg %p139
      %s235 = smul.u32 4, %s20
      %p236 = scmp.lt.s32.totalorder %s19, 1
      %s237 = scalar_select %p236, %s19, 1
      %p238 = scmp.lt.s32.totalorder %s235, 3
      %s239 = scalar_select %p238, %s235, 3
      %p240 = scmp.lt.s32.totalorder %s21, 0
      %s241 = scalar_select %p240, %s21, 0
      %s242 = sadd.s32 %s241, %s239
      %s243 = smul.addr %s237, 4
      %s244 = sadd.s32 %s242, %s243
      %s245 = smul.addr %s244, 8
      %s246 = scalar_lea.vmem %s3, %s245
      %s247 = smul.u32 4, %s20
      %p248 = scmp.lt.s32.totalorder %s19, 1
      %s249 = scalar_select %p248, %s19, 1
      %p250 = scmp.lt.s32.totalorder %s247, 3
      %s251 = scalar_select %p250, %s247, 3
      %s252 = smul.addr %s249, 4
      %s253 = sadd.s32 %s251, %s252
      %s254 = smul.addr %s253, 4
      %s255 = scalar_lea.vmem %s0, %s254
      %s256 = smul.u32 4, %s20
      %s257 = smul.u32 4, %s21
      %p258 = scmp.lt.s32.totalorder %s19, 1
      %s259 = scalar_select %p258, %s19, 1
      %p260 = scmp.lt.s32.totalorder %s257, 3
      %s261 = scalar_select %p260, %s257, 3
      %s262 = smul.addr %s259, 4
      %s263 = sadd.s32 %s261, %s262
      %s264 = smul.addr %s263, 4
      %s265 = scalar_lea.vmem %s1, %s264
      %s266 = smul.u32 4, %s21
      %p267 = scmp.lt.s32.totalorder %s19, 1
      %s268 = scalar_select %p267, %s19, 1
      %p269 = scmp.lt.s32.totalorder %s21, 0
      %s270 = scalar_select %p269, %s21, 0
      %s271 = sadd.s32 %s270, %s268
      %s272 = scalar_lea.vmem %s2, %s271
      %s273 = smul.u32 4, %s20
      %p274 = scmp.lt.s32.totalorder %s19, 1
      %s275 = scalar_select %p274, %s19, 1
      %p276 = scmp.lt.s32.totalorder %s273, 3
      %s277 = scalar_select %p276, %s273, 3
      %p278 = scmp.lt.s32.totalorder %s21, 0
      %s279 = scalar_select %p278, %s21, 0
      %s280 = sadd.s32 %s279, %s277
      %s281 = smul.addr %s275, 4
      %s282 = sadd.s32 %s280, %s281
      %s283 = smul.addr %s282, 8
      %s284 = scalar_lea.vmem %s3, %s283
      %s285 = smul.u32 4, %s20
      %v287 = vld [vmem:[%s255] sm:$0xf]
      %v288 = vld [vmem:[%s255 + $0x4] sm:$0xf]
      %v289 = vld [vmem:[%s255 + $0x8] sm:$0xf]
      %v290 = vld [vmem:[%s255 + $0xc] sm:$0xf]
      %v291 = vld [vmem:[%s265] sm:$0xf]
      %v292 = vld [vmem:[%s265 + $0x4] sm:$0xf]
      %v293 = vld [vmem:[%s265 + $0x8] sm:$0xf]
      %v294 = vld [vmem:[%s265 + $0xc] sm:$0xf]
      %v299 = vunpack.c.l.b16 %v287
      %v300 = vunpack.c.l.b16 %v288
      %v301 = vunpack.c.l.b16 %v289
      %v302 = vunpack.c.l.b16 %v290
      %v303 = vpack.c.b16 %v300, %v299
      %v304 = vpack.c.b16 %v302, %v301
      %v309 = vunpack.c.l.b16 %v291
      %v310 = vunpack.c.l.b16 %v292
      %v311 = vunpack.c.l.b16 %v293
      %v312 = vunpack.c.l.b16 %v294
      %v313 = vpack.c.b16 %v310, %v309
      %v314 = vpack.c.b16 %v312, %v311
      %vm315 = vcmask 23552
      %v317 = vsel %vm315, %v303, 0
      %v320 = vsel %vm315, %v304, 0
      %v323 = vsel %vm315, %v313, 0
      %v326 = vsel %vm315, %v314, 0
      %328 = vmatprep.subr.bf16.mxu0 0
      %329 = vmatpush1.bf16.xpose.msra.mxu0 %v323
      %330 = vmatprep.subr.bf16.mxu0 0
      %331 = vmatpush1.bf16.xpose.msra.mxu0 %v326
      %332 = vmatprep.subr.bf16.mxu0 0
      %333 = vmatpush1.bf16.xpose.msra.mxu0 0
      %334 = vmatprep.subr.bf16.mxu0 0
      %335 = vmatpush1.bf16.xpose.msra.mxu0 0
      %336 = vmatprep.subr.bf16.mxu0 0
      %337 = vmatpush1.bf16.xpose.msra.mxu0 0
      %338 = vmatprep.subr.bf16.mxu0 0
      %339 = vmatpush1.bf16.xpose.msra.mxu0 0
      %340 = vmatprep.subr.bf16.mxu0 0
      %341 = vmatpush1.bf16.xpose.msra.mxu0 0
      %342 = vmatprep.subr.bf16.mxu0 0
      %343 = vmatpush1.bf16.xpose.msra.mxu0 0
      %344 = vmatprep.subr.bf16.mxu0 0
      %345 = vmatpush1.bf16.xpose.msra.mxu0 0
      %346 = vmatprep.subr.bf16.mxu0 0
      %347 = vmatpush1.bf16.xpose.msra.mxu0 0
      %348 = vmatprep.subr.bf16.mxu0 0
      %349 = vmatpush1.bf16.xpose.msra.mxu0 0
      %350 = vmatprep.subr.bf16.mxu0 0
      %351 = vmatpush1.bf16.xpose.msra.mxu0 0
      %352 = vmatprep.subr.bf16.mxu0 0
      %353 = vmatpush1.bf16.xpose.msra.mxu0 0
      %354 = vmatprep.subr.bf16.mxu0 0
      %355 = vmatpush1.bf16.xpose.msra.mxu0 0
      %356 = vmatprep.subr.bf16.mxu0 0
      %357 = vmatpush1.bf16.xpose.msra.mxu0 0
      %358 = vmatprep.subr.bf16.mxu0 0
      %359 = vmatpush1.bf16.xpose.msra.mxu0 0
      %360 = vmatprep.mubr.bf16.mxu0 0
      %361 = vmatmul.mubr.bf16.gmra.mrb[0].mxu0 %v317
      %v362 = vpop.f32.mrb[0].mxu0
      %v363 = vadd.f32 0.0, %v362
      %v364 = vpop.f32.mrb[0].mxu0
      %v365 = vpop.f32.mrb[0].mxu0
      %v366 = vadd.f32 0.0, %v365
      %v367 = vpop.f32.mrb[0].mxu0
      %368 = vmatprep.mubr.bf16.mxu0 0
      %369 = vmatmul.mubr.bf16.gmra.mrb[0].mxu0 %v320
      %v370 = vpop.f32.mrb[0].mxu0
      %v371 = vadd.f32 0.0, %v370
      %v372 = vpop.f32.mrb[0].mxu0
      %v373 = vpop.f32.mrb[0].mxu0
      %v374 = vadd.f32 0.0, %v373
      %v375 = vpop.f32.mrb[0].mxu0
      %376 = vdwg.mxu0
      %v377 = vunpack.c.l.bf16 %v287
      %v378 = vunpack.c.l.bf16 %v288
      %v379 = vunpack.c.l.bf16 %v289
      %v380 = vunpack.c.l.bf16 %v290
      %v381 = vmul.f32 %v377, %v377
      %v382 = vmul.f32 %v378, %v378
      %v383 = vmul.f32 %v379, %v379
      %v384 = vmul.f32 %v380, %v380
      %v385 = vsel %vm315, %v381, 0.0
      %386 = vadd.xlane.f32.xlu0 %v385
      %v387 = vpop.xlane.xlu0 %386
      %v388 = vsel %vm315, %v382, 0.0
      %389 = vadd.xlane.f32.xlu0 %v388
      %v390 = vpop.xlane.xlu0 %389
      %v391 = vsel %vm315, %v383, 0.0
      %392 = vadd.xlane.f32.xlu0 %v391
      %v393 = vpop.xlane.xlu0 %392
      %v394 = vsel %vm315, %v384, 0.0
      %395 = vadd.xlane.f32.xlu0 %v394
      %v396 = vpop.xlane.xlu0 %395
      %v397 = vmul.f32 %v363, 2.0
      %v398 = vmul.f32 %v366, 2.0
      %v399 = vmul.f32 %v371, 2.0
      %v400 = vmul.f32 %v374, 2.0
      %v401 = vsub.f32 %v397, %v387
      %v402 = vsub.f32 %v398, %v390
      %v403 = vsub.f32 %v399, %v393
      %v404 = vsub.f32 %v400, %v396
      %v405 = vld [vmem:[%s272] sm:$0x1]
      %v407 = vlaneseq
      %v408 = vshrl.u32 %v407, 7
      %v409 = vsub.s32 0, %v408
      %v410 = vrot.slane %v405, %v409
      %v412 = vsub.f32 %v401, %v410
      %v413 = vsub.f32 %v402, %v410
      %v414 = vsub.f32 %v403, %v410
      %v415 = vsub.f32 %v404, %v410
      %vm416 = vcmask 261120
      %417 = vst.msk [vmem:[%s284] sm:$0xff] %vm416, %v412
      %418 = vst.msk [vmem:[%s284 + $0x8] sm:$0xff] %vm416, %v413
      %419 = vst.msk [vmem:[%s284 + $0x10] sm:$0xff] %vm416, %v414
      %420 = vst.msk [vmem:[%s284 + $0x18] sm:$0xff] %vm416, %v415
      %s421 = smul.u32 4, %s20
      %p422 = scmp.lt.s32.totalorder %s19, 1
      %s423 = scalar_select %p422, %s19, 1
      %p424 = scmp.lt.s32.totalorder %s421, 3
      %s425 = scalar_select %p424, %s421, 3
      %p426 = scmp.lt.s32.totalorder %s21, 0
      %s427 = scalar_select %p426, %s21, 0
      %s428 = sadd.s32 %s427, %s425
      %s429 = smul.addr %s423, 4
      %s430 = sadd.s32 %s428, %s429
      %s431 = smul.addr %s430, 8
      %s432 = scalar_lea.vmem %s3, %s431
      // Predicated region
      $region33: #{dgcnn_encoder.9} parent=31 // pred_check
        %p433 = pneg %p139
      $region34: #{dgcnn_encoder.9} parent=31 // pred_check_branch
        %435 = sbr.rel (%p433) target = $region36
      $region35: #{dgcnn_encoder.9} parent=31 // pred_region
        %s436 = smul.u32 4, %s20
      $region36: #{dgcnn_encoder.9} parent=31 // pred_fallthru
        _
    $region32: #{dgcnn_encoder.9} parent=5 // pred_fallthru
      _
    %p437 = scmp.le.s32.totalorder 2, %s9
    // Predicated region
    $region37: #{dgcnn_encoder.9} parent=5 // pred_check
      %p438 = pneg %p437
    $region38: #{dgcnn_encoder.9} parent=5 // pred_check_branch
      %440 = sbr.rel (%p438) target = $region40
    $region39: #{dgcnn_encoder.9} parent=5 // pred_region
      %s441 = ssub.s32 %s9, 2
      // Predicated region
      $region41: #{dgcnn_encoder.9} parent=39 // pred_check
        %p442 = pneg %p145
      $region42: #{dgcnn_encoder.9} parent=39 // pred_check_branch
        %444 = sbr.rel (%p442) target = $region44
      $region43: #{dgcnn_encoder.9} parent=39 // pred_region
        %s445 = smul.u32 4, %s23
        %p446 = scmp.lt.s32.totalorder %s22, 1
        %s447 = scalar_select %p446, %s22, 1
        %p448 = scmp.lt.s32.totalorder %s445, 3
        %s449 = scalar_select %p448, %s445, 3
        %p450 = scmp.lt.s32.totalorder %s24, 0
        %s451 = scalar_select %p450, %s24, 0
        %s452 = sadd.s32 %s451, %s449
        %s453 = smul.addr %s447, 4
        %s454 = sadd.s32 %s452, %s453
        %s455 = smul.addr %s454, 8
        %s456 = scalar_lea.vmem %s3, %s455
      $region44: #{dgcnn_encoder.9} parent=39 // pred_fallthru
        _
    $region40: #{dgcnn_encoder.9} parent=5 // pred_fallthru
      _
  $region6: #{dgcnn_encoder.9} parent=0 // loop_footer
    %s13 = sadd.s32 1, %s9
  $region7: #{dgcnn_encoder.9} parent=0 // loop_footer_branch
    %8 = sbr.rel target = $region3
  $region8: #{dgcnn_encoder.9} parent=0 // loop_exit
    _

// kernel: dgcnn_encoder.10
$region0: #{dgcnn_encoder.10}
  #allocation0 [shape = 'u32[]', space=smem, size = 0x4, offset = 0x4, fixed_abs, tag = 'smem constant byte address 0x4 - core index']
  #allocation1 [shape = 'u32[144,128]{1,0:T(1,128)}', space=vmem, size = 0x12000, scoped, tag = 'internal scratch']
  %s0 = inlined_call_operand.vmem [shape: bf16[64,3], index: 0, kind: input, shape index: {}]
  %s1 = inlined_call_operand.vmem [shape: bf16[3,64], index: 1, kind: input, shape index: {}]
  %s2 = inlined_call_operand.vmem [shape: bf16[3,64], index: 2, kind: input, shape index: {}]
  %s3 = inlined_call_operand.vmem [shape: f32[1,64], index: 3, kind: input, shape index: {}]
  %s4 = inlined_call_operand.vmem [shape: f32[1,64], index: 4, kind: input, shape index: {}]
  %s5 = inlined_call_operand.vmem [shape: bf16[64,64], index: 5, kind: output, shape index: {0}]
  %s6 = inlined_call_operand.vmem [shape: bf16[64,64], index: 6, kind: output, shape index: {1}]
  %7 = xla_tuple %s5, %s6
  %s8 = sld [smem:[#allocation0]]
  $region38: #{dgcnn_encoder.10} parent=0
    _
  %s10 = ssub.s32 1, %s8
  %s11 = scalar_select 0, %s10, %s8
  // Predicated region
  $region2: #{dgcnn_encoder.10} parent=0 // pred_check
    _
  $region3: #{dgcnn_encoder.10} parent=0 // pred_check_branch
    %13 = sbr.rel (0) target = $region5
  $region4: #{dgcnn_encoder.10} parent=0 // pred_region
    _
  $region5: #{dgcnn_encoder.10} parent=0 // pred_fallthru
    _
  // Predicated region
  $region6: #{dgcnn_encoder.10} parent=0 // pred_check
    _
  $region7: #{dgcnn_encoder.10} parent=0 // pred_check_branch
    %15 = sbr.rel (0) target = $region9
  $region8: #{dgcnn_encoder.10} parent=0 // pred_region
    _
  $region9: #{dgcnn_encoder.10} parent=0 // pred_fallthru
    _
  // Predicated region
  $region10: #{dgcnn_encoder.10} parent=0 // pred_check
    _
  $region11: #{dgcnn_encoder.10} parent=0 // pred_check_branch
    %17 = sbr.rel (0) target = $region13
  $region12: #{dgcnn_encoder.10} parent=0 // pred_region
    _
  $region13: #{dgcnn_encoder.10} parent=0 // pred_fallthru
    _
  // Predicated region
  $region14: #{dgcnn_encoder.10} parent=0 // pred_check
    _
  $region15: #{dgcnn_encoder.10} parent=0 // pred_check_branch
    %19 = sbr.rel (0) target = $region17
  $region16: #{dgcnn_encoder.10} parent=0 // pred_region
    _
  $region17: #{dgcnn_encoder.10} parent=0 // pred_fallthru
    _
  // Predicated region
  $region18: #{dgcnn_encoder.10} parent=0 // pred_check
    _
  $region19: #{dgcnn_encoder.10} parent=0 // pred_check_branch
    %21 = sbr.rel (0) target = $region21
  $region20: #{dgcnn_encoder.10} parent=0 // pred_region
    _
  $region21: #{dgcnn_encoder.10} parent=0 // pred_fallthru
    _
  %v22 = vld [vmem:[%s0] sm:$0xf]
  %v23 = vld [vmem:[%s0 + $0x4] sm:$0xf]
  %v24 = vld [vmem:[%s0 + $0x8] sm:$0xf]
  %v25 = vld [vmem:[%s0 + $0xc] sm:$0xf]
  %v26 = vld [vmem:[%s0 + $0x10] sm:$0xf]
  %v27 = vld [vmem:[%s0 + $0x14] sm:$0xf]
  %v28 = vld [vmem:[%s0 + $0x18] sm:$0xf]
  %v29 = vld [vmem:[%s0 + $0x1c] sm:$0xf]
  %v30 = vld [vmem:[%s3] sm:$0x1]
  %v31 = vunpack.c.l.bf16 %v22
  %v32 = vunpack.c.l.bf16 %v23
  %v33 = vunpack.c.l.bf16 %v24
  %v34 = vunpack.c.l.bf16 %v25
  %v35 = vunpack.c.l.bf16 %v26
  %v36 = vunpack.c.l.bf16 %v27
  %v37 = vunpack.c.l.bf16 %v28
  %v38 = vunpack.c.l.bf16 %v29
  %v39 = vld [vmem:[%s1] sm:$0x3]
  %v40 = vunpack.c.l.bf16 %v39
  %v41 = vld [vmem:[%s2] sm:$0x3]
  %v42 = vunpack.c.l.bf16 %v41
  %44 = vset.pattern.permute.xlu0 0
  %45 = vperm.xlu0 %44, %v31
  %v46 = vpop.permute.xlu0 %45
  %49 = vset.pattern.permute.xlu0 0
  %50 = vperm.xlu0 %49, %v32
  %v51 = vpop.permute.xlu0 %50
  %54 = vset.pattern.permute.xlu0 0
  %55 = vperm.xlu0 %54, %v33
  %v56 = vpop.permute.xlu0 %55
  %59 = vset.pattern.permute.xlu0 0
  %60 = vperm.xlu0 %59, %v34
  %v61 = vpop.permute.xlu0 %60
  %64 = vset.pattern.permute.xlu0 0
  %65 = vperm.xlu0 %64, %v35
  %v66 = vpop.permute.xlu0 %65
  %69 = vset.pattern.permute.xlu0 0
  %70 = vperm.xlu0 %69, %v36
  %v71 = vpop.permute.xlu0 %70
  %74 = vset.pattern.permute.xlu0 0
  %75 = vperm.xlu0 %74, %v37
  %v76 = vpop.permute.xlu0 %75
  %79 = vset.pattern.permute.xlu0 0
  %80 = vperm.xlu0 %79, %v38
  %v81 = vpop.permute.xlu0 %80
  %v83 = vlaneseq
  %v84 = vshrl.u32 %v83, 7
  %v85 = vsub.s32 0, %v84
  %v86 = vrot.slane %v40, %v85
  %v87 = vmul.f32 %v46, %v86
  %v88 = vmul.f32 %v51, %v86
  %v89 = vmul.f32 %v56, %v86
  %v90 = vmul.f32 %v61, %v86
  %v91 = vmul.f32 %v66, %v86
  %v92 = vmul.f32 %v71, %v86
  %v93 = vmul.f32 %v76, %v86
  %v94 = vmul.f32 %v81, %v86
  %v95 = vlaneseq
  %v96 = vshrl.u32 %v95, 7
  %v97 = vsub.s32 0, %v96
  %v98 = vrot.slane %v42, %v97
  %v99 = vmul.f32 %v46, %v98
  %v100 = vmul.f32 %v51, %v98
  %v101 = vmul.f32 %v56, %v98
  %v102 = vmul.f32 %v61, %v98
  %v103 = vmul.f32 %v66, %v98
  %v104 = vmul.f32 %v71, %v98
  %v105 = vmul.f32 %v76, %v98
  %v106 = vmul.f32 %v81, %v98
  %107 = vset.pattern.permute.xlu0 1
  %108 = vperm.xlu0 %107, %v31
  %v109 = vpop.permute.xlu0 %108
  %111 = vset.pattern.permute.xlu0 1
  %112 = vperm.xlu0 %111, %v32
  %v113 = vpop.permute.xlu0 %112
  %115 = vset.pattern.permute.xlu0 1
  %116 = vperm.xlu0 %115, %v33
  %v117 = vpop.permute.xlu0 %116
  %119 = vset.pattern.permute.xlu0 1
  %120 = vperm.xlu0 %119, %v34
  %v121 = vpop.permute.xlu0 %120
  %123 = vset.pattern.permute.xlu0 1
  %124 = vperm.xlu0 %123, %v35
  %v125 = vpop.permute.xlu0 %124
  %127 = vset.pattern.permute.xlu0 1
  %128 = vperm.xlu0 %127, %v36
  %v129 = vpop.permute.xlu0 %128
  %131 = vset.pattern.permute.xlu0 1
  %132 = vperm.xlu0 %131, %v37
  %v133 = vpop.permute.xlu0 %132
  %135 = vset.pattern.permute.xlu0 1
  %136 = vperm.xlu0 %135, %v38
  %v137 = vpop.permute.xlu0 %136
  %v139 = vlaneseq
  %v140 = vshrl.u32 %v139, 7
  %v141 = vsub.s32 1, %v140
  %v142 = vrot.slane %v40, %v141
  %v143 = vmul.f32 %v109, %v142
  %v144 = vmul.f32 %v113, %v142
  %v145 = vmul.f32 %v117, %v142
  %v146 = vmul.f32 %v121, %v142
  %v147 = vmul.f32 %v125, %v142
  %v148 = vmul.f32 %v129, %v142
  %v149 = vmul.f32 %v133, %v142
  %v150 = vmul.f32 %v137, %v142
  %v151 = vadd.f32 %v87, %v143
  %v152 = vadd.f32 %v88, %v144
  %v153 = vadd.f32 %v89, %v145
  %v154 = vadd.f32 %v90, %v146
  %v155 = vadd.f32 %v91, %v147
  %v156 = vadd.f32 %v92, %v148
  %v157 = vadd.f32 %v93, %v149
  %v158 = vadd.f32 %v94, %v150
  %v159 = vlaneseq
  %v160 = vshrl.u32 %v159, 7
  %v161 = vsub.s32 1, %v160
  %v162 = vrot.slane %v42, %v161
  %v163 = vmul.f32 %v109, %v162
  %v164 = vmul.f32 %v113, %v162
  %v165 = vmul.f32 %v117, %v162
  %v166 = vmul.f32 %v121, %v162
  %v167 = vmul.f32 %v125, %v162
  %v168 = vmul.f32 %v129, %v162
  %v169 = vmul.f32 %v133, %v162
  %v170 = vmul.f32 %v137, %v162
  %v171 = vadd.f32 %v99, %v163
  %v172 = vadd.f32 %v100, %v164
  %v173 = vadd.f32 %v101, %v165
  %v174 = vadd.f32 %v102, %v166
  %v175 = vadd.f32 %v103, %v167
  %v176 = vadd.f32 %v104, %v168
  %v177 = vadd.f32 %v105, %v169
  %v178 = vadd.f32 %v106, %v170
  %179 = vset.pattern.permute.xlu0 2
  %180 = vperm.xlu0 %179, %v31
  %v181 = vpop.permute.xlu0 %180
  %183 = vset.pattern.permute.xlu0 2
  %184 = vperm.xlu0 %183, %v32
  %v185 = vpop.permute.xlu0 %184
  %187 = vset.pattern.permute.xlu0 2
  %188 = vperm.xlu0 %187, %v33
  %v189 = vpop.permute.xlu0 %188
  %191 = vset.pattern.permute.xlu0 2
  %192 = vperm.xlu0 %191, %v34
  %v193 = vpop.permute.xlu0 %192
  %195 = vset.pattern.permute.xlu0 2
  %196 = vperm.xlu0 %195, %v35
  %v197 = vpop.permute.xlu0 %196
  %199 = vset.pattern.permute.xlu0 2
  %200 = vperm.xlu0 %199, %v36
  %v201 = vpop.permute.xlu0 %200
  %203 = vset.pattern.permute.xlu0 2
  %204 = vperm.xlu0 %203, %v37
  %v205 = vpop.permute.xlu0 %204
  %207 = vset.pattern.permute.xlu0 2
  %208 = vperm.xlu0 %207, %v38
  %v209 = vpop.permute.xlu0 %208
  %v211 = vlaneseq
  %v212 = vshrl.u32 %v211, 7
  %v213 = vsub.s32 2, %v212
  %v214 = vrot.slane %v40, %v213
  %v215 = vmul.f32 %v181, %v214
  %v216 = vmul.f32 %v185, %v214
  %v217 = vmul.f32 %v189, %v214
  %v218 = vmul.f32 %v193, %v214
  %v219 = vmul.f32 %v197, %v214
  %v220 = vmul.f32 %v201, %v214
  %v221 = vmul.f32 %v205, %v214
  %v222 = vmul.f32 %v209, %v214
  %v223 = vadd.f32 %v151, %v215
  %v224 = vadd.f32 %v152, %v216
  %v225 = vadd.f32 %v153, %v217
  %v226 = vadd.f32 %v154, %v218
  %v227 = vadd.f32 %v155, %v219
  %v228 = vadd.f32 %v156, %v220
  %v229 = vadd.f32 %v157, %v221
  %v230 = vadd.f32 %v158, %v222
  %v231 = vlaneseq
  %v232 = vshrl.u32 %v231, 7
  %v233 = vsub.s32 2, %v232
  %v234 = vrot.slane %v42, %v233
  %v235 = vmul.f32 %v181, %v234
  %v236 = vmul.f32 %v185, %v234
  %v237 = vmul.f32 %v189, %v234
  %v238 = vmul.f32 %v193, %v234
  %v239 = vmul.f32 %v197, %v234
  %v240 = vmul.f32 %v201, %v234
  %v241 = vmul.f32 %v205, %v234
  %v242 = vmul.f32 %v209, %v234
  %v243 = vadd.f32 %v171, %v235
  %v244 = vadd.f32 %v172, %v236
  %v245 = vadd.f32 %v173, %v237
  %v246 = vadd.f32 %v174, %v238
  %v247 = vadd.f32 %v175, %v239
  %v248 = vadd.f32 %v176, %v240
  %v249 = vadd.f32 %v177, %v241
  %v250 = vadd.f32 %v178, %v242
  %v252 = vlaneseq
  %v253 = vshrl.u32 %v252, 7
  %v254 = vsub.s32 0, %v253
  %v255 = vrot.slane %v30, %v254
  %v257 = vmul.f32 %v223, %v255
  %v258 = vmul.f32 %v224, %v255
  %v259 = vmul.f32 %v225, %v255
  %v260 = vmul.f32 %v226, %v255
  %v261 = vmul.f32 %v227, %v255
  %v262 = vmul.f32 %v228, %v255
  %v263 = vmul.f32 %v229, %v255
  %v264 = vmul.f32 %v230, %v255
  %v265 = vpack.c.bf16 %v258, %v257
  %v266 = vpack.c.bf16 %v260, %v259
  %v267 = vpack.c.bf16 %v262, %v261
  %v268 = vpack.c.bf16 %v264, %v263
  %v273 = vunpack.c.l.b16 %v265
  %v274 = vunpack.c.h.b16 %v265
  %v275 = vunpack.c.l.b16 %v266
  %v276 = vunpack.c.h.b16 %v266
  %v277 = vunpack.c.l.b16 %v267
  %v278 = vunpack.c.h.b16 %v267
  %v279 = vunpack.c.l.b16 %v268
  %v280 = vunpack.c.h.b16 %v268
  %v281 = vpack.c.b16 %v273, %v273
  %v282 = vpack.c.b16 %v274, %v274
  %v283 = vpack.c.b16 %v275, %v275
  %v284 = vpack.c.b16 %v276, %v276
  %v285 = vpack.c.b16 %v277, %v277
  %v286 = vpack.c.b16 %v278, %v278
  %v287 = vpack.c.b16 %v279, %v279
  %v288 = vpack.c.b16 %v280, %v280
  %vm297 = vcmask 519168
  %298 = vst.msk [vmem:[%s5] sm:$0xf] %vm297, %v281
  %299 = vst.msk [vmem:[%s5 + $0x4] sm:$0xf] %vm297, %v282
  %300 = vst.msk [vmem:[%s5 + $0x8] sm:$0xf] %vm297, %v283
  %301 = vst.msk [vmem:[%s5 + $0xc] sm:$0xf] %vm297, %v284
  %302 = vst.msk [vmem:[%s5 + $0x10] sm:$0xf] %vm297, %v285
  %303 = vst.msk [vmem:[%s5 + $0x14] sm:$0xf] %vm297, %v286
  %304 = vst.msk [vmem:[%s5 + $0x18] sm:$0xf] %vm297, %v287
  %305 = vst.msk [vmem:[%s5 + $0x1c] sm:$0xf] %vm297, %v288
  %v306 = vmul.f32 %v243, %v255
  %v307 = vmul.f32 %v244, %v255
  %v308 = vmul.f32 %v245, %v255
  %v309 = vmul.f32 %v246, %v255
  %v310 = vmul.f32 %v247, %v255
  %v311 = vmul.f32 %v248, %v255
  %v312 = vmul.f32 %v249, %v255
  %v313 = vmul.f32 %v250, %v255
  %v314 = vld [vmem:[%s4] sm:$0x1]
  %v316 = vlaneseq
  %v317 = vshrl.u32 %v316, 7
  %v318 = vsub.s32 0, %v317
  %v319 = vrot.slane %v314, %v318
  %v321 = vadd.f32 %v306, %v319
  %v322 = vadd.f32 %v307, %v319
  %v323 = vadd.f32 %v308, %v319
  %v324 = vadd.f32 %v309, %v319
  %v325 = vadd.f32 %v310, %v319
  %v326 = vadd.f32 %v311, %v319
  %v327 = vadd.f32 %v312, %v319
  %v328 = vadd.f32 %v313, %v319
  %v329 = vpack.c.bf16 %v322, %v321
  %v330 = vpack.c.bf16 %v324, %v323
  %v331 = vpack.c.bf16 %v326, %v325
  %v332 = vpack.c.bf16 %v328, %v327
  %v337 = vunpack.c.l.b16 %v329
  %v338 = vunpack.c.h.b16 %v329
  %v339 = vunpack.c.l.b16 %v330
  %v340 = vunpack.c.h.b16 %v330
  %v341 = vunpack.c.l.b16 %v331
  %v342 = vunpack.c.h.b16 %v331
  %v343 = vunpack.c.l.b16 %v332
  %v344 = vunpack.c.h.b16 %v332
  %v345 = vpack.c.b16 %v337, %v337
  %v346 = vpack.c.b16 %v338, %v338
  %v347 = vpack.c.b16 %v339, %v339
  %v348 = vpack.c.b16 %v340, %v340
  %v349 = vpack.c.b16 %v341, %v341
  %v350 = vpack.c.b16 %v342, %v342
  %v351 = vpack.c.b16 %v343, %v343
  %v352 = vpack.c.b16 %v344, %v344
  %361 = vst.msk [vmem:[%s6] sm:$0xf] %vm297, %v345
  %362 = vst.msk [vmem:[%s6 + $0x4] sm:$0xf] %vm297, %v346
  %363 = vst.msk [vmem:[%s6 + $0x8] sm:$0xf] %vm297, %v347
  %364 = vst.msk [vmem:[%s6 + $0xc] sm:$0xf] %vm297, %v348
  %365 = vst.msk [vmem:[%s6 + $0x10] sm:$0xf] %vm297, %v349
  %366 = vst.msk [vmem:[%s6 + $0x14] sm:$0xf] %vm297, %v350
  %367 = vst.msk [vmem:[%s6 + $0x18] sm:$0xf] %vm297, %v351
  %368 = vst.msk [vmem:[%s6 + $0x1c] sm:$0xf] %vm297, %v352
  // Predicated region
  $region22: #{dgcnn_encoder.10} parent=0 // pred_check
    _
  $region23: #{dgcnn_encoder.10} parent=0 // pred_check_branch
    %370 = sbr.rel (0) target = $region25
  $region24: #{dgcnn_encoder.10} parent=0 // pred_region
    _
  $region25: #{dgcnn_encoder.10} parent=0 // pred_fallthru
    _
  // Predicated region
  $region26: #{dgcnn_encoder.10} parent=0 // pred_check
    _
  $region27: #{dgcnn_encoder.10} parent=0 // pred_check_branch
    %372 = sbr.rel (0) target = $region29
  $region28: #{dgcnn_encoder.10} parent=0 // pred_region
    _
  $region29: #{dgcnn_encoder.10} parent=0 // pred_fallthru
    _
  // Predicated region
  $region30: #{dgcnn_encoder.10} parent=0 // pred_check
    _
  $region31: #{dgcnn_encoder.10} parent=0 // pred_check_branch
    %374 = sbr.rel (0) target = $region33
  $region32: #{dgcnn_encoder.10} parent=0 // pred_region
    _
  $region33: #{dgcnn_encoder.10} parent=0 // pred_fallthru
    _
  // Predicated region
  $region34: #{dgcnn_encoder.10} parent=0 // pred_check
    _
  $region35: #{dgcnn_encoder.10} parent=0 // pred_check_branch
    %376 = sbr.rel (0) target = $region37
  $region36: #{dgcnn_encoder.10} parent=0 // pred_region
    _
  $region37: #{dgcnn_encoder.10} parent=0 // pred_fallthru
    _

// kernel: dgcnn_encoder.11
$region0: #{dgcnn_encoder.11}
  #allocation0 [shape = 'u32[]', space=smem, size = 0x4, offset = 0x4, fixed_abs, tag = 'smem constant byte address 0x4 - core index']
  #allocation1 [shape = 'u32[144,128]{1,0:T(1,128)}', space=vmem, size = 0x12000, scoped, tag = 'internal scratch']
  %s0 = inlined_call_operand.vmem [shape: bf16[2,32,64], index: 0, kind: input, shape index: {}, may-alias: {0,1}]
  %s1 = inlined_call_operand.vmem [shape: bf16[2,32,64], index: 1, kind: input, shape index: {}, may-alias: {0,1}]
  %s2 = inlined_call_operand.vmem [shape: f32[2,1,32], index: 2, kind: input, shape index: {}]
  %s3 = inlined_call_operand.vmem [shape: f32[2,32,32], index: 3, kind: output, shape index: {}]
  %s4 = sld [smem:[#allocation0]]
  $region45: #{dgcnn_encoder.11} parent=0
    _
  %s6 = ssub.s32 1, %s4
  %s7 = scalar_select 0, %s6, %s4
  loop: start=0, step=1, limit=4
  $region2: #{dgcnn_encoder.11} parent=0 // loop_pre_header
    _
  $region3: #{dgcnn_encoder.11} parent=0 // loop_header
    %s9 = sphi 0, %s13
    %p10 = scmp.ge.s32.totalorder %s9, 4
    %s16 = sphi 0, %s35
    %s17 = sphi 0, %s31
    %s18 = sphi 0, %s27
    %s19 = sphi 0, %s16
    %s20 = sphi 0, %s17
    %s21 = sphi 0, %s18
    %s22 = sphi 0, %s19
    %s23 = sphi 0, %s20
    %s24 = sphi 0, %s21
    %s40 = sphi 0, %s42
    %s43 = sphi 0, %s40
    %s44 = sphi 0, %s43
    %s60 = sphi 0, %s44
    %s68 = sphi 0, %s70
    %s71 = sphi 0, %s68
    %s72 = sphi 0, %s71
    %s88 = sphi 0, %s72
    %s96 = sphi 0, %s98
    %s99 = sphi 0, %s96
    %s100 = sphi 0, %s99
    %s116 = sphi 0, %s100
    %s126 = sphi 0, %s128
    %s129 = sphi 0, %s126
    %s130 = sphi 0, %s129
    %s146 = sphi 0, %s130
  $region4: #{dgcnn_encoder.11} parent=0 // loop_header_branch
    %12 = sbr.rel (%p10) target = $region8
  $region5: #{dgcnn_encoder.11} parent=0 // loop_body
    %s14 = ssub.s32 %s9, 1
    %s15 = ssub.s32 %s9, 2
    %s25 = sadd.s32 1, %s18
    %p26 = scmp.ge.s32.totalorder %s25, 1
    %s27 = scalar_select %p26, 0, %s25
    %s28 = sadd.s32 1, %s17
    %s29 = scalar_select %p26, %s28, %s17
    %p30 = scmp.ge.s32.totalorder %s29, 1
    %s31 = scalar_select %p30, 0, %s29
    %s32 = sadd.s32 1, %s16
    %s33 = scalar_select %p30, %s32, %s16
    %p34 = scmp.ge.s32.totalorder %s33, 2
    %s35 = scalar_select %p34, 0, %s33
    %s36 = ssub.s32 %s16, %s35
    %s37 = ssub.s32 %s17, %s31
    %s38 = sor.u32 %s36, %s37
    %p39 = scmp.eq.s32.totalorder %s38, 0
    %s41 = sadd.s32 %s40, 1
    %s42 = scalar_select %p39, %s40, %s41
    %p45 = pneg %p39
    %p46 = scmp.eq.s32.totalorder %s9, 1
    %p47 = por %p45, %p46
    %p48 = scmp.ne.s32.totalorder %s40, %s43
    %p49 = scmp.eq.s32.totalorder %s9, 0
    %p50 = por %p48, %p49
    %p51 = scmp.ne.s32.totalorder %s40, %s43
    %p52 = scmp.eq.s32.totalorder %s14, 1
    %p53 = por %p51, %p52
    %p54 = scmp.ne.s32.totalorder %s43, %s44
    %p55 = scmp.eq.s32.totalorder %s14, 0
    %p56 = por %p54, %p55
    %p57 = scmp.ne.s32.totalorder %s43, %s44
    %p58 = scmp.eq.s32.totalorder %s15, 1
    %p59 = por %p57, %p58
    %p61 = scmp.ne.s32.totalorder %s44, %s60
    %p62 = scmp.eq.s32.totalorder %s15, 0
    %p63 = por %p61, %p62
    %s64 = ssub.s32 %s16, %s35
    %s65 = ssub.s32 %s18, %s27
    %s66 = sor.u32 %s64, %s65
    %p67 = scmp.eq.s32.totalorder %s66, 0
    %s69 = sadd.s32 %s68, 1
    %s70 = scalar_select %p67, %s68, %s69
    %p73 = pneg %p67
    %p74 = scmp.eq.s32.totalorder %s9, 1
    %p75 = por %p73, %p74
    %p76 = scmp.ne.s32.totalorder %s68, %s71
    %p77 = scmp.eq.s32.totalorder %s9, 0
    %p78 = por %p76, %p77
    %p79 = scmp.ne.s32.totalorder %s68, %s71
    %p80 = scmp.eq.s32.totalorder %s14, 1
    %p81 = por %p79, %p80
    %p82 = scmp.ne.s32.totalorder %s71, %s72
    %p83 = scmp.eq.s32.totalorder %s14, 0
    %p84 = por %p82, %p83
    %p85 = scmp.ne.s32.totalorder %s71, %s72
    %p86 = scmp.eq.s32.totalorder %s15, 1
    %p87 = por %p85, %p86
    %p89 = scmp.ne.s32.totalorder %s72, %s88
    %p90 = scmp.eq.s32.totalorder %s15, 0
    %p91 = por %p89, %p90
    %s92 = ssub.s32 %s16, %s35
    %s93 = ssub.s32 %s18, %s27
    %s94 = sor.u32 %s92, %s93
    %p95 = scmp.eq.s32.totalorder %s94, 0
    %s97 = sadd.s32 %s96, 1
    %s98 = scalar_select %p95, %s96, %s97
    %p101 = pneg %p95
    %p102 = scmp.eq.s32.totalorder %s9, 1
    %p103 = por %p101, %p102
    %p104 = scmp.ne.s32.totalorder %s96, %s99
    %p105 = scmp.eq.s32.totalorder %s9, 0
    %p106 = por %p104, %p105
    %p107 = scmp.ne.s32.totalorder %s96, %s99
    %p108 = scmp.eq.s32.totalorder %s14, 1
    %p109 = por %p107, %p108
    %p110 = scmp.ne.s32.totalorder %s99, %s100
    %p111 = scmp.eq.s32.totalorder %s14, 0
    %p112 = por %p110, %p111
    %p113 = scmp.ne.s32.totalorder %s99, %s100
    %p114 = scmp.eq.s32.totalorder %s15, 1
    %p115 = por %p113, %p114
    %p117 = scmp.ne.s32.totalorder %s100, %s116
    %p118 = scmp.eq.s32.totalorder %s15, 0
    %p119 = por %p117, %p118
    %s120 = ssub.s32 %s16, %s35
    %s121 = ssub.s32 %s17, %s31
    %s122 = sor.u32 %s120, %s121
    %s123 = ssub.s32 %s18, %s27
    %s124 = sor.u32 %s122, %s123
    %p125 = scmp.eq.s32.totalorder %s124, 0
    %s127 = sadd.s32 %s126, 1
    %s128 = scalar_select %p125, %s126, %s127
    %p131 = pneg %p125
    %p132 = scmp.eq.s32.totalorder %s9, 1
    %p133 = por %p131, %p132
    %p134 = scmp.ne.s32.totalorder %s126, %s129
    %p135 = scmp.eq.s32.totalorder %s9, 0
    %p136 = por %p134, %p135
    %p137 = scmp.ne.s32.totalorder %s126, %s129
    %p138 = scmp.eq.s32.totalorder %s14, 1
    %p139 = por %p137, %p138
    %p140 = scmp.ne.s32.totalorder %s129, %s130
    %p141 = scmp.eq.s32.totalorder %s14, 0
    %p142 = por %p140, %p141
    %p143 = scmp.ne.s32.totalorder %s129, %s130
    %p144 = scmp.eq.s32.totalorder %s15, 1
    %p145 = por %p143, %p144
    %p147 = scmp.ne.s32.totalorder %s130, %s146
    %p148 = scmp.eq.s32.totalorder %s15, 0
    %p149 = por %p147, %p148
    %p150 = scmp.le.s32.totalorder 1, %s9
    %p151 = scmp.lt.s32.totalorder %s9, 3
    %p152 = pnand %p150, %p151
    %p153 = pneg %p152
    // Predicated region
    $region9: #{dgcnn_encoder.11} parent=5 // pred_check
      _
    $region10: #{dgcnn_encoder.11} parent=5 // pred_check_branch
      %155 = sbr.rel (%p152) target = $region12
    $region11: #{dgcnn_encoder.11} parent=5 // pred_region
      %s156 = ssub.s32 %s9, 1
    $region12: #{dgcnn_encoder.11} parent=5 // pred_fallthru
      _
    %p157 = scmp.lt.s32.totalorder %s9, 2
    // Predicated region
    $region13: #{dgcnn_encoder.11} parent=5 // pred_check
      %p158 = pneg %p157
    $region14: #{dgcnn_encoder.11} parent=5 // pred_check_branch
      %160 = sbr.rel (%p158) target = $region16
    $region15: #{dgcnn_encoder.11} parent=5 // pred_region
      // Predicated region
      $region17: #{dgcnn_encoder.11} parent=15 // pred_check
        %p161 = pneg %p50
      $region18: #{dgcnn_encoder.11} parent=15 // pred_check_branch
        %163 = sbr.rel (%p161) target = $region20
      $region19: #{dgcnn_encoder.11} parent=15 // pred_region
        %s164 = smul.u32 4, %s17
        %p165 = scmp.lt.s32.totalorder %s16, 1
        %s166 = scalar_select %p165, %s16, 1
        %p167 = scmp.lt.s32.totalorder %s164, 3
        %s168 = scalar_select %p167, %s164, 3
        %s169 = smul.addr %s166, 4
        %s170 = sadd.s32 %s168, %s169
        %s171 = smul.addr %s170, 4
        %s172 = scalar_lea.vmem %s0, %s171
        %s173 = smul.u32 4, %s17
      $region20: #{dgcnn_encoder.11} parent=15 // pred_fallthru
        _
      // Predicated region
      $region21: #{dgcnn_encoder.11} parent=15 // pred_check
        %p174 = pneg %p78
      $region22: #{dgcnn_encoder.11} parent=15 // pred_check_branch
        %176 = sbr.rel (%p174) target = $region24
      $region23: #{dgcnn_encoder.11} parent=15 // pred_region
        %s177 = smul.u32 4, %s18
        %p178 = scmp.lt.s32.totalorder %s16, 1
        %s179 = scalar_select %p178, %s16, 1
        %p180 = scmp.lt.s32.totalorder %s177, 3
        %s181 = scalar_select %p180, %s177, 3
        %s182 = smul.addr %s179, 4
        %s183 = sadd.s32 %s181, %s182
        %s184 = smul.addr %s183, 4
        %s185 = scalar_lea.vmem %s1, %s184
        %s186 = smul.u32 4, %s18
      $region24: #{dgcnn_encoder.11} parent=15 // pred_fallthru
        _
      // Predicated region
      $region25: #{dgcnn_encoder.11} parent=15 // pred_check
        %p187 = pneg %p106
      $region26: #{dgcnn_encoder.11} parent=15 // pred_check_branch
        %189 = sbr.rel (%p187) target = $region28
      $region27: #{dgcnn_encoder.11} parent=15 // pred_region
        %p190 = scmp.lt.s32.totalorder %s16, 1
        %s191 = scalar_select %p190, %s16, 1
        %p192 = scmp.lt.s32.totalorder %s18, 0
        %s193 = scalar_select %p192, %s18, 0
        %s194 = sadd.s32 %s193, %s191
        %s195 = scalar_lea.vmem %s2, %s194
      $region28: #{dgcnn_encoder.11} parent=15 // pred_fallthru
        _
    $region16: #{dgcnn_encoder.11} parent=5 // pred_fallthru
      _
    %p196 = scmp.le.s32.totalorder 1, %s9
    %p197 = scmp.lt.s32.totalorder %s9, 3
    %p198 = pnand %p196, %p197
    %p199 = pneg %p198
    // Predicated region
    $region29: #{dgcnn_encoder.11} parent=5 // pred_check
      _
    $region30: #{dgcnn_encoder.11} parent=5 // pred_check_branch
      %201 = sbr.rel (%p198) target = $region32
    $region31: #{dgcnn_encoder.11} parent=5 // pred_region
      %s202 = ssub.s32 %s9, 1
      %s203 = smul.u32 4, %s20
      %p204 = scmp.lt.s32.totalorder %s19, 1
      %s205 = scalar_select %p204, %s19, 1
      %p206 = scmp.lt.s32.totalorder %s203, 3
      %s207 = scalar_select %p206, %s203, 3
      %s208 = smul.addr %s205, 4
      %s209 = sadd.s32 %s207, %s208
      %s210 = smul.addr %s209, 4
      %s211 = scalar_lea.vmem %s0, %s210
      %p212 = pneg %p56
      %p213 = pneg %p53
      %s214 = smul.u32 4, %s21
      %p215 = scmp.lt.s32.totalorder %s19, 1
      %s216 = scalar_select %p215, %s19, 1
      %p217 = scmp.lt.s32.totalorder %s214, 3
      %s218 = scalar_select %p217, %s214, 3
      %s219 = smul.addr %s216, 4
      %s220 = sadd.s32 %s218, %s219
      %s221 = smul.addr %s220, 4
      %s222 = scalar_lea.vmem %s1, %s221
      %p223 = pneg %p84
      %p224 = pneg %p81
      %p225 = scmp.lt.s32.totalorder %s19, 1
      %s226 = scalar_select %p225, %s19, 1
      %p227 = scmp.lt.s32.totalorder %s21, 0
      %s228 = scalar_select %p227, %s21, 0
      %s229 = sadd.s32 %s228, %s226
      %s230 = scalar_lea.vmem %s2, %s229
      %p231 = pneg %p112
      %p232 = pneg %p109
      %p233 = pneg %p142
      %p234 = pneg %p139
      %s235 = smul.u32 4, %s20
      %p236 = scmp.lt.s32.totalorder %s19, 1
      %s237 = scalar_select %p236, %s19, 1
      %p238 = scmp.lt.s32.totalorder %s235, 3
      %s239 = scalar_select %p238, %s235, 3
      %p240 = scmp.lt.s32.totalorder %s21, 0
      %s241 = scalar_select %p240, %s21, 0
      %s242 = sadd.s32 %s241, %s239
      %s243 = smul.addr %s237, 4
      %s244 = sadd.s32 %s242, %s243
      %s245 = smul.addr %s244, 8
      %s246 = scalar_lea.vmem %s3, %s245
      %s247 = smul.u32 4, %s20
      %p248 = scmp.lt.s32.totalorder %s19, 1
      %s249 = scalar_select %p248, %s19, 1
      %p250 = scmp.lt.s32.totalorder %s247, 3
      %s251 = scalar_select %p250, %s247, 3
      %s252 = smul.addr %s249, 4
      %s253 = sadd.s32 %s251, %s252
      %s254 = smul.addr %s253, 4
      %s255 = scalar_lea.vmem %s0, %s254
      %s256 = smul.u32 4, %s20
      %s257 = smul.u32 4, %s21
      %p258 = scmp.lt.s32.totalorder %s19, 1
      %s259 = scalar_select %p258, %s19, 1
      %p260 = scmp.lt.s32.totalorder %s257, 3
      %s261 = scalar_select %p260, %s257, 3
      %s262 = smul.addr %s259, 4
      %s263 = sadd.s32 %s261, %s262
      %s264 = smul.addr %s263, 4
      %s265 = scalar_lea.vmem %s1, %s264
      %s266 = smul.u32 4, %s21
      %p267 = scmp.lt.s32.totalorder %s19, 1
      %s268 = scalar_select %p267, %s19, 1
      %p269 = scmp.lt.s32.totalorder %s21, 0
      %s270 = scalar_select %p269, %s21, 0
      %s271 = sadd.s32 %s270, %s268
      %s272 = scalar_lea.vmem %s2, %s271
      %s273 = smul.u32 4, %s20
      %p274 = scmp.lt.s32.totalorder %s19, 1
      %s275 = scalar_select %p274, %s19, 1
      %p276 = scmp.lt.s32.totalorder %s273, 3
      %s277 = scalar_select %p276, %s273, 3
      %p278 = scmp.lt.s32.totalorder %s21, 0
      %s279 = scalar_select %p278, %s21, 0
      %s280 = sadd.s32 %s279, %s277
      %s281 = smul.addr %s275, 4
      %s282 = sadd.s32 %s280, %s281
      %s283 = smul.addr %s282, 8
      %s284 = scalar_lea.vmem %s3, %s283
      %s285 = smul.u32 4, %s20
      %v287 = vld [vmem:[%s255] sm:$0xf]
      %v288 = vld [vmem:[%s255 + $0x4] sm:$0xf]
      %v289 = vld [vmem:[%s255 + $0x8] sm:$0xf]
      %v290 = vld [vmem:[%s255 + $0xc] sm:$0xf]
      %v291 = vld [vmem:[%s265] sm:$0xf]
      %v292 = vld [vmem:[%s265 + $0x4] sm:$0xf]
      %v293 = vld [vmem:[%s265 + $0x8] sm:$0xf]
      %v294 = vld [vmem:[%s265 + $0xc] sm:$0xf]
      %v299 = vunpack.c.l.b16 %v287
      %v300 = vunpack.c.l.b16 %v288
      %v301 = vunpack.c.l.b16 %v289
      %v302 = vunpack.c.l.b16 %v290
      %v303 = vpack.c.b16 %v300, %v299
      %v304 = vpack.c.b16 %v302, %v301
      %v309 = vunpack.c.l.b16 %v291
      %v310 = vunpack.c.l.b16 %v292
      %v311 = vunpack.c.l.b16 %v293
      %v312 = vunpack.c.l.b16 %v294
      %v313 = vpack.c.b16 %v310, %v309
      %v314 = vpack.c.b16 %v312, %v311
      %vm315 = vcmask 523264
      %v317 = vsel %vm315, %v303, 0
      %v320 = vsel %vm315, %v304, 0
      %v323 = vsel %vm315, %v313, 0
      %v326 = vsel %vm315, %v314, 0
      %328 = vmatprep.subr.bf16.mxu0 0
      %329 = vmatpush1.bf16.xpose.msra.mxu0 %v323
      %330 = vmatprep.subr.bf16.mxu0 0
      %331 = vmatpush1.bf16.xpose.msra.mxu0 %v326
      %332 = vmatprep.subr.bf16.mxu0 0
      %333 = vmatpush1.bf16.xpose.msra.mxu0 0
      %334 = vmatprep.subr.bf16.mxu0 0
      %335 = vmatpush1.bf16.xpose.msra.mxu0 0
      %336 = vmatprep.subr.bf16.mxu0 0
      %337 = vmatpush1.bf16.xpose.msra.mxu0 0
      %338 = vmatprep.subr.bf16.mxu0 0
      %339 = vmatpush1.bf16.xpose.msra.mxu0 0
      %340 = vmatprep.subr.bf16.mxu0 0
      %341 = vmatpush1.bf16.xpose.msra.mxu0 0
      %342 = vmatprep.subr.bf16.mxu0 0
      %343 = vmatpush1.bf16.xpose.msra.mxu0 0
      %344 = vmatprep.subr.bf16.mxu0 0
      %345 = vmatpush1.bf16.xpose.msra.mxu0 0
      %346 = vmatprep.subr.bf16.mxu0 0
      %347 = vmatpush1.bf16.xpose.msra.mxu0 0
      %348 = vmatprep.subr.bf16.mxu0 0
      %349 = vmatpush1.bf16.xpose.msra.mxu0 0
      %350 = vmatprep.subr.bf16.mxu0 0
      %351 = vmatpush1.bf16.xpose.msra.mxu0 0
      %352 = vmatprep.subr.bf16.mxu0 0
      %353 = vmatpush1.bf16.xpose.msra.mxu0 0
      %354 = vmatprep.subr.bf16.mxu0 0
      %355 = vmatpush1.bf16.xpose.msra.mxu0 0
      %356 = vmatprep.subr.bf16.mxu0 0
      %357 = vmatpush1.bf16.xpose.msra.mxu0 0
      %358 = vmatprep.subr.bf16.mxu0 0
      %359 = vmatpush1.bf16.xpose.msra.mxu0 0
      %360 = vmatprep.mubr.bf16.mxu0 0
      %361 = vmatmul.mubr.bf16.gmra.mrb[0].mxu0 %v317
      %v362 = vpop.f32.mrb[0].mxu0
      %v363 = vadd.f32 0.0, %v362
      %v364 = vpop.f32.mrb[0].mxu0
      %v365 = vpop.f32.mrb[0].mxu0
      %v366 = vadd.f32 0.0, %v365
      %v367 = vpop.f32.mrb[0].mxu0
      %368 = vmatprep.mubr.bf16.mxu0 0
      %369 = vmatmul.mubr.bf16.gmra.mrb[0].mxu0 %v320
      %v370 = vpop.f32.mrb[0].mxu0
      %v371 = vadd.f32 0.0, %v370
      %v372 = vpop.f32.mrb[0].mxu0
      %v373 = vpop.f32.mrb[0].mxu0
      %v374 = vadd.f32 0.0, %v373
      %v375 = vpop.f32.mrb[0].mxu0
      %376 = vdwg.mxu0
      %v377 = vunpack.c.l.bf16 %v287
      %v378 = vunpack.c.l.bf16 %v288
      %v379 = vunpack.c.l.bf16 %v289
      %v380 = vunpack.c.l.bf16 %v290
      %v381 = vmul.f32 %v377, %v377
      %v382 = vmul.f32 %v378, %v378
      %v383 = vmul.f32 %v379, %v379
      %v384 = vmul.f32 %v380, %v380
      %v385 = vsel %vm315, %v381, 0.0
      %386 = vadd.xlane.f32.xlu0 %v385
      %v387 = vpop.xlane.xlu0 %386
      %v388 = vsel %vm315, %v382, 0.0
      %389 = vadd.xlane.f32.xlu0 %v388
      %v390 = vpop.xlane.xlu0 %389
      %v391 = vsel %vm315, %v383, 0.0
      %392 = vadd.xlane.f32.xlu0 %v391
      %v393 = vpop.xlane.xlu0 %392
      %v394 = vsel %vm315, %v384, 0.0
      %395 = vadd.xlane.f32.xlu0 %v394
      %v396 = vpop.xlane.xlu0 %395
      %v397 = vmul.f32 %v363, 2.0
      %v398 = vmul.f32 %v366, 2.0
      %v399 = vmul.f32 %v371, 2.0
      %v400 = vmul.f32 %v374, 2.0
      %v401 = vsub.f32 %v397, %v387
      %v402 = vsub.f32 %v398, %v390
      %v403 = vsub.f32 %v399, %v393
      %v404 = vsub.f32 %v400, %v396
      %v405 = vld [vmem:[%s272] sm:$0x1]
      %v407 = vlaneseq
      %v408 = vshrl.u32 %v407, 7
      %v409 = vsub.s32 0, %v408
      %v410 = vrot.slane %v405, %v409
      %v412 = vsub.f32 %v401, %v410
      %v413 = vsub.f32 %v402, %v410
      %v414 = vsub.f32 %v403, %v410
      %v415 = vsub.f32 %v404, %v410
      %vm416 = vcmask 261120
      %417 = vst.msk [vmem:[%s284] sm:$0xff] %vm416, %v412
      %418 = vst.msk [vmem:[%s284 + $0x8] sm:$0xff] %vm416, %v413
      %419 = vst.msk [vmem:[%s284 + $0x10] sm:$0xff] %vm416, %v414
      %420 = vst.msk [vmem:[%s284 + $0x18] sm:$0xff] %vm416, %v415
      %s421 = smul.u32 4, %s20
      %p422 = scmp.lt.s32.totalorder %s19, 1
      %s423 = scalar_select %p422, %s19, 1
      %p424 = scmp.lt.s32.totalorder %s421, 3
      %s425 = scalar_select %p424, %s421, 3
      %p426 = scmp.lt.s32.totalorder %s21, 0
      %s427 = scalar_select %p426, %s21, 0
      %s428 = sadd.s32 %s427, %s425
      %s429 = smul.addr %s423, 4
      %s430 = sadd.s32 %s428, %s429
      %s431 = smul.addr %s430, 8
      %s432 = scalar_lea.vmem %s3, %s431
      // Predicated region
      $region33: #{dgcnn_encoder.11} parent=31 // pred_check
        %p433 = pneg %p139
      $region34: #{dgcnn_encoder.11} parent=31 // pred_check_branch
        %435 = sbr.rel (%p433) target = $region36
      $region35: #{dgcnn_encoder.11} parent=31 // pred_region
        %s436 = smul.u32 4, %s20
      $region36: #{dgcnn_encoder.11} parent=31 // pred_fallthru
        _
    $region32: #{dgcnn_encoder.11} parent=5 // pred_fallthru
      _
    %p437 = scmp.le.s32.totalorder 2, %s9
    // Predicated region
    $region37: #{dgcnn_encoder.11} parent=5 // pred_check
      %p438 = pneg %p437
    $region38: #{dgcnn_encoder.11} parent=5 // pred_check_branch
      %440 = sbr.rel (%p438) target = $region40
    $region39: #{dgcnn_encoder.11} parent=5 // pred_region
      %s441 = ssub.s32 %s9, 2
      // Predicated region
      $region41: #{dgcnn_encoder.11} parent=39 // pred_check
        %p442 = pneg %p145
      $region42: #{dgcnn_encoder.11} parent=39 // pred_check_branch
        %444 = sbr.rel (%p442) target = $region44
      $region43: #{dgcnn_encoder.11} parent=39 // pred_region
        %s445 = smul.u32 4, %s23
        %p446 = scmp.lt.s32.totalorder %s22, 1
        %s447 = scalar_select %p446, %s22, 1
        %p448 = scmp.lt.s32.totalorder %s445, 3
        %s449 = scalar_select %p448, %s445, 3
        %p450 = scmp.lt.s32.totalorder %s24, 0
        %s451 = scalar_select %p450, %s24, 0
        %s452 = sadd.s32 %s451, %s449
        %s453 = smul.addr %s447, 4
        %s454 = sadd.s32 %s452, %s453
        %s455 = smul.addr %s454, 8
        %s456 = scalar_lea.vmem %s3, %s455
      $region44: #{dgcnn_encoder.11} parent=39 // pred_fallthru
        _
    $region40: #{dgcnn_encoder.11} parent=5 // pred_fallthru
      _
  $region6: #{dgcnn_encoder.11} parent=0 // loop_footer
    %s13 = sadd.s32 1, %s9
  $region7: #{dgcnn_encoder.11} parent=0 // loop_footer_branch
    %8 = sbr.rel target = $region3
  $region8: #{dgcnn_encoder.11} parent=0 // loop_exit
    _

// kernel: dgcnn_encoder.14
$region0: #{dgcnn_encoder.14}
  #allocation0 [shape = 'u32[]', space=smem, size = 0x4, offset = 0x4, fixed_abs, tag = 'smem constant byte address 0x4 - core index']
  #allocation1 [shape = 'u32[144,128]{1,0:T(1,128)}', space=vmem, size = 0x12000, scoped, tag = 'internal scratch']
  %s0 = inlined_call_operand.vmem [shape: bf16[64,64], index: 0, kind: input, shape index: {}]
  %s1 = inlined_call_operand.vmem [shape: bf16[64,128], index: 1, kind: input, shape index: {}]
  %s2 = inlined_call_operand.vmem [shape: bf16[64,128], index: 2, kind: input, shape index: {}]
  %s3 = inlined_call_operand.vmem [shape: f32[1,128], index: 3, kind: input, shape index: {}]
  %s4 = inlined_call_operand.vmem [shape: f32[1,128], index: 4, kind: input, shape index: {}]
  %s5 = inlined_call_operand.vmem [shape: bf16[64,128], index: 5, kind: output, shape index: {0}]
  %s6 = inlined_call_operand.vmem [shape: bf16[64,128], index: 6, kind: output, shape index: {1}]
  %7 = xla_tuple %s5, %s6
  %s8 = sld [smem:[#allocation0]]
  $region38: #{dgcnn_encoder.14} parent=0
    _
  %s10 = ssub.s32 1, %s8
  %s11 = scalar_select 0, %s10, %s8
  // Predicated region
  $region2: #{dgcnn_encoder.14} parent=0 // pred_check
    _
  $region3: #{dgcnn_encoder.14} parent=0 // pred_check_branch
    %13 = sbr.rel (0) target = $region5
  $region4: #{dgcnn_encoder.14} parent=0 // pred_region
    _
  $region5: #{dgcnn_encoder.14} parent=0 // pred_fallthru
    _
  // Predicated region
  $region6: #{dgcnn_encoder.14} parent=0 // pred_check
    _
  $region7: #{dgcnn_encoder.14} parent=0 // pred_check_branch
    %15 = sbr.rel (0) target = $region9
  $region8: #{dgcnn_encoder.14} parent=0 // pred_region
    _
  $region9: #{dgcnn_encoder.14} parent=0 // pred_fallthru
    _
  // Predicated region
  $region10: #{dgcnn_encoder.14} parent=0 // pred_check
    _
  $region11: #{dgcnn_encoder.14} parent=0 // pred_check_branch
    %17 = sbr.rel (0) target = $region13
  $region12: #{dgcnn_encoder.14} parent=0 // pred_region
    _
  $region13: #{dgcnn_encoder.14} parent=0 // pred_fallthru
    _
  // Predicated region
  $region14: #{dgcnn_encoder.14} parent=0 // pred_check
    _
  $region15: #{dgcnn_encoder.14} parent=0 // pred_check_branch
    %19 = sbr.rel (0) target = $region17
  $region16: #{dgcnn_encoder.14} parent=0 // pred_region
    _
  $region17: #{dgcnn_encoder.14} parent=0 // pred_fallthru
    _
  // Predicated region
  $region18: #{dgcnn_encoder.14} parent=0 // pred_check
    _
  $region19: #{dgcnn_encoder.14} parent=0 // pred_check_branch
    %21 = sbr.rel (0) target = $region21
  $region20: #{dgcnn_encoder.14} parent=0 // pred_region
    _
  $region21: #{dgcnn_encoder.14} parent=0 // pred_fallthru
    _
  %v23 = vld [vmem:[%s0] sm:$0xf]
  %v24 = vld [vmem:[%s0 + $0x4] sm:$0xf]
  %v25 = vld [vmem:[%s0 + $0x8] sm:$0xf]
  %v26 = vld [vmem:[%s0 + $0xc] sm:$0xf]
  %v27 = vld [vmem:[%s0 + $0x10] sm:$0xf]
  %v28 = vld [vmem:[%s0 + $0x14] sm:$0xf]
  %v29 = vld [vmem:[%s0 + $0x18] sm:$0xf]
  %v30 = vld [vmem:[%s0 + $0x1c] sm:$0xf]
  %v31 = vld [vmem:[%s3] sm:$0x1]
  %v32 = vld [vmem:[%s1] sm:$0xf]
  %v33 = vld [vmem:[%s1 + $0x4] sm:$0xf]
  %v34 = vld [vmem:[%s1 + $0x8] sm:$0xf]
  %v35 = vld [vmem:[%s1 + $0xc] sm:$0xf]
  %v36 = vld [vmem:[%s1 + $0x10] sm:$0xf]
  %v37 = vld [vmem:[%s1 + $0x14] sm:$0xf]
  %v38 = vld [vmem:[%s1 + $0x18] sm:$0xf]
  %v39 = vld [vmem:[%s1 + $0x1c] sm:$0xf]
  %v48 = vunpack.c.l.b16 %v23
  %v49 = vunpack.c.l.b16 %v24
  %v50 = vunpack.c.l.b16 %v25
  %v51 = vunpack.c.l.b16 %v26
  %v52 = vunpack.c.l.b16 %v27
  %v53 = vunpack.c.l.b16 %v28
  %v54 = vunpack.c.l.b16 %v29
  %v55 = vunpack.c.l.b16 %v30
  %v56 = vpack.c.b16 %v49, %v48
  %v57 = vpack.c.b16 %v51, %v50
  %v58 = vpack.c.b16 %v53, %v52
  %v59 = vpack.c.b16 %v55, %v54
  %v68 = vunpack.c.l.b16 %v32
  %v69 = vunpack.c.l.b16 %v33
  %v70 = vunpack.c.l.b16 %v34
  %v71 = vunpack.c.l.b16 %v35
  %v72 = vunpack.c.l.b16 %v36
  %v73 = vunpack.c.l.b16 %v37
  %v74 = vunpack.c.l.b16 %v38
  %v75 = vunpack.c.l.b16 %v39
  %v76 = vpack.c.b16 %v69, %v68
  %v77 = vpack.c.b16 %v71, %v70
  %v78 = vpack.c.b16 %v73, %v72
  %v79 = vpack.c.b16 %v75, %v74
  %vm84 = vcmask 523264
  %v86 = vsel %vm84, %v56, 0
  %v89 = vsel %vm84, %v57, 0
  %v92 = vsel %vm84, %v58, 0
  %v95 = vsel %vm84, %v59, 0
  %97 = vmatprep.subr.bf16.mxu0 0
  %98 = vmatpush1.bf16.msra.mxu0 %v76
  %99 = vmatprep.subr.bf16.mxu0 0
  %100 = vmatpush1.bf16.msra.mxu0 %v77
  %101 = vmatprep.subr.bf16.mxu0 0
  %102 = vmatpush1.bf16.msra.mxu0 %v78
  %103 = vmatprep.subr.bf16.mxu0 0
  %104 = vmatpush1.bf16.msra.mxu0 %v79
  %105 = vmatprep.subr.bf16.mxu0 0
  %106 = vmatpush1.bf16.msra.mxu0 0
  %107 = vmatprep.subr.bf16.mxu0 0
  %108 = vmatpush1.bf16.msra.mxu0 0
  %109 = vmatprep.subr.bf16.mxu0 0
  %110 = vmatpush1.bf16.msra.mxu0 0
  %111 = vmatprep.subr.bf16.mxu0 0
  %112 = vmatpush1.bf16.msra.mxu0 0
  %113 = vmatprep.subr.bf16.mxu0 0
  %114 = vmatpush1.bf16.msra.mxu0 0
  %115 = vmatprep.subr.bf16.mxu0 0
  %116 = vmatpush1.bf16.msra.mxu0 0
  %117 = vmatprep.subr.bf16.mxu0 0
  %118 = vmatpush1.bf16.msra.mxu0 0
  %119 = vmatprep.subr.bf16.mxu0 0
  %120 = vmatpush1.bf16.msra.mxu0 0
  %121 = vmatprep.subr.bf16.mxu0 0
  %122 = vmatpush1.bf16.msra.mxu0 0
  %123 = vmatprep.subr.bf16.mxu0 0
  %124 = vmatpush1.bf16.msra.mxu0 0
  %125 = vmatprep.subr.bf16.mxu0 0
  %126 = vmatpush1.bf16.msra.mxu0 0
  %127 = vmatprep.subr.bf16.mxu0 0
  %128 = vmatpush1.bf16.msra.mxu0 0
  %129 = vmatprep.mubr.bf16.mxu0 0
  %130 = vmatmul.mubr.bf16.gmra.mrb[0].mxu0 %v86
  %v131 = vpop.f32.mrb[0].mxu0
  %v132 = vadd.f32 0.0, %v131
  %v133 = vpop.f32.mrb[0].mxu0
  %v134 = vpop.f32.mrb[0].mxu0
  %v135 = vadd.f32 0.0, %v134
  %v136 = vpop.f32.mrb[0].mxu0
  %137 = vmatprep.mubr.bf16.mxu0 0
  %138 = vmatmul.mubr.bf16.gmra.mrb[0].mxu0 %v89
  %v139 = vpop.f32.mrb[0].mxu0
  %v140 = vadd.f32 0.0, %v139
  %v141 = vpop.f32.mrb[0].mxu0
  %v142 = vpop.f32.mrb[0].mxu0
  %v143 = vadd.f32 0.0, %v142
  %v144 = vpop.f32.mrb[0].mxu0
  %145 = vmatprep.mubr.bf16.mxu0 0
  %146 = vmatmul.mubr.bf16.gmra.mrb[0].mxu0 %v92
  %v147 = vpop.f32.mrb[0].mxu0
  %v148 = vadd.f32 0.0, %v147
  %v149 = vpop.f32.mrb[0].mxu0
  %v150 = vpop.f32.mrb[0].mxu0
  %v151 = vadd.f32 0.0, %v150
  %v152 = vpop.f32.mrb[0].mxu0
  %153 = vmatprep.mubr.bf16.mxu0 0
  %154 = vmatmul.mubr.bf16.gmra.mrb[0].mxu0 %v95
  %v155 = vpop.f32.mrb[0].mxu0
  %v156 = vadd.f32 0.0, %v155
  %v157 = vpop.f32.mrb[0].mxu0
  %v158 = vpop.f32.mrb[0].mxu0
  %v159 = vadd.f32 0.0, %v158
  %v160 = vpop.f32.mrb[0].mxu0
  %161 = vdwg.mxu0
  %v162 = vld [vmem:[%s2] sm:$0xf]
  %v163 = vld [vmem:[%s2 + $0x4] sm:$0xf]
  %v164 = vld [vmem:[%s2 + $0x8] sm:$0xf]
  %v165 = vld [vmem:[%s2 + $0xc] sm:$0xf]
  %v166 = vld [vmem:[%s2 + $0x10] sm:$0xf]
  %v167 = vld [vmem:[%s2 + $0x14] sm:$0xf]
  %v168 = vld [vmem:[%s2 + $0x18] sm:$0xf]
  %v169 = vld [vmem:[%s2 + $0x1c] sm:$0xf]
  %v178 = vunpack.c.l.b16 %v162
  %v179 = vunpack.c.l.b16 %v163
  %v180 = vunpack.c.l.b16 %v164
  %v181 = vunpack.c.l.b16 %v165
  %v182 = vunpack.c.l.b16 %v166
  %v183 = vunpack.c.l.b16 %v167
  %v184 = vunpack.c.l.b16 %v168
  %v185 = vunpack.c.l.b16 %v169
  %v186 = vpack.c.b16 %v179, %v178
  %v187 = vpack.c.b16 %v181, %v180
  %v188 = vpack.c.b16 %v183, %v182
  %v189 = vpack.c.b16 %v185, %v184
  %194 = vmatprep.subr.bf16.mxu0 0
  %195 = vmatpush1.bf16.msra.mxu0 %v186
  %196 = vmatprep.subr.bf16.mxu0 0
  %197 = vmatpush1.bf16.msra.mxu0 %v187
  %198 = vmatprep.subr.bf16.mxu0 0
  %199 = vmatpush1.bf16.msra.mxu0 %v188
  %200 = vmatprep.subr.bf16.mxu0 0
  %201 = vmatpush1.bf16.msra.mxu0 %v189
  %202 = vmatprep.subr.bf16.mxu0 0
  %203 = vmatpush1.bf16.msra.mxu0 0
  %204 = vmatprep.subr.bf16.mxu0 0
  %205 = vmatpush1.bf16.msra.mxu0 0
  %206 = vmatprep.subr.bf16.mxu0 0
  %207 = vmatpush1.bf16.msra.mxu0 0
  %208 = vmatprep.subr.bf16.mxu0 0
  %209 = vmatpush1.bf16.msra.mxu0 0
  %210 = vmatprep.subr.bf16.mxu0 0
  %211 = vmatpush1.bf16.msra.mxu0 0
  %212 = vmatprep.subr.bf16.mxu0 0
  %213 = vmatpush1.bf16.msra.mxu0 0
  %214 = vmatprep.subr.bf16.mxu0 0
  %215 = vmatpush1.bf16.msra.mxu0 0
  %216 = vmatprep.subr.bf16.mxu0 0
  %217 = vmatpush1.bf16.msra.mxu0 0
  %218 = vmatprep.subr.bf16.mxu0 0
  %219 = vmatpush1.bf16.msra.mxu0 0
  %220 = vmatprep.subr.bf16.mxu0 0
  %221 = vmatpush1.bf16.msra.mxu0 0
  %222 = vmatprep.subr.bf16.mxu0 0
  %223 = vmatpush1.bf16.msra.mxu0 0
  %224 = vmatprep.subr.bf16.mxu0 0
  %225 = vmatpush1.bf16.msra.mxu0 0
  %226 = vmatprep.mubr.bf16.mxu0 0
  %227 = vmatmul.mubr.bf16.gmra.mrb[0].mxu0 %v86
  %v228 = vpop.f32.mrb[0].mxu0
  %v229 = vadd.f32 0.0, %v228
  %v230 = vpop.f32.mrb[0].mxu0
  %v231 = vpop.f32.mrb[0].mxu0
  %v232 = vadd.f32 0.0, %v231
  %v233 = vpop.f32.mrb[0].mxu0
  %234 = vmatprep.mubr.bf16.mxu0 0
  %235 = vmatmul.mubr.bf16.gmra.mrb[0].mxu0 %v89
  %v236 = vpop.f32.mrb[0].mxu0
  %v237 = vadd.f32 0.0, %v236
  %v238 = vpop.f32.mrb[0].mxu0
  %v239 = vpop.f32.mrb[0].mxu0
  %v240 = vadd.f32 0.0, %v239
  %v241 = vpop.f32.mrb[0].mxu0
  %242 = vmatprep.mubr.bf16.mxu0 0
  %243 = vmatmul.mubr.bf16.gmra.mrb[0].mxu0 %v92
  %v244 = vpop.f32.mrb[0].mxu0
  %v245 = vadd.f32 0.0, %v244
  %v246 = vpop.f32.mrb[0].mxu0
  %v247 = vpop.f32.mrb[0].mxu0
  %v248 = vadd.f32 0.0, %v247
  %v249 = vpop.f32.mrb[0].mxu0
  %250 = vmatprep.mubr.bf16.mxu0 0
  %251 = vmatmul.mubr.bf16.gmra.mrb[0].mxu0 %v95
  %v252 = vpop.f32.mrb[0].mxu0
  %v253 = vadd.f32 0.0, %v252
  %v254 = vpop.f32.mrb[0].mxu0
  %v255 = vpop.f32.mrb[0].mxu0
  %v256 = vadd.f32 0.0, %v255
  %v257 = vpop.f32.mrb[0].mxu0
  %258 = vdwg.mxu0
  %v260 = vlaneseq
  %v261 = vshrl.u32 %v260, 7
  %v262 = vsub.s32 0, %v261
  %v263 = vrot.slane %v31, %v262
  %v265 = vmul.f32 %v132, %v263
  %v266 = vmul.f32 %v135, %v263
  %v267 = vmul.f32 %v140, %v263
  %v268 = vmul.f32 %v143, %v263
  %v269 = vmul.f32 %v148, %v263
  %v270 = vmul.f32 %v151, %v263
  %v271 = vmul.f32 %v156, %v263
  %v272 = vmul.f32 %v159, %v263
  %v273 = vpack.c.bf16 %v266, %v265
  %v274 = vpack.c.bf16 %v268, %v267
  %v275 = vpack.c.bf16 %v270, %v269
  %v276 = vpack.c.bf16 %v272, %v271
  %v281 = vunpack.c.l.b16 %v273
  %v282 = vunpack.c.h.b16 %v273
  %v283 = vunpack.c.l.b16 %v274
  %v284 = vunpack.c.h.b16 %v274
  %v285 = vunpack.c.l.b16 %v275
  %v286 = vunpack.c.h.b16 %v275
  %v287 = vunpack.c.l.b16 %v276
  %v288 = vunpack.c.h.b16 %v276
  %v289 = vpack.c.b16 %v281, %v281
  %v290 = vpack.c.b16 %v282, %v282
  %v291 = vpack.c.b16 %v283, %v283
  %v292 = vpack.c.b16 %v284, %v284
  %v293 = vpack.c.b16 %v285, %v285
  %v294 = vpack.c.b16 %v286, %v286
  %v295 = vpack.c.b16 %v287, %v287
  %v296 = vpack.c.b16 %v288, %v288
  %305 = vst [vmem:[%s5] sm:$0xf] %v289
  %306 = vst [vmem:[%s5 + $0x4] sm:$0xf] %v290
  %307 = vst [vmem:[%s5 + $0x8] sm:$0xf] %v291
  %308 = vst [vmem:[%s5 + $0xc] sm:$0xf] %v292
  %309 = vst [vmem:[%s5 + $0x10] sm:$0xf] %v293
  %310 = vst [vmem:[%s5 + $0x14] sm:$0xf] %v294
  %311 = vst [vmem:[%s5 + $0x18] sm:$0xf] %v295
  %312 = vst [vmem:[%s5 + $0x1c] sm:$0xf] %v296
  %v313 = vmul.f32 %v229, %v263
  %v314 = vmul.f32 %v232, %v263
  %v315 = vmul.f32 %v237, %v263
  %v316 = vmul.f32 %v240, %v263
  %v317 = vmul.f32 %v245, %v263
  %v318 = vmul.f32 %v248, %v263
  %v319 = vmul.f32 %v253, %v263
  %v320 = vmul.f32 %v256, %v263
  %v321 = vld [vmem:[%s4] sm:$0x1]
  %v323 = vlaneseq
  %v324 = vshrl.u32 %v323, 7
  %v325 = vsub.s32 0, %v324
  %v326 = vrot.slane %v321, %v325
  %v328 = vadd.f32 %v313, %v326
  %v329 = vadd.f32 %v314, %v326
  %v330 = vadd.f32 %v315, %v326
  %v331 = vadd.f32 %v316, %v326
  %v332 = vadd.f32 %v317, %v326
  %v333 = vadd.f32 %v318, %v326
  %v334 = vadd.f32 %v319, %v326
  %v335 = vadd.f32 %v320, %v326
  %v336 = vpack.c.bf16 %v329, %v328
  %v337 = vpack.c.bf16 %v331, %v330
  %v338 = vpack.c.bf16 %v333, %v332
  %v339 = vpack.c.bf16 %v335, %v334
  %v344 = vunpack.c.l.b16 %v336
  %v345 = vunpack.c.h.b16 %v336
  %v346 = vunpack.c.l.b16 %v337
  %v347 = vunpack.c.h.b16 %v337
  %v348 = vunpack.c.l.b16 %v338
  %v349 = vunpack.c.h.b16 %v338
  %v350 = vunpack.c.l.b16 %v339
  %v351 = vunpack.c.h.b16 %v339
  %v352 = vpack.c.b16 %v344, %v344
  %v353 = vpack.c.b16 %v345, %v345
  %v354 = vpack.c.b16 %v346, %v346
  %v355 = vpack.c.b16 %v347, %v347
  %v356 = vpack.c.b16 %v348, %v348
  %v357 = vpack.c.b16 %v349, %v349
  %v358 = vpack.c.b16 %v350, %v350
  %v359 = vpack.c.b16 %v351, %v351
  %368 = vst [vmem:[%s6] sm:$0xf] %v352
  %369 = vst [vmem:[%s6 + $0x4] sm:$0xf] %v353
  %370 = vst [vmem:[%s6 + $0x8] sm:$0xf] %v354
  %371 = vst [vmem:[%s6 + $0xc] sm:$0xf] %v355
  %372 = vst [vmem:[%s6 + $0x10] sm:$0xf] %v356
  %373 = vst [vmem:[%s6 + $0x14] sm:$0xf] %v357
  %374 = vst [vmem:[%s6 + $0x18] sm:$0xf] %v358
  %375 = vst [vmem:[%s6 + $0x1c] sm:$0xf] %v359
  // Predicated region
  $region22: #{dgcnn_encoder.14} parent=0 // pred_check
    _
  $region23: #{dgcnn_encoder.14} parent=0 // pred_check_branch
    %377 = sbr.rel (0) target = $region25
  $region24: #{dgcnn_encoder.14} parent=0 // pred_region
    _
  $region25: #{dgcnn_encoder.14} parent=0 // pred_fallthru
    _
  // Predicated region
  $region26: #{dgcnn_encoder.14} parent=0 // pred_check
    _
  $region27: #{dgcnn_encoder.14} parent=0 // pred_check_branch
    %379 = sbr.rel (0) target = $region29
  $region28: #{dgcnn_encoder.14} parent=0 // pred_region
    _
  $region29: #{dgcnn_encoder.14} parent=0 // pred_fallthru
    _
  // Predicated region
  $region30: #{dgcnn_encoder.14} parent=0 // pred_check
    _
  $region31: #{dgcnn_encoder.14} parent=0 // pred_check_branch
    %381 = sbr.rel (0) target = $region33
  $region32: #{dgcnn_encoder.14} parent=0 // pred_region
    _
  $region33: #{dgcnn_encoder.14} parent=0 // pred_fallthru
    _
  // Predicated region
  $region34: #{dgcnn_encoder.14} parent=0 // pred_check
    _
  $region35: #{dgcnn_encoder.14} parent=0 // pred_check_branch
    %383 = sbr.rel (0) target = $region37
  $region36: #{dgcnn_encoder.14} parent=0 // pred_region
    _
  $region37: #{dgcnn_encoder.14} parent=0 // pred_fallthru
    _

// kernel: dgcnn_encoder.12
$region0: #{dgcnn_encoder.12}
  #allocation0 [shape = 'u32[]', space=smem, size = 0x4, offset = 0x4, fixed_abs, tag = 'smem constant byte address 0x4 - core index']
  #allocation1 [shape = 'u32[144,128]{1,0:T(1,128)}', space=vmem, size = 0x12000, scoped, tag = 'internal scratch']
  %s0 = inlined_call_operand.vmem [shape: bf16[64,64], index: 0, kind: input, shape index: {}]
  %s1 = inlined_call_operand.vmem [shape: bf16[64,64], index: 1, kind: input, shape index: {}]
  %s2 = inlined_call_operand.vmem [shape: bf16[64,64], index: 2, kind: input, shape index: {}]
  %s3 = inlined_call_operand.vmem [shape: f32[1,64], index: 3, kind: input, shape index: {}]
  %s4 = inlined_call_operand.vmem [shape: f32[1,64], index: 4, kind: input, shape index: {}]
  %s5 = inlined_call_operand.vmem [shape: bf16[64,64], index: 5, kind: output, shape index: {0}]
  %s6 = inlined_call_operand.vmem [shape: bf16[64,64], index: 6, kind: output, shape index: {1}]
  %7 = xla_tuple %s5, %s6
  %s8 = sld [smem:[#allocation0]]
  $region38: #{dgcnn_encoder.12} parent=0
    _
  %s10 = ssub.s32 1, %s8
  %s11 = scalar_select 0, %s10, %s8
  // Predicated region
  $region2: #{dgcnn_encoder.12} parent=0 // pred_check
    _
  $region3: #{dgcnn_encoder.12} parent=0 // pred_check_branch
    %13 = sbr.rel (0) target = $region5
  $region4: #{dgcnn_encoder.12} parent=0 // pred_region
    _
  $region5: #{dgcnn_encoder.12} parent=0 // pred_fallthru
    _
  // Predicated region
  $region6: #{dgcnn_encoder.12} parent=0 // pred_check
    _
  $region7: #{dgcnn_encoder.12} parent=0 // pred_check_branch
    %15 = sbr.rel (0) target = $region9
  $region8: #{dgcnn_encoder.12} parent=0 // pred_region
    _
  $region9: #{dgcnn_encoder.12} parent=0 // pred_fallthru
    _
  // Predicated region
  $region10: #{dgcnn_encoder.12} parent=0 // pred_check
    _
  $region11: #{dgcnn_encoder.12} parent=0 // pred_check_branch
    %17 = sbr.rel (0) target = $region13
  $region12: #{dgcnn_encoder.12} parent=0 // pred_region
    _
  $region13: #{dgcnn_encoder.12} parent=0 // pred_fallthru
    _
  // Predicated region
  $region14: #{dgcnn_encoder.12} parent=0 // pred_check
    _
  $region15: #{dgcnn_encoder.12} parent=0 // pred_check_branch
    %19 = sbr.rel (0) target = $region17
  $region16: #{dgcnn_encoder.12} parent=0 // pred_region
    _
  $region17: #{dgcnn_encoder.12} parent=0 // pred_fallthru
    _
  // Predicated region
  $region18: #{dgcnn_encoder.12} parent=0 // pred_check
    _
  $region19: #{dgcnn_encoder.12} parent=0 // pred_check_branch
    %21 = sbr.rel (0) target = $region21
  $region20: #{dgcnn_encoder.12} parent=0 // pred_region
    _
  $region21: #{dgcnn_encoder.12} parent=0 // pred_fallthru
    _
  %v23 = vld [vmem:[%s0] sm:$0xf]
  %v24 = vld [vmem:[%s0 + $0x4] sm:$0xf]
  %v25 = vld [vmem:[%s0 + $0x8] sm:$0xf]
  %v26 = vld [vmem:[%s0 + $0xc] sm:$0xf]
  %v27 = vld [vmem:[%s0 + $0x10] sm:$0xf]
  %v28 = vld [vmem:[%s0 + $0x14] sm:$0xf]
  %v29 = vld [vmem:[%s0 + $0x18] sm:$0xf]
  %v30 = vld [vmem:[%s0 + $0x1c] sm:$0xf]
  %v31 = vld [vmem:[%s3] sm:$0x1]
  %v32 = vld [vmem:[%s1] sm:$0xf]
  %v33 = vld [vmem:[%s1 + $0x4] sm:$0xf]
  %v34 = vld [vmem:[%s1 + $0x8] sm:$0xf]
  %v35 = vld [vmem:[%s1 + $0xc] sm:$0xf]
  %v36 = vld [vmem:[%s1 + $0x10] sm:$0xf]
  %v37 = vld [vmem:[%s1 + $0x14] sm:$0xf]
  %v38 = vld [vmem:[%s1 + $0x18] sm:$0xf]
  %v39 = vld [vmem:[%s1 + $0x1c] sm:$0xf]
  %v48 = vunpack.c.l.b16 %v23
  %v49 = vunpack.c.l.b16 %v24
  %v50 = vunpack.c.l.b16 %v25
  %v51 = vunpack.c.l.b16 %v26
  %v52 = vunpack.c.l.b16 %v27
  %v53 = vunpack.c.l.b16 %v28
  %v54 = vunpack.c.l.b16 %v29
  %v55 = vunpack.c.l.b16 %v30
  %v56 = vpack.c.b16 %v49, %v48
  %v57 = vpack.c.b16 %v51, %v50
  %v58 = vpack.c.b16 %v53, %v52
  %v59 = vpack.c.b16 %v55, %v54
  %v68 = vunpack.c.l.b16 %v32
  %v69 = vunpack.c.l.b16 %v33
  %v70 = vunpack.c.l.b16 %v34
  %v71 = vunpack.c.l.b16 %v35
  %v72 = vunpack.c.l.b16 %v36
  %v73 = vunpack.c.l.b16 %v37
  %v74 = vunpack.c.l.b16 %v38
  %v75 = vunpack.c.l.b16 %v39
  %v76 = vpack.c.b16 %v69, %v68
  %v77 = vpack.c.b16 %v71, %v70
  %v78 = vpack.c.b16 %v73, %v72
  %v79 = vpack.c.b16 %v75, %v74
  %vm84 = vcmask 523264
  %v86 = vsel %vm84, %v56, 0
  %v89 = vsel %vm84, %v57, 0
  %v92 = vsel %vm84, %v58, 0
  %v95 = vsel %vm84, %v59, 0
  %97 = vmatprep.subr.bf16.mxu0 0
  %98 = vmatpush1.bf16.msra.mxu0 %v76
  %99 = vmatprep.subr.bf16.mxu0 0
  %100 = vmatpush1.bf16.msra.mxu0 %v77
  %101 = vmatprep.subr.bf16.mxu0 0
  %102 = vmatpush1.bf16.msra.mxu0 %v78
  %103 = vmatprep.subr.bf16.mxu0 0
  %104 = vmatpush1.bf16.msra.mxu0 %v79
  %105 = vmatprep.subr.bf16.mxu0 0
  %106 = vmatpush1.bf16.msra.mxu0 0
  %107 = vmatprep.subr.bf16.mxu0 0
  %108 = vmatpush1.bf16.msra.mxu0 0
  %109 = vmatprep.subr.bf16.mxu0 0
  %110 = vmatpush1.bf16.msra.mxu0 0
  %111 = vmatprep.subr.bf16.mxu0 0
  %112 = vmatpush1.bf16.msra.mxu0 0
  %113 = vmatprep.subr.bf16.mxu0 0
  %114 = vmatpush1.bf16.msra.mxu0 0
  %115 = vmatprep.subr.bf16.mxu0 0
  %116 = vmatpush1.bf16.msra.mxu0 0
  %117 = vmatprep.subr.bf16.mxu0 0
  %118 = vmatpush1.bf16.msra.mxu0 0
  %119 = vmatprep.subr.bf16.mxu0 0
  %120 = vmatpush1.bf16.msra.mxu0 0
  %121 = vmatprep.subr.bf16.mxu0 0
  %122 = vmatpush1.bf16.msra.mxu0 0
  %123 = vmatprep.subr.bf16.mxu0 0
  %124 = vmatpush1.bf16.msra.mxu0 0
  %125 = vmatprep.subr.bf16.mxu0 0
  %126 = vmatpush1.bf16.msra.mxu0 0
  %127 = vmatprep.subr.bf16.mxu0 0
  %128 = vmatpush1.bf16.msra.mxu0 0
  %129 = vmatprep.mubr.bf16.mxu0 0
  %130 = vmatmul.mubr.bf16.gmra.mrb[0].mxu0 %v86
  %v131 = vpop.f32.mrb[0].mxu0
  %v132 = vadd.f32 0.0, %v131
  %v133 = vpop.f32.mrb[0].mxu0
  %v134 = vpop.f32.mrb[0].mxu0
  %v135 = vadd.f32 0.0, %v134
  %v136 = vpop.f32.mrb[0].mxu0
  %137 = vmatprep.mubr.bf16.mxu0 0
  %138 = vmatmul.mubr.bf16.gmra.mrb[0].mxu0 %v89
  %v139 = vpop.f32.mrb[0].mxu0
  %v140 = vadd.f32 0.0, %v139
  %v141 = vpop.f32.mrb[0].mxu0
  %v142 = vpop.f32.mrb[0].mxu0
  %v143 = vadd.f32 0.0, %v142
  %v144 = vpop.f32.mrb[0].mxu0
  %145 = vmatprep.mubr.bf16.mxu0 0
  %146 = vmatmul.mubr.bf16.gmra.mrb[0].mxu0 %v92
  %v147 = vpop.f32.mrb[0].mxu0
  %v148 = vadd.f32 0.0, %v147
  %v149 = vpop.f32.mrb[0].mxu0
  %v150 = vpop.f32.mrb[0].mxu0
  %v151 = vadd.f32 0.0, %v150
  %v152 = vpop.f32.mrb[0].mxu0
  %153 = vmatprep.mubr.bf16.mxu0 0
  %154 = vmatmul.mubr.bf16.gmra.mrb[0].mxu0 %v95
  %v155 = vpop.f32.mrb[0].mxu0
  %v156 = vadd.f32 0.0, %v155
  %v157 = vpop.f32.mrb[0].mxu0
  %v158 = vpop.f32.mrb[0].mxu0
  %v159 = vadd.f32 0.0, %v158
  %v160 = vpop.f32.mrb[0].mxu0
  %161 = vdwg.mxu0
  %v162 = vld [vmem:[%s2] sm:$0xf]
  %v163 = vld [vmem:[%s2 + $0x4] sm:$0xf]
  %v164 = vld [vmem:[%s2 + $0x8] sm:$0xf]
  %v165 = vld [vmem:[%s2 + $0xc] sm:$0xf]
  %v166 = vld [vmem:[%s2 + $0x10] sm:$0xf]
  %v167 = vld [vmem:[%s2 + $0x14] sm:$0xf]
  %v168 = vld [vmem:[%s2 + $0x18] sm:$0xf]
  %v169 = vld [vmem:[%s2 + $0x1c] sm:$0xf]
  %v178 = vunpack.c.l.b16 %v162
  %v179 = vunpack.c.l.b16 %v163
  %v180 = vunpack.c.l.b16 %v164
  %v181 = vunpack.c.l.b16 %v165
  %v182 = vunpack.c.l.b16 %v166
  %v183 = vunpack.c.l.b16 %v167
  %v184 = vunpack.c.l.b16 %v168
  %v185 = vunpack.c.l.b16 %v169
  %v186 = vpack.c.b16 %v179, %v178
  %v187 = vpack.c.b16 %v181, %v180
  %v188 = vpack.c.b16 %v183, %v182
  %v189 = vpack.c.b16 %v185, %v184
  %194 = vmatprep.subr.bf16.mxu0 0
  %195 = vmatpush1.bf16.msra.mxu0 %v186
  %196 = vmatprep.subr.bf16.mxu0 0
  %197 = vmatpush1.bf16.msra.mxu0 %v187
  %198 = vmatprep.subr.bf16.mxu0 0
  %199 = vmatpush1.bf16.msra.mxu0 %v188
  %200 = vmatprep.subr.bf16.mxu0 0
  %201 = vmatpush1.bf16.msra.mxu0 %v189
  %202 = vmatprep.subr.bf16.mxu0 0
  %203 = vmatpush1.bf16.msra.mxu0 0
  %204 = vmatprep.subr.bf16.mxu0 0
  %205 = vmatpush1.bf16.msra.mxu0 0
  %206 = vmatprep.subr.bf16.mxu0 0
  %207 = vmatpush1.bf16.msra.mxu0 0
  %208 = vmatprep.subr.bf16.mxu0 0
  %209 = vmatpush1.bf16.msra.mxu0 0
  %210 = vmatprep.subr.bf16.mxu0 0
  %211 = vmatpush1.bf16.msra.mxu0 0
  %212 = vmatprep.subr.bf16.mxu0 0
  %213 = vmatpush1.bf16.msra.mxu0 0
  %214 = vmatprep.subr.bf16.mxu0 0
  %215 = vmatpush1.bf16.msra.mxu0 0
  %216 = vmatprep.subr.bf16.mxu0 0
  %217 = vmatpush1.bf16.msra.mxu0 0
  %218 = vmatprep.subr.bf16.mxu0 0
  %219 = vmatpush1.bf16.msra.mxu0 0
  %220 = vmatprep.subr.bf16.mxu0 0
  %221 = vmatpush1.bf16.msra.mxu0 0
  %222 = vmatprep.subr.bf16.mxu0 0
  %223 = vmatpush1.bf16.msra.mxu0 0
  %224 = vmatprep.subr.bf16.mxu0 0
  %225 = vmatpush1.bf16.msra.mxu0 0
  %226 = vmatprep.mubr.bf16.mxu0 0
  %227 = vmatmul.mubr.bf16.gmra.mrb[0].mxu0 %v86
  %v228 = vpop.f32.mrb[0].mxu0
  %v229 = vadd.f32 0.0, %v228
  %v230 = vpop.f32.mrb[0].mxu0
  %v231 = vpop.f32.mrb[0].mxu0
  %v232 = vadd.f32 0.0, %v231
  %v233 = vpop.f32.mrb[0].mxu0
  %234 = vmatprep.mubr.bf16.mxu0 0
  %235 = vmatmul.mubr.bf16.gmra.mrb[0].mxu0 %v89
  %v236 = vpop.f32.mrb[0].mxu0
  %v237 = vadd.f32 0.0, %v236
  %v238 = vpop.f32.mrb[0].mxu0
  %v239 = vpop.f32.mrb[0].mxu0
  %v240 = vadd.f32 0.0, %v239
  %v241 = vpop.f32.mrb[0].mxu0
  %242 = vmatprep.mubr.bf16.mxu0 0
  %243 = vmatmul.mubr.bf16.gmra.mrb[0].mxu0 %v92
  %v244 = vpop.f32.mrb[0].mxu0
  %v245 = vadd.f32 0.0, %v244
  %v246 = vpop.f32.mrb[0].mxu0
  %v247 = vpop.f32.mrb[0].mxu0
  %v248 = vadd.f32 0.0, %v247
  %v249 = vpop.f32.mrb[0].mxu0
  %250 = vmatprep.mubr.bf16.mxu0 0
  %251 = vmatmul.mubr.bf16.gmra.mrb[0].mxu0 %v95
  %v252 = vpop.f32.mrb[0].mxu0
  %v253 = vadd.f32 0.0, %v252
  %v254 = vpop.f32.mrb[0].mxu0
  %v255 = vpop.f32.mrb[0].mxu0
  %v256 = vadd.f32 0.0, %v255
  %v257 = vpop.f32.mrb[0].mxu0
  %258 = vdwg.mxu0
  %v260 = vlaneseq
  %v261 = vshrl.u32 %v260, 7
  %v262 = vsub.s32 0, %v261
  %v263 = vrot.slane %v31, %v262
  %v265 = vmul.f32 %v132, %v263
  %v266 = vmul.f32 %v135, %v263
  %v267 = vmul.f32 %v140, %v263
  %v268 = vmul.f32 %v143, %v263
  %v269 = vmul.f32 %v148, %v263
  %v270 = vmul.f32 %v151, %v263
  %v271 = vmul.f32 %v156, %v263
  %v272 = vmul.f32 %v159, %v263
  %v273 = vpack.c.bf16 %v266, %v265
  %v274 = vpack.c.bf16 %v268, %v267
  %v275 = vpack.c.bf16 %v270, %v269
  %v276 = vpack.c.bf16 %v272, %v271
  %v281 = vunpack.c.l.b16 %v273
  %v282 = vunpack.c.h.b16 %v273
  %v283 = vunpack.c.l.b16 %v274
  %v284 = vunpack.c.h.b16 %v274
  %v285 = vunpack.c.l.b16 %v275
  %v286 = vunpack.c.h.b16 %v275
  %v287 = vunpack.c.l.b16 %v276
  %v288 = vunpack.c.h.b16 %v276
  %v289 = vpack.c.b16 %v281, %v281
  %v290 = vpack.c.b16 %v282, %v282
  %v291 = vpack.c.b16 %v283, %v283
  %v292 = vpack.c.b16 %v284, %v284
  %v293 = vpack.c.b16 %v285, %v285
  %v294 = vpack.c.b16 %v286, %v286
  %v295 = vpack.c.b16 %v287, %v287
  %v296 = vpack.c.b16 %v288, %v288
  %vm305 = vcmask 519168
  %306 = vst.msk [vmem:[%s5] sm:$0xf] %vm305, %v289
  %307 = vst.msk [vmem:[%s5 + $0x4] sm:$0xf] %vm305, %v290
  %308 = vst.msk [vmem:[%s5 + $0x8] sm:$0xf] %vm305, %v291
  %309 = vst.msk [vmem:[%s5 + $0xc] sm:$0xf] %vm305, %v292
  %310 = vst.msk [vmem:[%s5 + $0x10] sm:$0xf] %vm305, %v293
  %311 = vst.msk [vmem:[%s5 + $0x14] sm:$0xf] %vm305, %v294
  %312 = vst.msk [vmem:[%s5 + $0x18] sm:$0xf] %vm305, %v295
  %313 = vst.msk [vmem:[%s5 + $0x1c] sm:$0xf] %vm305, %v296
  %v314 = vmul.f32 %v229, %v263
  %v315 = vmul.f32 %v232, %v263
  %v316 = vmul.f32 %v237, %v263
  %v317 = vmul.f32 %v240, %v263
  %v318 = vmul.f32 %v245, %v263
  %v319 = vmul.f32 %v248, %v263
  %v320 = vmul.f32 %v253, %v263
  %v321 = vmul.f32 %v256, %v263
  %v322 = vld [vmem:[%s4] sm:$0x1]
  %v324 = vlaneseq
  %v325 = vshrl.u32 %v324, 7
  %v326 = vsub.s32 0, %v325
  %v327 = vrot.slane %v322, %v326
  %v329 = vadd.f32 %v314, %v327
  %v330 = vadd.f32 %v315, %v327
  %v331 = vadd.f32 %v316, %v327
  %v332 = vadd.f32 %v317, %v327
  %v333 = vadd.f32 %v318, %v327
  %v334 = vadd.f32 %v319, %v327
  %v335 = vadd.f32 %v320, %v327
  %v336 = vadd.f32 %v321, %v327
  %v337 = vpack.c.bf16 %v330, %v329
  %v338 = vpack.c.bf16 %v332, %v331
  %v339 = vpack.c.bf16 %v334, %v333
  %v340 = vpack.c.bf16 %v336, %v335
  %v345 = vunpack.c.l.b16 %v337
  %v346 = vunpack.c.h.b16 %v337
  %v347 = vunpack.c.l.b16 %v338
  %v348 = vunpack.c.h.b16 %v338
  %v349 = vunpack.c.l.b16 %v339
  %v350 = vunpack.c.h.b16 %v339
  %v351 = vunpack.c.l.b16 %v340
  %v352 = vunpack.c.h.b16 %v340
  %v353 = vpack.c.b16 %v345, %v345
  %v354 = vpack.c.b16 %v346, %v346
  %v355 = vpack.c.b16 %v347, %v347
  %v356 = vpack.c.b16 %v348, %v348
  %v357 = vpack.c.b16 %v349, %v349
  %v358 = vpack.c.b16 %v350, %v350
  %v359 = vpack.c.b16 %v351, %v351
  %v360 = vpack.c.b16 %v352, %v352
  %369 = vst.msk [vmem:[%s6] sm:$0xf] %vm305, %v353
  %370 = vst.msk [vmem:[%s6 + $0x4] sm:$0xf] %vm305, %v354
  %371 = vst.msk [vmem:[%s6 + $0x8] sm:$0xf] %vm305, %v355
  %372 = vst.msk [vmem:[%s6 + $0xc] sm:$0xf] %vm305, %v356
  %373 = vst.msk [vmem:[%s6 + $0x10] sm:$0xf] %vm305, %v357
  %374 = vst.msk [vmem:[%s6 + $0x14] sm:$0xf] %vm305, %v358
  %375 = vst.msk [vmem:[%s6 + $0x18] sm:$0xf] %vm305, %v359
  %376 = vst.msk [vmem:[%s6 + $0x1c] sm:$0xf] %vm305, %v360
  // Predicated region
  $region22: #{dgcnn_encoder.12} parent=0 // pred_check
    _
  $region23: #{dgcnn_encoder.12} parent=0 // pred_check_branch
    %378 = sbr.rel (0) target = $region25
  $region24: #{dgcnn_encoder.12} parent=0 // pred_region
    _
  $region25: #{dgcnn_encoder.12} parent=0 // pred_fallthru
    _
  // Predicated region
  $region26: #{dgcnn_encoder.12} parent=0 // pred_check
    _
  $region27: #{dgcnn_encoder.12} parent=0 // pred_check_branch
    %380 = sbr.rel (0) target = $region29
  $region28: #{dgcnn_encoder.12} parent=0 // pred_region
    _
  $region29: #{dgcnn_encoder.12} parent=0 // pred_fallthru
    _
  // Predicated region
  $region30: #{dgcnn_encoder.12} parent=0 // pred_check
    _
  $region31: #{dgcnn_encoder.12} parent=0 // pred_check_branch
    %382 = sbr.rel (0) target = $region33
  $region32: #{dgcnn_encoder.12} parent=0 // pred_region
    _
  $region33: #{dgcnn_encoder.12} parent=0 // pred_fallthru
    _
  // Predicated region
  $region34: #{dgcnn_encoder.12} parent=0 // pred_check
    _
  $region35: #{dgcnn_encoder.12} parent=0 // pred_check_branch
    %384 = sbr.rel (0) target = $region37
  $region36: #{dgcnn_encoder.12} parent=0 // pred_region
    _
  $region37: #{dgcnn_encoder.12} parent=0 // pred_fallthru
    _

// kernel: dgcnn_encoder.15
$region0: #{dgcnn_encoder.15}
  #allocation0 [shape = 'u32[]', space=smem, size = 0x4, offset = 0x4, fixed_abs, tag = 'smem constant byte address 0x4 - core index']
  #allocation1 [shape = 'u32[144,128]{1,0:T(1,128)}', space=vmem, size = 0x12000, scoped, tag = 'internal scratch']
  %s0 = inlined_call_operand.vmem [shape: bf16[2,32,128], index: 0, kind: input, shape index: {}, may-alias: {0,1}]
  %s1 = inlined_call_operand.vmem [shape: bf16[2,32,128], index: 1, kind: input, shape index: {}, may-alias: {0,1}]
  %s2 = inlined_call_operand.vmem [shape: f32[2,1,32], index: 2, kind: input, shape index: {}]
  %s3 = inlined_call_operand.vmem [shape: f32[2,32,32], index: 3, kind: output, shape index: {}]
  %s4 = sld [smem:[#allocation0]]
  $region45: #{dgcnn_encoder.15} parent=0
    _
  %s6 = ssub.s32 1, %s4
  %s7 = scalar_select 0, %s6, %s4
  loop: start=0, step=1, limit=4
  $region2: #{dgcnn_encoder.15} parent=0 // loop_pre_header
    _
  $region3: #{dgcnn_encoder.15} parent=0 // loop_header
    %s9 = sphi 0, %s13
    %p10 = scmp.ge.s32.totalorder %s9, 4
    %s16 = sphi 0, %s35
    %s17 = sphi 0, %s31
    %s18 = sphi 0, %s27
    %s19 = sphi 0, %s16
    %s20 = sphi 0, %s17
    %s21 = sphi 0, %s18
    %s22 = sphi 0, %s19
    %s23 = sphi 0, %s20
    %s24 = sphi 0, %s21
    %s40 = sphi 0, %s42
    %s43 = sphi 0, %s40
    %s44 = sphi 0, %s43
    %s60 = sphi 0, %s44
    %s68 = sphi 0, %s70
    %s71 = sphi 0, %s68
    %s72 = sphi 0, %s71
    %s88 = sphi 0, %s72
    %s96 = sphi 0, %s98
    %s99 = sphi 0, %s96
    %s100 = sphi 0, %s99
    %s116 = sphi 0, %s100
    %s126 = sphi 0, %s128
    %s129 = sphi 0, %s126
    %s130 = sphi 0, %s129
    %s146 = sphi 0, %s130
  $region4: #{dgcnn_encoder.15} parent=0 // loop_header_branch
    %12 = sbr.rel (%p10) target = $region8
  $region5: #{dgcnn_encoder.15} parent=0 // loop_body
    %s14 = ssub.s32 %s9, 1
    %s15 = ssub.s32 %s9, 2
    %s25 = sadd.s32 1, %s18
    %p26 = scmp.ge.s32.totalorder %s25, 1
    %s27 = scalar_select %p26, 0, %s25
    %s28 = sadd.s32 1, %s17
    %s29 = scalar_select %p26, %s28, %s17
    %p30 = scmp.ge.s32.totalorder %s29, 1
    %s31 = scalar_select %p30, 0, %s29
    %s32 = sadd.s32 1, %s16
    %s33 = scalar_select %p30, %s32, %s16
    %p34 = scmp.ge.s32.totalorder %s33, 2
    %s35 = scalar_select %p34, 0, %s33
    %s36 = ssub.s32 %s16, %s35
    %s37 = ssub.s32 %s17, %s31
    %s38 = sor.u32 %s36, %s37
    %p39 = scmp.eq.s32.totalorder %s38, 0
    %s41 = sadd.s32 %s40, 1
    %s42 = scalar_select %p39, %s40, %s41
    %p45 = pneg %p39
    %p46 = scmp.eq.s32.totalorder %s9, 1
    %p47 = por %p45, %p46
    %p48 = scmp.ne.s32.totalorder %s40, %s43
    %p49 = scmp.eq.s32.totalorder %s9, 0
    %p50 = por %p48, %p49
    %p51 = scmp.ne.s32.totalorder %s40, %s43
    %p52 = scmp.eq.s32.totalorder %s14, 1
    %p53 = por %p51, %p52
    %p54 = scmp.ne.s32.totalorder %s43, %s44
    %p55 = scmp.eq.s32.totalorder %s14, 0
    %p56 = por %p54, %p55
    %p57 = scmp.ne.s32.totalorder %s43, %s44
    %p58 = scmp.eq.s32.totalorder %s15, 1
    %p59 = por %p57, %p58
    %p61 = scmp.ne.s32.totalorder %s44, %s60
    %p62 = scmp.eq.s32.totalorder %s15, 0
    %p63 = por %p61, %p62
    %s64 = ssub.s32 %s16, %s35
    %s65 = ssub.s32 %s18, %s27
    %s66 = sor.u32 %s64, %s65
    %p67 = scmp.eq.s32.totalorder %s66, 0
    %s69 = sadd.s32 %s68, 1
    %s70 = scalar_select %p67, %s68, %s69
    %p73 = pneg %p67
    %p74 = scmp.eq.s32.totalorder %s9, 1
    %p75 = por %p73, %p74
    %p76 = scmp.ne.s32.totalorder %s68, %s71
    %p77 = scmp.eq.s32.totalorder %s9, 0
    %p78 = por %p76, %p77
    %p79 = scmp.ne.s32.totalorder %s68, %s71
    %p80 = scmp.eq.s32.totalorder %s14, 1
    %p81 = por %p79, %p80
    %p82 = scmp.ne.s32.totalorder %s71, %s72
    %p83 = scmp.eq.s32.totalorder %s14, 0
    %p84 = por %p82, %p83
    %p85 = scmp.ne.s32.totalorder %s71, %s72
    %p86 = scmp.eq.s32.totalorder %s15, 1
    %p87 = por %p85, %p86
    %p89 = scmp.ne.s32.totalorder %s72, %s88
    %p90 = scmp.eq.s32.totalorder %s15, 0
    %p91 = por %p89, %p90
    %s92 = ssub.s32 %s16, %s35
    %s93 = ssub.s32 %s18, %s27
    %s94 = sor.u32 %s92, %s93
    %p95 = scmp.eq.s32.totalorder %s94, 0
    %s97 = sadd.s32 %s96, 1
    %s98 = scalar_select %p95, %s96, %s97
    %p101 = pneg %p95
    %p102 = scmp.eq.s32.totalorder %s9, 1
    %p103 = por %p101, %p102
    %p104 = scmp.ne.s32.totalorder %s96, %s99
    %p105 = scmp.eq.s32.totalorder %s9, 0
    %p106 = por %p104, %p105
    %p107 = scmp.ne.s32.totalorder %s96, %s99
    %p108 = scmp.eq.s32.totalorder %s14, 1
    %p109 = por %p107, %p108
    %p110 = scmp.ne.s32.totalorder %s99, %s100
    %p111 = scmp.eq.s32.totalorder %s14, 0
    %p112 = por %p110, %p111
    %p113 = scmp.ne.s32.totalorder %s99, %s100
    %p114 = scmp.eq.s32.totalorder %s15, 1
    %p115 = por %p113, %p114
    %p117 = scmp.ne.s32.totalorder %s100, %s116
    %p118 = scmp.eq.s32.totalorder %s15, 0
    %p119 = por %p117, %p118
    %s120 = ssub.s32 %s16, %s35
    %s121 = ssub.s32 %s17, %s31
    %s122 = sor.u32 %s120, %s121
    %s123 = ssub.s32 %s18, %s27
    %s124 = sor.u32 %s122, %s123
    %p125 = scmp.eq.s32.totalorder %s124, 0
    %s127 = sadd.s32 %s126, 1
    %s128 = scalar_select %p125, %s126, %s127
    %p131 = pneg %p125
    %p132 = scmp.eq.s32.totalorder %s9, 1
    %p133 = por %p131, %p132
    %p134 = scmp.ne.s32.totalorder %s126, %s129
    %p135 = scmp.eq.s32.totalorder %s9, 0
    %p136 = por %p134, %p135
    %p137 = scmp.ne.s32.totalorder %s126, %s129
    %p138 = scmp.eq.s32.totalorder %s14, 1
    %p139 = por %p137, %p138
    %p140 = scmp.ne.s32.totalorder %s129, %s130
    %p141 = scmp.eq.s32.totalorder %s14, 0
    %p142 = por %p140, %p141
    %p143 = scmp.ne.s32.totalorder %s129, %s130
    %p144 = scmp.eq.s32.totalorder %s15, 1
    %p145 = por %p143, %p144
    %p147 = scmp.ne.s32.totalorder %s130, %s146
    %p148 = scmp.eq.s32.totalorder %s15, 0
    %p149 = por %p147, %p148
    %p150 = scmp.le.s32.totalorder 1, %s9
    %p151 = scmp.lt.s32.totalorder %s9, 3
    %p152 = pnand %p150, %p151
    %p153 = pneg %p152
    // Predicated region
    $region9: #{dgcnn_encoder.15} parent=5 // pred_check
      _
    $region10: #{dgcnn_encoder.15} parent=5 // pred_check_branch
      %155 = sbr.rel (%p152) target = $region12
    $region11: #{dgcnn_encoder.15} parent=5 // pred_region
      %s156 = ssub.s32 %s9, 1
    $region12: #{dgcnn_encoder.15} parent=5 // pred_fallthru
      _
    %p157 = scmp.lt.s32.totalorder %s9, 2
    // Predicated region
    $region13: #{dgcnn_encoder.15} parent=5 // pred_check
      %p158 = pneg %p157
    $region14: #{dgcnn_encoder.15} parent=5 // pred_check_branch
      %160 = sbr.rel (%p158) target = $region16
    $region15: #{dgcnn_encoder.15} parent=5 // pred_region
      // Predicated region
      $region17: #{dgcnn_encoder.15} parent=15 // pred_check
        %p161 = pneg %p50
      $region18: #{dgcnn_encoder.15} parent=15 // pred_check_branch
        %163 = sbr.rel (%p161) target = $region20
      $region19: #{dgcnn_encoder.15} parent=15 // pred_region
        %s164 = smul.u32 4, %s17
        %p165 = scmp.lt.s32.totalorder %s16, 1
        %s166 = scalar_select %p165, %s16, 1
        %p167 = scmp.lt.s32.totalorder %s164, 3
        %s168 = scalar_select %p167, %s164, 3
        %s169 = smul.addr %s166, 4
        %s170 = sadd.s32 %s168, %s169
        %s171 = smul.addr %s170, 4
        %s172 = scalar_lea.vmem %s0, %s171
        %s173 = smul.u32 4, %s17
      $region20: #{dgcnn_encoder.15} parent=15 // pred_fallthru
        _
      // Predicated region
      $region21: #{dgcnn_encoder.15} parent=15 // pred_check
        %p174 = pneg %p78
      $region22: #{dgcnn_encoder.15} parent=15 // pred_check_branch
        %176 = sbr.rel (%p174) target = $region24
      $region23: #{dgcnn_encoder.15} parent=15 // pred_region
        %s177 = smul.u32 4, %s18
        %p178 = scmp.lt.s32.totalorder %s16, 1
        %s179 = scalar_select %p178, %s16, 1
        %p180 = scmp.lt.s32.totalorder %s177, 3
        %s181 = scalar_select %p180, %s177, 3
        %s182 = smul.addr %s179, 4
        %s183 = sadd.s32 %s181, %s182
        %s184 = smul.addr %s183, 4
        %s185 = scalar_lea.vmem %s1, %s184
        %s186 = smul.u32 4, %s18
      $region24: #{dgcnn_encoder.15} parent=15 // pred_fallthru
        _
      // Predicated region
      $region25: #{dgcnn_encoder.15} parent=15 // pred_check
        %p187 = pneg %p106
      $region26: #{dgcnn_encoder.15} parent=15 // pred_check_branch
        %189 = sbr.rel (%p187) target = $region28
      $region27: #{dgcnn_encoder.15} parent=15 // pred_region
        %p190 = scmp.lt.s32.totalorder %s16, 1
        %s191 = scalar_select %p190, %s16, 1
        %p192 = scmp.lt.s32.totalorder %s18, 0
        %s193 = scalar_select %p192, %s18, 0
        %s194 = sadd.s32 %s193, %s191
        %s195 = scalar_lea.vmem %s2, %s194
      $region28: #{dgcnn_encoder.15} parent=15 // pred_fallthru
        _
    $region16: #{dgcnn_encoder.15} parent=5 // pred_fallthru
      _
    %p196 = scmp.le.s32.totalorder 1, %s9
    %p197 = scmp.lt.s32.totalorder %s9, 3
    %p198 = pnand %p196, %p197
    %p199 = pneg %p198
    // Predicated region
    $region29: #{dgcnn_encoder.15} parent=5 // pred_check
      _
    $region30: #{dgcnn_encoder.15} parent=5 // pred_check_branch
      %201 = sbr.rel (%p198) target = $region32
    $region31: #{dgcnn_encoder.15} parent=5 // pred_region
      %s202 = ssub.s32 %s9, 1
      %s203 = smul.u32 4, %s20
      %p204 = scmp.lt.s32.totalorder %s19, 1
      %s205 = scalar_select %p204, %s19, 1
      %p206 = scmp.lt.s32.totalorder %s203, 3
      %s207 = scalar_select %p206, %s203, 3
      %s208 = smul.addr %s205, 4
      %s209 = sadd.s32 %s207, %s208
      %s210 = smul.addr %s209, 4
      %s211 = scalar_lea.vmem %s0, %s210
      %p212 = pneg %p56
      %p213 = pneg %p53
      %s214 = smul.u32 4, %s21
      %p215 = scmp.lt.s32.totalorder %s19, 1
      %s216 = scalar_select %p215, %s19, 1
      %p217 = scmp.lt.s32.totalorder %s214, 3
      %s218 = scalar_select %p217, %s214, 3
      %s219 = smul.addr %s216, 4
      %s220 = sadd.s32 %s218, %s219
      %s221 = smul.addr %s220, 4
      %s222 = scalar_lea.vmem %s1, %s221
      %p223 = pneg %p84
      %p224 = pneg %p81
      %p225 = scmp.lt.s32.totalorder %s19, 1
      %s226 = scalar_select %p225, %s19, 1
      %p227 = scmp.lt.s32.totalorder %s21, 0
      %s228 = scalar_select %p227, %s21, 0
      %s229 = sadd.s32 %s228, %s226
      %s230 = scalar_lea.vmem %s2, %s229
      %p231 = pneg %p112
      %p232 = pneg %p109
      %p233 = pneg %p142
      %p234 = pneg %p139
      %s235 = smul.u32 4, %s20
      %p236 = scmp.lt.s32.totalorder %s19, 1
      %s237 = scalar_select %p236, %s19, 1
      %p238 = scmp.lt.s32.totalorder %s235, 3
      %s239 = scalar_select %p238, %s235, 3
      %p240 = scmp.lt.s32.totalorder %s21, 0
      %s241 = scalar_select %p240, %s21, 0
      %s242 = sadd.s32 %s241, %s239
      %s243 = smul.addr %s237, 4
      %s244 = sadd.s32 %s242, %s243
      %s245 = smul.addr %s244, 8
      %s246 = scalar_lea.vmem %s3, %s245
      %s247 = smul.u32 4, %s20
      %p248 = scmp.lt.s32.totalorder %s19, 1
      %s249 = scalar_select %p248, %s19, 1
      %p250 = scmp.lt.s32.totalorder %s247, 3
      %s251 = scalar_select %p250, %s247, 3
      %s252 = smul.addr %s249, 4
      %s253 = sadd.s32 %s251, %s252
      %s254 = smul.addr %s253, 4
      %s255 = scalar_lea.vmem %s0, %s254
      %s256 = smul.u32 4, %s20
      %s257 = smul.u32 4, %s21
      %p258 = scmp.lt.s32.totalorder %s19, 1
      %s259 = scalar_select %p258, %s19, 1
      %p260 = scmp.lt.s32.totalorder %s257, 3
      %s261 = scalar_select %p260, %s257, 3
      %s262 = smul.addr %s259, 4
      %s263 = sadd.s32 %s261, %s262
      %s264 = smul.addr %s263, 4
      %s265 = scalar_lea.vmem %s1, %s264
      %s266 = smul.u32 4, %s21
      %p267 = scmp.lt.s32.totalorder %s19, 1
      %s268 = scalar_select %p267, %s19, 1
      %p269 = scmp.lt.s32.totalorder %s21, 0
      %s270 = scalar_select %p269, %s21, 0
      %s271 = sadd.s32 %s270, %s268
      %s272 = scalar_lea.vmem %s2, %s271
      %s273 = smul.u32 4, %s20
      %p274 = scmp.lt.s32.totalorder %s19, 1
      %s275 = scalar_select %p274, %s19, 1
      %p276 = scmp.lt.s32.totalorder %s273, 3
      %s277 = scalar_select %p276, %s273, 3
      %p278 = scmp.lt.s32.totalorder %s21, 0
      %s279 = scalar_select %p278, %s21, 0
      %s280 = sadd.s32 %s279, %s277
      %s281 = smul.addr %s275, 4
      %s282 = sadd.s32 %s280, %s281
      %s283 = smul.addr %s282, 8
      %s284 = scalar_lea.vmem %s3, %s283
      %s285 = smul.u32 4, %s20
      %v287 = vld [vmem:[%s255] sm:$0xf]
      %v288 = vld [vmem:[%s255 + $0x4] sm:$0xf]
      %v289 = vld [vmem:[%s255 + $0x8] sm:$0xf]
      %v290 = vld [vmem:[%s255 + $0xc] sm:$0xf]
      %v291 = vld [vmem:[%s265] sm:$0xf]
      %v292 = vld [vmem:[%s265 + $0x4] sm:$0xf]
      %v293 = vld [vmem:[%s265 + $0x8] sm:$0xf]
      %v294 = vld [vmem:[%s265 + $0xc] sm:$0xf]
      %v299 = vunpack.c.l.b16 %v287
      %v300 = vunpack.c.l.b16 %v288
      %v301 = vunpack.c.l.b16 %v289
      %v302 = vunpack.c.l.b16 %v290
      %v303 = vpack.c.b16 %v300, %v299
      %v304 = vpack.c.b16 %v302, %v301
      %v311 = vunpack.c.l.b16 %v291
      %v312 = vunpack.c.l.b16 %v292
      %v313 = vunpack.c.l.b16 %v293
      %v314 = vunpack.c.l.b16 %v294
      %v315 = vpack.c.b16 %v312, %v311
      %v316 = vpack.c.b16 %v314, %v313
      %319 = vmatprep.subr.bf16.mxu0 0
      %320 = vmatpush1.bf16.xpose.msra.mxu0 %v315
      %321 = vmatprep.subr.bf16.mxu0 0
      %322 = vmatpush1.bf16.xpose.msra.mxu0 %v316
      %323 = vmatprep.subr.bf16.mxu0 0
      %324 = vmatpush1.bf16.xpose.msra.mxu0 0
      %325 = vmatprep.subr.bf16.mxu0 0
      %326 = vmatpush1.bf16.xpose.msra.mxu0 0
      %327 = vmatprep.subr.bf16.mxu0 0
      %328 = vmatpush1.bf16.xpose.msra.mxu0 0
      %329 = vmatprep.subr.bf16.mxu0 0
      %330 = vmatpush1.bf16.xpose.msra.mxu0 0
      %331 = vmatprep.subr.bf16.mxu0 0
      %332 = vmatpush1.bf16.xpose.msra.mxu0 0
      %333 = vmatprep.subr.bf16.mxu0 0
      %334 = vmatpush1.bf16.xpose.msra.mxu0 0
      %335 = vmatprep.subr.bf16.mxu0 0
      %336 = vmatpush1.bf16.xpose.msra.mxu0 0
      %337 = vmatprep.subr.bf16.mxu0 0
      %338 = vmatpush1.bf16.xpose.msra.mxu0 0
      %339 = vmatprep.subr.bf16.mxu0 0
      %340 = vmatpush1.bf16.xpose.msra.mxu0 0
      %341 = vmatprep.subr.bf16.mxu0 0
      %342 = vmatpush1.bf16.xpose.msra.mxu0 0
      %343 = vmatprep.subr.bf16.mxu0 0
      %344 = vmatpush1.bf16.xpose.msra.mxu0 0
      %345 = vmatprep.subr.bf16.mxu0 0
      %346 = vmatpush1.bf16.xpose.msra.mxu0 0
      %347 = vmatprep.subr.bf16.mxu0 0
      %348 = vmatpush1.bf16.xpose.msra.mxu0 0
      %349 = vmatprep.subr.bf16.mxu0 0
      %350 = vmatpush1.bf16.xpose.msra.mxu0 0
      %351 = vmatprep.mubr.bf16.mxu0 0
      %352 = vmatmul.mubr.bf16.gmra.mrb[0].mxu0 %v303
      %v353 = vpop.f32.mrb[0].mxu0
      %v354 = vadd.f32 0.0, %v353
      %v355 = vpop.f32.mrb[0].mxu0
      %v356 = vpop.f32.mrb[0].mxu0
      %v357 = vadd.f32 0.0, %v356
      %v358 = vpop.f32.mrb[0].mxu0
      %359 = vmatprep.mubr.bf16.mxu0 0
      %360 = vmatmul.mubr.bf16.gmra.mrb[0].mxu0 %v304
      %v361 = vpop.f32.mrb[0].mxu0
      %v362 = vadd.f32 0.0, %v361
      %v363 = vpop.f32.mrb[0].mxu0
      %v364 = vpop.f32.mrb[0].mxu0
      %v365 = vadd.f32 0.0, %v364
      %v366 = vpop.f32.mrb[0].mxu0
      %367 = vdwg.mxu0
      %v368 = vunpack.c.l.bf16 %v287
      %v369 = vunpack.c.l.bf16 %v288
      %v370 = vunpack.c.l.bf16 %v289
      %v371 = vunpack.c.l.bf16 %v290
      %v372 = vmul.f32 %v368, %v368
      %v373 = vmul.f32 %v369, %v369
      %v374 = vmul.f32 %v370, %v370
      %v375 = vmul.f32 %v371, %v371
      %376 = vadd.xlane.f32.xlu0 %v372
      %v377 = vpop.xlane.xlu0 %376
      %378 = vadd.xlane.f32.xlu0 %v373
      %v379 = vpop.xlane.xlu0 %378
      %380 = vadd.xlane.f32.xlu0 %v374
      %v381 = vpop.xlane.xlu0 %380
      %382 = vadd.xlane.f32.xlu0 %v375
      %v383 = vpop.xlane.xlu0 %382
      %v384 = vmul.f32 %v354, 2.0
      %v385 = vmul.f32 %v357, 2.0
      %v386 = vmul.f32 %v362, 2.0
      %v387 = vmul.f32 %v365, 2.0
      %v388 = vsub.f32 %v384, %v377
      %v389 = vsub.f32 %v385, %v379
      %v390 = vsub.f32 %v386, %v381
      %v391 = vsub.f32 %v387, %v383
      %v392 = vld [vmem:[%s272] sm:$0x1]
      %v394 = vlaneseq
      %v395 = vshrl.u32 %v394, 7
      %v396 = vsub.s32 0, %v395
      %v397 = vrot.slane %v392, %v396
      %v399 = vsub.f32 %v388, %v397
      %v400 = vsub.f32 %v389, %v397
      %v401 = vsub.f32 %v390, %v397
      %v402 = vsub.f32 %v391, %v397
      %vm403 = vcmask 261120
      %404 = vst.msk [vmem:[%s284] sm:$0xff] %vm403, %v399
      %405 = vst.msk [vmem:[%s284 + $0x8] sm:$0xff] %vm403, %v400
      %406 = vst.msk [vmem:[%s284 + $0x10] sm:$0xff] %vm403, %v401
      %407 = vst.msk [vmem:[%s284 + $0x18] sm:$0xff] %vm403, %v402
      %s408 = smul.u32 4, %s20
      %p409 = scmp.lt.s32.totalorder %s19, 1
      %s410 = scalar_select %p409, %s19, 1
      %p411 = scmp.lt.s32.totalorder %s408, 3
      %s412 = scalar_select %p411, %s408, 3
      %p413 = scmp.lt.s32.totalorder %s21, 0
      %s414 = scalar_select %p413, %s21, 0
      %s415 = sadd.s32 %s414, %s412
      %s416 = smul.addr %s410, 4
      %s417 = sadd.s32 %s415, %s416
      %s418 = smul.addr %s417, 8
      %s419 = scalar_lea.vmem %s3, %s418
      // Predicated region
      $region33: #{dgcnn_encoder.15} parent=31 // pred_check
        %p420 = pneg %p139
      $region34: #{dgcnn_encoder.15} parent=31 // pred_check_branch
        %422 = sbr.rel (%p420) target = $region36
      $region35: #{dgcnn_encoder.15} parent=31 // pred_region
        %s423 = smul.u32 4, %s20
      $region36: #{dgcnn_encoder.15} parent=31 // pred_fallthru
        _
    $region32: #{dgcnn_encoder.15} parent=5 // pred_fallthru
      _
    %p424 = scmp.le.s32.totalorder 2, %s9
    // Predicated region
    $region37: #{dgcnn_encoder.15} parent=5 // pred_check
      %p425 = pneg %p424
    $region38: #{dgcnn_encoder.15} parent=5 // pred_check_branch
      %427 = sbr.rel (%p425) target = $region40
    $region39: #{dgcnn_encoder.15} parent=5 // pred_region
      %s428 = ssub.s32 %s9, 2
      // Predicated region
      $region41: #{dgcnn_encoder.15} parent=39 // pred_check
        %p429 = pneg %p145
      $region42: #{dgcnn_encoder.15} parent=39 // pred_check_branch
        %431 = sbr.rel (%p429) target = $region44
      $region43: #{dgcnn_encoder.15} parent=39 // pred_region
        %s432 = smul.u32 4, %s23
        %p433 = scmp.lt.s32.totalorder %s22, 1
        %s434 = scalar_select %p433, %s22, 1
        %p435 = scmp.lt.s32.totalorder %s432, 3
        %s436 = scalar_select %p435, %s432, 3
        %p437 = scmp.lt.s32.totalorder %s24, 0
        %s438 = scalar_select %p437, %s24, 0
        %s439 = sadd.s32 %s438, %s436
        %s440 = smul.addr %s434, 4
        %s441 = sadd.s32 %s439, %s440
        %s442 = smul.addr %s441, 8
        %s443 = scalar_lea.vmem %s3, %s442
      $region44: #{dgcnn_encoder.15} parent=39 // pred_fallthru
        _
    $region40: #{dgcnn_encoder.15} parent=5 // pred_fallthru
      _
  $region6: #{dgcnn_encoder.15} parent=0 // loop_footer
    %s13 = sadd.s32 1, %s9
  $region7: #{dgcnn_encoder.15} parent=0 // loop_footer_branch
    %8 = sbr.rel target = $region3
  $region8: #{dgcnn_encoder.15} parent=0 // loop_exit
    _

// kernel: dgcnn_encoder.16
$region0: #{dgcnn_encoder.16}
  #allocation0 [shape = 'u32[]', space=smem, size = 0x4, offset = 0x4, fixed_abs, tag = 'smem constant byte address 0x4 - core index']
  #allocation1 [shape = 'u32[144,128]{1,0:T(1,128)}', space=vmem, size = 0x12000, scoped, tag = 'internal scratch']
  %s0 = inlined_call_operand.vmem [shape: bf16[64,128], index: 0, kind: input, shape index: {}]
  %s1 = inlined_call_operand.vmem [shape: bf16[128,256], index: 1, kind: input, shape index: {}]
  %s2 = inlined_call_operand.vmem [shape: bf16[128,256], index: 2, kind: input, shape index: {}]
  %s3 = inlined_call_operand.vmem [shape: f32[1,256], index: 3, kind: input, shape index: {}]
  %s4 = inlined_call_operand.vmem [shape: f32[1,256], index: 4, kind: input, shape index: {}]
  %s5 = inlined_call_operand.vmem [shape: bf16[64,256], index: 5, kind: output, shape index: {0}]
  %s6 = inlined_call_operand.vmem [shape: bf16[64,256], index: 6, kind: output, shape index: {1}]
  %7 = xla_tuple %s5, %s6
  %s8 = sld [smem:[#allocation0]]
  $region38: #{dgcnn_encoder.16} parent=0
    _
  %s10 = ssub.s32 1, %s8
  %s11 = scalar_select 0, %s10, %s8
  // Predicated region
  $region2: #{dgcnn_encoder.16} parent=0 // pred_check
    _
  $region3: #{dgcnn_encoder.16} parent=0 // pred_check_branch
    %13 = sbr.rel (0) target = $region5
  $region4: #{dgcnn_encoder.16} parent=0 // pred_region
    _
  $region5: #{dgcnn_encoder.16} parent=0 // pred_fallthru
    _
  // Predicated region
  $region6: #{dgcnn_encoder.16} parent=0 // pred_check
    _
  $region7: #{dgcnn_encoder.16} parent=0 // pred_check_branch
    %15 = sbr.rel (0) target = $region9
  $region8: #{dgcnn_encoder.16} parent=0 // pred_region
    _
  $region9: #{dgcnn_encoder.16} parent=0 // pred_fallthru
    _
  // Predicated region
  $region10: #{dgcnn_encoder.16} parent=0 // pred_check
    _
  $region11: #{dgcnn_encoder.16} parent=0 // pred_check_branch
    %17 = sbr.rel (0) target = $region13
  $region12: #{dgcnn_encoder.16} parent=0 // pred_region
    _
  $region13: #{dgcnn_encoder.16} parent=0 // pred_fallthru
    _
  // Predicated region
  $region14: #{dgcnn_encoder.16} parent=0 // pred_check
    _
  $region15: #{dgcnn_encoder.16} parent=0 // pred_check_branch
    %19 = sbr.rel (0) target = $region17
  $region16: #{dgcnn_encoder.16} parent=0 // pred_region
    _
  $region17: #{dgcnn_encoder.16} parent=0 // pred_fallthru
    _
  // Predicated region
  $region18: #{dgcnn_encoder.16} parent=0 // pred_check
    _
  $region19: #{dgcnn_encoder.16} parent=0 // pred_check_branch
    %21 = sbr.rel (0) target = $region21
  $region20: #{dgcnn_encoder.16} parent=0 // pred_region
    _
  $region21: #{dgcnn_encoder.16} parent=0 // pred_fallthru
    _
  %v23 = vld [vmem:[%s0] sm:$0xf]
  %v24 = vld [vmem:[%s0 + $0x4] sm:$0xf]
  %v25 = vld [vmem:[%s0 + $0x8] sm:$0xf]
  %v26 = vld [vmem:[%s0 + $0xc] sm:$0xf]
  %v27 = vld [vmem:[%s0 + $0x10] sm:$0xf]
  %v28 = vld [vmem:[%s0 + $0x14] sm:$0xf]
  %v29 = vld [vmem:[%s0 + $0x18] sm:$0xf]
  %v30 = vld [vmem:[%s0 + $0x1c] sm:$0xf]
  %v31 = vld [vmem:[%s3] sm:$0x3]
  %v32 = vld [vmem:[%s1] sm:$0xff]
  %v33 = vld [vmem:[%s1 + $0x8] sm:$0xff]
  %v34 = vld [vmem:[%s1 + $0x10] sm:$0xff]
  %v35 = vld [vmem:[%s1 + $0x18] sm:$0xff]
  %v36 = vld [vmem:[%s1 + $0x20] sm:$0xff]
  %v37 = vld [vmem:[%s1 + $0x28] sm:$0xff]
  %v38 = vld [vmem:[%s1 + $0x30] sm:$0xff]
  %v39 = vld [vmem:[%s1 + $0x38] sm:$0xff]
  %v40 = vld [vmem:[%s1 + $0x40] sm:$0xff]
  %v41 = vld [vmem:[%s1 + $0x48] sm:$0xff]
  %v42 = vld [vmem:[%s1 + $0x50] sm:$0xff]
  %v43 = vld [vmem:[%s1 + $0x58] sm:$0xff]
  %v44 = vld [vmem:[%s1 + $0x60] sm:$0xff]
  %v45 = vld [vmem:[%s1 + $0x68] sm:$0xff]
  %v46 = vld [vmem:[%s1 + $0x70] sm:$0xff]
  %v47 = vld [vmem:[%s1 + $0x78] sm:$0xff]
  %v56 = vunpack.c.l.b16 %v23
  %v57 = vunpack.c.l.b16 %v24
  %v58 = vunpack.c.l.b16 %v25
  %v59 = vunpack.c.l.b16 %v26
  %v60 = vunpack.c.l.b16 %v27
  %v61 = vunpack.c.l.b16 %v28
  %v62 = vunpack.c.l.b16 %v29
  %v63 = vunpack.c.l.b16 %v30
  %v64 = vpack.c.b16 %v57, %v56
  %v65 = vpack.c.b16 %v59, %v58
  %v66 = vpack.c.b16 %v61, %v60
  %v67 = vpack.c.b16 %v63, %v62
  %v88 = vunpack.c.l.b16 %v32
  %v89 = vunpack.c.h.b16 %v32
  %v90 = vunpack.c.l.b16 %v33
  %v91 = vunpack.c.h.b16 %v33
  %v92 = vunpack.c.l.b16 %v34
  %v93 = vunpack.c.h.b16 %v34
  %v94 = vunpack.c.l.b16 %v35
  %v95 = vunpack.c.h.b16 %v35
  %v96 = vunpack.c.l.b16 %v36
  %v97 = vunpack.c.h.b16 %v36
  %v98 = vunpack.c.l.b16 %v37
  %v99 = vunpack.c.h.b16 %v37
  %v100 = vunpack.c.l.b16 %v38
  %v101 = vunpack.c.h.b16 %v38
  %v102 = vunpack.c.l.b16 %v39
  %v103 = vunpack.c.h.b16 %v39
  %v104 = vunpack.c.l.b16 %v40
  %v105 = vunpack.c.h.b16 %v40
  %v106 = vunpack.c.l.b16 %v41
  %v107 = vunpack.c.h.b16 %v41
  %v108 = vunpack.c.l.b16 %v42
  %v109 = vunpack.c.h.b16 %v42
  %v110 = vunpack.c.l.b16 %v43
  %v111 = vunpack.c.h.b16 %v43
  %v112 = vunpack.c.l.b16 %v44
  %v113 = vunpack.c.h.b16 %v44
  %v114 = vunpack.c.l.b16 %v45
  %v115 = vunpack.c.h.b16 %v45
  %v116 = vunpack.c.l.b16 %v46
  %v117 = vunpack.c.h.b16 %v46
  %v118 = vunpack.c.l.b16 %v47
  %v119 = vunpack.c.h.b16 %v47
  %v120 = vpack.c.b16 %v90, %v88
  %v121 = vpack.c.b16 %v91, %v89
  %v122 = vpack.c.b16 %v94, %v92
  %v123 = vpack.c.b16 %v95, %v93
  %v124 = vpack.c.b16 %v98, %v96
  %v125 = vpack.c.b16 %v99, %v97
  %v126 = vpack.c.b16 %v102, %v100
  %v127 = vpack.c.b16 %v103, %v101
  %v128 = vpack.c.b16 %v106, %v104
  %v129 = vpack.c.b16 %v107, %v105
  %v130 = vpack.c.b16 %v110, %v108
  %v131 = vpack.c.b16 %v111, %v109
  %v132 = vpack.c.b16 %v114, %v112
  %v133 = vpack.c.b16 %v115, %v113
  %v134 = vpack.c.b16 %v118, %v116
  %v135 = vpack.c.b16 %v119, %v117
  %152 = vmatprep.subr.bf16.mxu0 %v121
  %153 = vmatpush1.bf16.msra.mxu0 %v120
  %154 = vmatprep.subr.bf16.mxu0 %v123
  %155 = vmatpush1.bf16.msra.mxu0 %v122
  %156 = vmatprep.subr.bf16.mxu0 %v125
  %157 = vmatpush1.bf16.msra.mxu0 %v124
  %158 = vmatprep.subr.bf16.mxu0 %v127
  %159 = vmatpush1.bf16.msra.mxu0 %v126
  %160 = vmatprep.subr.bf16.mxu0 %v129
  %161 = vmatpush1.bf16.msra.mxu0 %v128
  %162 = vmatprep.subr.bf16.mxu0 %v131
  %163 = vmatpush1.bf16.msra.mxu0 %v130
  %164 = vmatprep.subr.bf16.mxu0 %v133
  %165 = vmatpush1.bf16.msra.mxu0 %v132
  %166 = vmatprep.subr.bf16.mxu0 %v135
  %167 = vmatpush1.bf16.msra.mxu0 %v134
  %168 = vmatprep.subr.bf16.mxu0 0
  %169 = vmatpush1.bf16.msra.mxu0 0
  %170 = vmatprep.subr.bf16.mxu0 0
  %171 = vmatpush1.bf16.msra.mxu0 0
  %172 = vmatprep.subr.bf16.mxu0 0
  %173 = vmatpush1.bf16.msra.mxu0 0
  %174 = vmatprep.subr.bf16.mxu0 0
  %175 = vmatpush1.bf16.msra.mxu0 0
  %176 = vmatprep.subr.bf16.mxu0 0
  %177 = vmatpush1.bf16.msra.mxu0 0
  %178 = vmatprep.subr.bf16.mxu0 0
  %179 = vmatpush1.bf16.msra.mxu0 0
  %180 = vmatprep.subr.bf16.mxu0 0
  %181 = vmatpush1.bf16.msra.mxu0 0
  %182 = vmatprep.subr.bf16.mxu0 0
  %183 = vmatpush1.bf16.msra.mxu0 0
  %184 = vmatprep.mubr.bf16.mxu0 0
  %185 = vmatmul.mubr.bf16.gmra.mrb[0].mxu0 %v64
  %v186 = vpop.f32.mrb[0].mxu0
  %v187 = vadd.f32 0.0, %v186
  %v188 = vpop.f32.mrb[0].mxu0
  %v189 = vadd.f32 0.0, %v188
  %v190 = vpop.f32.mrb[0].mxu0
  %v191 = vadd.f32 0.0, %v190
  %v192 = vpop.f32.mrb[0].mxu0
  %v193 = vadd.f32 0.0, %v192
  %194 = vmatprep.mubr.bf16.mxu0 0
  %195 = vmatmul.mubr.bf16.gmra.mrb[0].mxu0 %v65
  %v196 = vpop.f32.mrb[0].mxu0
  %v197 = vadd.f32 0.0, %v196
  %v198 = vpop.f32.mrb[0].mxu0
  %v199 = vadd.f32 0.0, %v198
  %v200 = vpop.f32.mrb[0].mxu0
  %v201 = vadd.f32 0.0, %v200
  %v202 = vpop.f32.mrb[0].mxu0
  %v203 = vadd.f32 0.0, %v202
  %204 = vmatprep.mubr.bf16.mxu0 0
  %205 = vmatmul.mubr.bf16.gmra.mrb[0].mxu0 %v66
  %v206 = vpop.f32.mrb[0].mxu0
  %v207 = vadd.f32 0.0, %v206
  %v208 = vpop.f32.mrb[0].mxu0
  %v209 = vadd.f32 0.0, %v208
  %v210 = vpop.f32.mrb[0].mxu0
  %v211 = vadd.f32 0.0, %v210
  %v212 = vpop.f32.mrb[0].mxu0
  %v213 = vadd.f32 0.0, %v212
  %214 = vmatprep.mubr.bf16.mxu0 0
  %215 = vmatmul.mubr.bf16.gmra.mrb[0].mxu0 %v67
  %v216 = vpop.f32.mrb[0].mxu0
  %v217 = vadd.f32 0.0, %v216
  %v218 = vpop.f32.mrb[0].mxu0
  %v219 = vadd.f32 0.0, %v218
  %v220 = vpop.f32.mrb[0].mxu0
  %v221 = vadd.f32 0.0, %v220
  %v222 = vpop.f32.mrb[0].mxu0
  %v223 = vadd.f32 0.0, %v222
  %224 = vdwg.mxu0
  %v225 = vld [vmem:[%s2] sm:$0xff]
  %v226 = vld [vmem:[%s2 + $0x8] sm:$0xff]
  %v227 = vld [vmem:[%s2 + $0x10] sm:$0xff]
  %v228 = vld [vmem:[%s2 + $0x18] sm:$0xff]
  %v229 = vld [vmem:[%s2 + $0x20] sm:$0xff]
  %v230 = vld [vmem:[%s2 + $0x28] sm:$0xff]
  %v231 = vld [vmem:[%s2 + $0x30] sm:$0xff]
  %v232 = vld [vmem:[%s2 + $0x38] sm:$0xff]
  %v233 = vld [vmem:[%s2 + $0x40] sm:$0xff]
  %v234 = vld [vmem:[%s2 + $0x48] sm:$0xff]
  %v235 = vld [vmem:[%s2 + $0x50] sm:$0xff]
  %v236 = vld [vmem:[%s2 + $0x58] sm:$0xff]
  %v237 = vld [vmem:[%s2 + $0x60] sm:$0xff]
  %v238 = vld [vmem:[%s2 + $0x68] sm:$0xff]
  %v239 = vld [vmem:[%s2 + $0x70] sm:$0xff]
  %v240 = vld [vmem:[%s2 + $0x78] sm:$0xff]
  %v257 = vunpack.c.l.b16 %v225
  %v258 = vunpack.c.h.b16 %v225
  %v259 = vunpack.c.l.b16 %v226
  %v260 = vunpack.c.h.b16 %v226
  %v261 = vunpack.c.l.b16 %v227
  %v262 = vunpack.c.h.b16 %v227
  %v263 = vunpack.c.l.b16 %v228
  %v264 = vunpack.c.h.b16 %v228
  %v265 = vunpack.c.l.b16 %v229
  %v266 = vunpack.c.h.b16 %v229
  %v267 = vunpack.c.l.b16 %v230
  %v268 = vunpack.c.h.b16 %v230
  %v269 = vunpack.c.l.b16 %v231
  %v270 = vunpack.c.h.b16 %v231
  %v271 = vunpack.c.l.b16 %v232
  %v272 = vunpack.c.h.b16 %v232
  %v273 = vunpack.c.l.b16 %v233
  %v274 = vunpack.c.h.b16 %v233
  %v275 = vunpack.c.l.b16 %v234
  %v276 = vunpack.c.h.b16 %v234
  %v277 = vunpack.c.l.b16 %v235
  %v278 = vunpack.c.h.b16 %v235
  %v279 = vunpack.c.l.b16 %v236
  %v280 = vunpack.c.h.b16 %v236
  %v281 = vunpack.c.l.b16 %v237
  %v282 = vunpack.c.h.b16 %v237
  %v283 = vunpack.c.l.b16 %v238
  %v284 = vunpack.c.h.b16 %v238
  %v285 = vunpack.c.l.b16 %v239
  %v286 = vunpack.c.h.b16 %v239
  %v287 = vunpack.c.l.b16 %v240
  %v288 = vunpack.c.h.b16 %v240
  %v289 = vpack.c.b16 %v259, %v257
  %v290 = vpack.c.b16 %v260, %v258
  %v291 = vpack.c.b16 %v263, %v261
  %v292 = vpack.c.b16 %v264, %v262
  %v293 = vpack.c.b16 %v267, %v265
  %v294 = vpack.c.b16 %v268, %v266
  %v295 = vpack.c.b16 %v271, %v269
  %v296 = vpack.c.b16 %v272, %v270
  %v297 = vpack.c.b16 %v275, %v273
  %v298 = vpack.c.b16 %v276, %v274
  %v299 = vpack.c.b16 %v279, %v277
  %v300 = vpack.c.b16 %v280, %v278
  %v301 = vpack.c.b16 %v283, %v281
  %v302 = vpack.c.b16 %v284, %v282
  %v303 = vpack.c.b16 %v287, %v285
  %v304 = vpack.c.b16 %v288, %v286
  %321 = vmatprep.subr.bf16.mxu0 %v290
  %322 = vmatpush1.bf16.msra.mxu0 %v289
  %323 = vmatprep.subr.bf16.mxu0 %v292
  %324 = vmatpush1.bf16.msra.mxu0 %v291
  %325 = vmatprep.subr.bf16.mxu0 %v294
  %326 = vmatpush1.bf16.msra.mxu0 %v293
  %327 = vmatprep.subr.bf16.mxu0 %v296
  %328 = vmatpush1.bf16.msra.mxu0 %v295
  %329 = vmatprep.subr.bf16.mxu0 %v298
  %330 = vmatpush1.bf16.msra.mxu0 %v297
  %331 = vmatprep.subr.bf16.mxu0 %v300
  %332 = vmatpush1.bf16.msra.mxu0 %v299
  %333 = vmatprep.subr.bf16.mxu0 %v302
  %334 = vmatpush1.bf16.msra.mxu0 %v301
  %335 = vmatprep.subr.bf16.mxu0 %v304
  %336 = vmatpush1.bf16.msra.mxu0 %v303
  %337 = vmatprep.subr.bf16.mxu0 0
  %338 = vmatpush1.bf16.msra.mxu0 0
  %339 = vmatprep.subr.bf16.mxu0 0
  %340 = vmatpush1.bf16.msra.mxu0 0
  %341 = vmatprep.subr.bf16.mxu0 0
  %342 = vmatpush1.bf16.msra.mxu0 0
  %343 = vmatprep.subr.bf16.mxu0 0
  %344 = vmatpush1.bf16.msra.mxu0 0
  %345 = vmatprep.subr.bf16.mxu0 0
  %346 = vmatpush1.bf16.msra.mxu0 0
  %347 = vmatprep.subr.bf16.mxu0 0
  %348 = vmatpush1.bf16.msra.mxu0 0
  %349 = vmatprep.subr.bf16.mxu0 0
  %350 = vmatpush1.bf16.msra.mxu0 0
  %351 = vmatprep.subr.bf16.mxu0 0
  %352 = vmatpush1.bf16.msra.mxu0 0
  %353 = vmatprep.mubr.bf16.mxu0 0
  %354 = vmatmul.mubr.bf16.gmra.mrb[0].mxu0 %v64
  %v355 = vpop.f32.mrb[0].mxu0
  %v356 = vadd.f32 0.0, %v355
  %v357 = vpop.f32.mrb[0].mxu0
  %v358 = vadd.f32 0.0, %v357
  %v359 = vpop.f32.mrb[0].mxu0
  %v360 = vadd.f32 0.0, %v359
  %v361 = vpop.f32.mrb[0].mxu0
  %v362 = vadd.f32 0.0, %v361
  %363 = vmatprep.mubr.bf16.mxu0 0
  %364 = vmatmul.mubr.bf16.gmra.mrb[0].mxu0 %v65
  %v365 = vpop.f32.mrb[0].mxu0
  %v366 = vadd.f32 0.0, %v365
  %v367 = vpop.f32.mrb[0].mxu0
  %v368 = vadd.f32 0.0, %v367
  %v369 = vpop.f32.mrb[0].mxu0
  %v370 = vadd.f32 0.0, %v369
  %v371 = vpop.f32.mrb[0].mxu0
  %v372 = vadd.f32 0.0, %v371
  %373 = vmatprep.mubr.bf16.mxu0 0
  %374 = vmatmul.mubr.bf16.gmra.mrb[0].mxu0 %v66
  %v375 = vpop.f32.mrb[0].mxu0
  %v376 = vadd.f32 0.0, %v375
  %v377 = vpop.f32.mrb[0].mxu0
  %v378 = vadd.f32 0.0, %v377
  %v379 = vpop.f32.mrb[0].mxu0
  %v380 = vadd.f32 0.0, %v379
  %v381 = vpop.f32.mrb[0].mxu0
  %v382 = vadd.f32 0.0, %v381
  %383 = vmatprep.mubr.bf16.mxu0 0
  %384 = vmatmul.mubr.bf16.gmra.mrb[0].mxu0 %v67
  %v385 = vpop.f32.mrb[0].mxu0
  %v386 = vadd.f32 0.0, %v385
  %v387 = vpop.f32.mrb[0].mxu0
  %v388 = vadd.f32 0.0, %v387
  %v389 = vpop.f32.mrb[0].mxu0
  %v390 = vadd.f32 0.0, %v389
  %v391 = vpop.f32.mrb[0].mxu0
  %v392 = vadd.f32 0.0, %v391
  %393 = vdwg.mxu0
  %v395 = vlaneseq
  %v396 = vshrl.u32 %v395, 7
  %v397 = vsub.s32 0, %v396
  %v398 = vrot.slane %v31, %v397
  %v399 = vlaneseq
  %v400 = vshrl.u32 %v399, 7
  %v401 = vsub.s32 1, %v400
  %v402 = vrot.slane %v31, %v401
  %v405 = vmul.f32 %v187, %v398
  %v406 = vmul.f32 %v189, %v402
  %v407 = vmul.f32 %v191, %v398
  %v408 = vmul.f32 %v193, %v402
  %v409 = vmul.f32 %v197, %v398
  %v410 = vmul.f32 %v199, %v402
  %v411 = vmul.f32 %v201, %v398
  %v412 = vmul.f32 %v203, %v402
  %v413 = vmul.f32 %v207, %v398
  %v414 = vmul.f32 %v209, %v402
  %v415 = vmul.f32 %v211, %v398
  %v416 = vmul.f32 %v213, %v402
  %v417 = vmul.f32 %v217, %v398
  %v418 = vmul.f32 %v219, %v402
  %v419 = vmul.f32 %v221, %v398
  %v420 = vmul.f32 %v223, %v402
  %v421 = vpack.c.bf16 %v407, %v405
  %v422 = vpack.c.bf16 %v408, %v406
  %v423 = vpack.c.bf16 %v411, %v409
  %v424 = vpack.c.bf16 %v412, %v410
  %v425 = vpack.c.bf16 %v415, %v413
  %v426 = vpack.c.bf16 %v416, %v414
  %v427 = vpack.c.bf16 %v419, %v417
  %v428 = vpack.c.bf16 %v420, %v418
  %v437 = vunpack.c.l.b16 %v421
  %v438 = vunpack.c.l.b16 %v422
  %v439 = vunpack.c.h.b16 %v421
  %v440 = vunpack.c.h.b16 %v422
  %v441 = vunpack.c.l.b16 %v423
  %v442 = vunpack.c.l.b16 %v424
  %v443 = vunpack.c.h.b16 %v423
  %v444 = vunpack.c.h.b16 %v424
  %v445 = vunpack.c.l.b16 %v425
  %v446 = vunpack.c.l.b16 %v426
  %v447 = vunpack.c.h.b16 %v425
  %v448 = vunpack.c.h.b16 %v426
  %v449 = vunpack.c.l.b16 %v427
  %v450 = vunpack.c.l.b16 %v428
  %v451 = vunpack.c.h.b16 %v427
  %v452 = vunpack.c.h.b16 %v428
  %v453 = vpack.c.b16 %v438, %v437
  %v454 = vpack.c.b16 %v440, %v439
  %v455 = vpack.c.b16 %v442, %v441
  %v456 = vpack.c.b16 %v444, %v443
  %v457 = vpack.c.b16 %v446, %v445
  %v458 = vpack.c.b16 %v448, %v447
  %v459 = vpack.c.b16 %v450, %v449
  %v460 = vpack.c.b16 %v452, %v451
  %469 = vst [vmem:[%s5] sm:$0xff] %v453
  %470 = vst [vmem:[%s5 + $0x8] sm:$0xff] %v454
  %471 = vst [vmem:[%s5 + $0x10] sm:$0xff] %v455
  %472 = vst [vmem:[%s5 + $0x18] sm:$0xff] %v456
  %473 = vst [vmem:[%s5 + $0x20] sm:$0xff] %v457
  %474 = vst [vmem:[%s5 + $0x28] sm:$0xff] %v458
  %475 = vst [vmem:[%s5 + $0x30] sm:$0xff] %v459
  %476 = vst [vmem:[%s5 + $0x38] sm:$0xff] %v460
  %v477 = vmul.f32 %v356, %v398
  %v478 = vmul.f32 %v358, %v402
  %v479 = vmul.f32 %v360, %v398
  %v480 = vmul.f32 %v362, %v402
  %v481 = vmul.f32 %v366, %v398
  %v482 = vmul.f32 %v368, %v402
  %v483 = vmul.f32 %v370, %v398
  %v484 = vmul.f32 %v372, %v402
  %v485 = vmul.f32 %v376, %v398
  %v486 = vmul.f32 %v378, %v402
  %v487 = vmul.f32 %v380, %v398
  %v488 = vmul.f32 %v382, %v402
  %v489 = vmul.f32 %v386, %v398
  %v490 = vmul.f32 %v388, %v402
  %v491 = vmul.f32 %v390, %v398
  %v492 = vmul.f32 %v392, %v402
  %v493 = vld [vmem:[%s4] sm:$0x3]
  %v495 = vlaneseq
  %v496 = vshrl.u32 %v495, 7
  %v497 = vsub.s32 0, %v496
  %v498 = vrot.slane %v493, %v497
  %v499 = vlaneseq
  %v500 = vshrl.u32 %v499, 7
  %v501 = vsub.s32 1, %v500
  %v502 = vrot.slane %v493, %v501
  %v505 = vadd.f32 %v477, %v498
  %v506 = vadd.f32 %v478, %v502
  %v507 = vadd.f32 %v479, %v498
  %v508 = vadd.f32 %v480, %v502
  %v509 = vadd.f32 %v481, %v498
  %v510 = vadd.f32 %v482, %v502
  %v511 = vadd.f32 %v483, %v498
  %v512 = vadd.f32 %v484, %v502
  %v513 = vadd.f32 %v485, %v498
  %v514 = vadd.f32 %v486, %v502
  %v515 = vadd.f32 %v487, %v498
  %v516 = vadd.f32 %v488, %v502
  %v517 = vadd.f32 %v489, %v498
  %v518 = vadd.f32 %v490, %v502
  %v519 = vadd.f32 %v491, %v498
  %v520 = vadd.f32 %v492, %v502
  %v521 = vpack.c.bf16 %v507, %v505
  %v522 = vpack.c.bf16 %v508, %v506
  %v523 = vpack.c.bf16 %v511, %v509
  %v524 = vpack.c.bf16 %v512, %v510
  %v525 = vpack.c.bf16 %v515, %v513
  %v526 = vpack.c.bf16 %v516, %v514
  %v527 = vpack.c.bf16 %v519, %v517
  %v528 = vpack.c.bf16 %v520, %v518
  %v537 = vunpack.c.l.b16 %v521
  %v538 = vunpack.c.l.b16 %v522
  %v539 = vunpack.c.h.b16 %v521
  %v540 = vunpack.c.h.b16 %v522
  %v541 = vunpack.c.l.b16 %v523
  %v542 = vunpack.c.l.b16 %v524
  %v543 = vunpack.c.h.b16 %v523
  %v544 = vunpack.c.h.b16 %v524
  %v545 = vunpack.c.l.b16 %v525
  %v546 = vunpack.c.l.b16 %v526
  %v547 = vunpack.c.h.b16 %v525
  %v548 = vunpack.c.h.b16 %v526
  %v549 = vunpack.c.l.b16 %v527
  %v550 = vunpack.c.l.b16 %v528
  %v551 = vunpack.c.h.b16 %v527
  %v552 = vunpack.c.h.b16 %v528
  %v553 = vpack.c.b16 %v538, %v537
  %v554 = vpack.c.b16 %v540, %v539
  %v555 = vpack.c.b16 %v542, %v541
  %v556 = vpack.c.b16 %v544, %v543
  %v557 = vpack.c.b16 %v546, %v545
  %v558 = vpack.c.b16 %v548, %v547
  %v559 = vpack.c.b16 %v550, %v549
  %v560 = vpack.c.b16 %v552, %v551
  %569 = vst [vmem:[%s6] sm:$0xff] %v553
  %570 = vst [vmem:[%s6 + $0x8] sm:$0xff] %v554
  %571 = vst [vmem:[%s6 + $0x10] sm:$0xff] %v555
  %572 = vst [vmem:[%s6 + $0x18] sm:$0xff] %v556
  %573 = vst [vmem:[%s6 + $0x20] sm:$0xff] %v557
  %574 = vst [vmem:[%s6 + $0x28] sm:$0xff] %v558
  %575 = vst [vmem:[%s6 + $0x30] sm:$0xff] %v559
  %576 = vst [vmem:[%s6 + $0x38] sm:$0xff] %v560
  // Predicated region
  $region22: #{dgcnn_encoder.16} parent=0 // pred_check
    _
  $region23: #{dgcnn_encoder.16} parent=0 // pred_check_branch
    %578 = sbr.rel (0) target = $region25
  $region24: #{dgcnn_encoder.16} parent=0 // pred_region
    _
  $region25: #{dgcnn_encoder.16} parent=0 // pred_fallthru
    _
  // Predicated region
  $region26: #{dgcnn_encoder.16} parent=0 // pred_check
    _
  $region27: #{dgcnn_encoder.16} parent=0 // pred_check_branch
    %580 = sbr.rel (0) target = $region29
  $region28: #{dgcnn_encoder.16} parent=0 // pred_region
    _
  $region29: #{dgcnn_encoder.16} parent=0 // pred_fallthru
    _
  // Predicated region
  $region30: #{dgcnn_encoder.16} parent=0 // pred_check
    _
  $region31: #{dgcnn_encoder.16} parent=0 // pred_check_branch
    %582 = sbr.rel (0) target = $region33
  $region32: #{dgcnn_encoder.16} parent=0 // pred_region
    _
  $region33: #{dgcnn_encoder.16} parent=0 // pred_fallthru
    _
  // Predicated region
  $region34: #{dgcnn_encoder.16} parent=0 // pred_check
    _
  $region35: #{dgcnn_encoder.16} parent=0 // pred_check_branch
    %584 = sbr.rel (0) target = $region37
  $region36: #{dgcnn_encoder.16} parent=0 // pred_region
    _
  $region37: #{dgcnn_encoder.16} parent=0 // pred_fallthru
    _

// kernel: dgcnn_encoder.17
$region0: #{dgcnn_encoder.17}
  #allocation0 [shape = 'u32[]', space=smem, size = 0x4, offset = 0x4, fixed_abs, tag = 'smem constant byte address 0x4 - core index']
  #allocation1 [shape = 'u32[144,128]{1,0:T(1,128)}', space=vmem, size = 0x12000, scoped, tag = 'internal scratch']
  %s0 = inlined_call_operand.vmem [shape: bf16[64,64], index: 0, kind: input, shape index: {}]
  %s1 = inlined_call_operand.vmem [shape: bf16[64,64], index: 1, kind: input, shape index: {}]
  %s2 = inlined_call_operand.vmem [shape: bf16[64,128], index: 2, kind: input, shape index: {}]
  %s3 = inlined_call_operand.vmem [shape: bf16[64,256], index: 3, kind: input, shape index: {}]
  %s4 = inlined_call_operand.vmem [shape: bf16[64,64], index: 4, kind: input, shape index: {}]
  %s5 = inlined_call_operand.vmem [shape: bf16[64,64], index: 5, kind: input, shape index: {}]
  %s6 = inlined_call_operand.vmem [shape: bf16[128,64], index: 6, kind: input, shape index: {}]
  %s7 = inlined_call_operand.vmem [shape: bf16[256,64], index: 7, kind: input, shape index: {}]
  %s8 = inlined_call_operand.vmem [shape: f32[1,64], index: 8, kind: input, shape index: {}]
  %s9 = inlined_call_operand.vmem [shape: f32[1,64], index: 9, kind: input, shape index: {}]
  %s10 = inlined_call_operand.hbm [shape: f32[64,64], index: 10, kind: output, shape index: {}]
  %s11 = sld [smem:[#allocation0]]
  $region50: #{dgcnn_encoder.17} parent=0
    _
  %s13 = ssub.s32 1, %s11
  %s14 = scalar_select 0, %s13, %s11
  $region1: #{dgcnn_encoder.17} parent=0
    #allocation2 [shape = 'u8[32768]{0}', space=vmem, size = 0x8000, scoped, tag = 'output window, operand 0, single buffered']
    #allocation3 [shape = 's32[1]{0}', space=sflag, size = 0x4, scoped, tag = 'scoped memory for dgcnn_encoder.17']
    %15 = vsyncpa [#allocation3], 0
    // Predicated region
    $region2: #{dgcnn_encoder.17} parent=1 // pred_check
      _
    $region3: #{dgcnn_encoder.17} parent=1 // pred_check_branch
      %17 = sbr.rel (0) target = $region5
    $region4: #{dgcnn_encoder.17} parent=1 // pred_region
      _
    $region5: #{dgcnn_encoder.17} parent=1 // pred_fallthru
      _
    // Predicated region
    $region6: #{dgcnn_encoder.17} parent=1 // pred_check
      _
    $region7: #{dgcnn_encoder.17} parent=1 // pred_check_branch
      %19 = sbr.rel (0) target = $region9
    $region8: #{dgcnn_encoder.17} parent=1 // pred_region
      _
    $region9: #{dgcnn_encoder.17} parent=1 // pred_fallthru
      _
    // Predicated region
    $region10: #{dgcnn_encoder.17} parent=1 // pred_check
      _
    $region11: #{dgcnn_encoder.17} parent=1 // pred_check_branch
      %21 = sbr.rel (0) target = $region13
    $region12: #{dgcnn_encoder.17} parent=1 // pred_region
      _
    $region13: #{dgcnn_encoder.17} parent=1 // pred_fallthru
      _
    // Predicated region
    $region14: #{dgcnn_encoder.17} parent=1 // pred_check
      _
    $region15: #{dgcnn_encoder.17} parent=1 // pred_check_branch
      %23 = sbr.rel (0) target = $region17
    $region16: #{dgcnn_encoder.17} parent=1 // pred_region
      _
    $region17: #{dgcnn_encoder.17} parent=1 // pred_fallthru
      _
    // Predicated region
    $region18: #{dgcnn_encoder.17} parent=1 // pred_check
      _
    $region19: #{dgcnn_encoder.17} parent=1 // pred_check_branch
      %25 = sbr.rel (0) target = $region21
    $region20: #{dgcnn_encoder.17} parent=1 // pred_region
      _
    $region21: #{dgcnn_encoder.17} parent=1 // pred_fallthru
      _
    // Predicated region
    $region22: #{dgcnn_encoder.17} parent=1 // pred_check
      _
    $region23: #{dgcnn_encoder.17} parent=1 // pred_check_branch
      %27 = sbr.rel (0) target = $region25
    $region24: #{dgcnn_encoder.17} parent=1 // pred_region
      _
    $region25: #{dgcnn_encoder.17} parent=1 // pred_fallthru
      _
    // Predicated region
    $region26: #{dgcnn_encoder.17} parent=1 // pred_check
      _
    $region27: #{dgcnn_encoder.17} parent=1 // pred_check_branch
      %29 = sbr.rel (0) target = $region29
    $region28: #{dgcnn_encoder.17} parent=1 // pred_region
      _
    $region29: #{dgcnn_encoder.17} parent=1 // pred_fallthru
      _
    // Predicated region
    $region30: #{dgcnn_encoder.17} parent=1 // pred_check
      _
    $region31: #{dgcnn_encoder.17} parent=1 // pred_check_branch
      %31 = sbr.rel (0) target = $region33
    $region32: #{dgcnn_encoder.17} parent=1 // pred_region
      _
    $region33: #{dgcnn_encoder.17} parent=1 // pred_fallthru
      _
    // Predicated region
    $region34: #{dgcnn_encoder.17} parent=1 // pred_check
      _
    $region35: #{dgcnn_encoder.17} parent=1 // pred_check_branch
      %33 = sbr.rel (0) target = $region37
    $region36: #{dgcnn_encoder.17} parent=1 // pred_region
      _
    $region37: #{dgcnn_encoder.17} parent=1 // pred_fallthru
      _
    // Predicated region
    $region38: #{dgcnn_encoder.17} parent=1 // pred_check
      _
    $region39: #{dgcnn_encoder.17} parent=1 // pred_check_branch
      %35 = sbr.rel (0) target = $region41
    $region40: #{dgcnn_encoder.17} parent=1 // pred_region
      _
    $region41: #{dgcnn_encoder.17} parent=1 // pred_fallthru
      _
    %v37 = vld [vmem:[%s0] sm:$0xf]
    %v38 = vld [vmem:[%s0 + $0x4] sm:$0xf]
    %v39 = vld [vmem:[%s0 + $0x8] sm:$0xf]
    %v40 = vld [vmem:[%s0 + $0xc] sm:$0xf]
    %v41 = vld [vmem:[%s0 + $0x10] sm:$0xf]
    %v42 = vld [vmem:[%s0 + $0x14] sm:$0xf]
    %v43 = vld [vmem:[%s0 + $0x18] sm:$0xf]
    %v44 = vld [vmem:[%s0 + $0x1c] sm:$0xf]
    %v45 = vld [vmem:[%s4] sm:$0xf]
    %v46 = vld [vmem:[%s4 + $0x4] sm:$0xf]
    %v47 = vld [vmem:[%s4 + $0x8] sm:$0xf]
    %v48 = vld [vmem:[%s4 + $0xc] sm:$0xf]
    %v49 = vld [vmem:[%s4 + $0x10] sm:$0xf]
    %v50 = vld [vmem:[%s4 + $0x14] sm:$0xf]
    %v51 = vld [vmem:[%s4 + $0x18] sm:$0xf]
    %v52 = vld [vmem:[%s4 + $0x1c] sm:$0xf]
    %v53 = vld [vmem:[%s1] sm:$0xf]
    %v54 = vld [vmem:[%s1 + $0x4] sm:$0xf]
    %v55 = vld [vmem:[%s1 + $0x8] sm:$0xf]
    %v56 = vld [vmem:[%s1 + $0xc] sm:$0xf]
    %v57 = vld [vmem:[%s1 + $0x10] sm:$0xf]
    %v58 = vld [vmem:[%s1 + $0x14] sm:$0xf]
    %v59 = vld [vmem:[%s1 + $0x18] sm:$0xf]
    %v60 = vld [vmem:[%s1 + $0x1c] sm:$0xf]
    %v61 = vld [vmem:[%s5] sm:$0xf]
    %v62 = vld [vmem:[%s5 + $0x4] sm:$0xf]
    %v63 = vld [vmem:[%s5 + $0x8] sm:$0xf]
    %v64 = vld [vmem:[%s5 + $0xc] sm:$0xf]
    %v65 = vld [vmem:[%s5 + $0x10] sm:$0xf]
    %v66 = vld [vmem:[%s5 + $0x14] sm:$0xf]
    %v67 = vld [vmem:[%s5 + $0x18] sm:$0xf]
    %v68 = vld [vmem:[%s5 + $0x1c] sm:$0xf]
    %v77 = vunpack.c.l.b16 %v53
    %v78 = vunpack.c.l.b16 %v54
    %v79 = vunpack.c.l.b16 %v55
    %v80 = vunpack.c.l.b16 %v56
    %v81 = vunpack.c.l.b16 %v57
    %v82 = vunpack.c.l.b16 %v58
    %v83 = vunpack.c.l.b16 %v59
    %v84 = vunpack.c.l.b16 %v60
    %v85 = vpack.c.b16 %v78, %v77
    %v86 = vpack.c.b16 %v80, %v79
    %v87 = vpack.c.b16 %v82, %v81
    %v88 = vpack.c.b16 %v84, %v83
    %v97 = vunpack.c.l.b16 %v61
    %v98 = vunpack.c.l.b16 %v62
    %v99 = vunpack.c.l.b16 %v63
    %v100 = vunpack.c.l.b16 %v64
    %v101 = vunpack.c.l.b16 %v65
    %v102 = vunpack.c.l.b16 %v66
    %v103 = vunpack.c.l.b16 %v67
    %v104 = vunpack.c.l.b16 %v68
    %v105 = vpack.c.b16 %v98, %v97
    %v106 = vpack.c.b16 %v100, %v99
    %v107 = vpack.c.b16 %v102, %v101
    %v108 = vpack.c.b16 %v104, %v103
    %vm113 = vcmask 523264
    %v115 = vsel %vm113, %v85, 0
    %v118 = vsel %vm113, %v86, 0
    %v121 = vsel %vm113, %v87, 0
    %v124 = vsel %vm113, %v88, 0
    %126 = vmatprep.subr.bf16.mxu0 0
    %127 = vmatpush1.bf16.msra.mxu0 %v105
    %128 = vmatprep.subr.bf16.mxu0 0
    %129 = vmatpush1.bf16.msra.mxu0 %v106
    %130 = vmatprep.subr.bf16.mxu0 0
    %131 = vmatpush1.bf16.msra.mxu0 %v107
    %132 = vmatprep.subr.bf16.mxu0 0
    %133 = vmatpush1.bf16.msra.mxu0 %v108
    %134 = vmatprep.subr.bf16.mxu0 0
    %135 = vmatpush1.bf16.msra.mxu0 0
    %136 = vmatprep.subr.bf16.mxu0 0
    %137 = vmatpush1.bf16.msra.mxu0 0
    %138 = vmatprep.subr.bf16.mxu0 0
    %139 = vmatpush1.bf16.msra.mxu0 0
    %140 = vmatprep.subr.bf16.mxu0 0
    %141 = vmatpush1.bf16.msra.mxu0 0
    %142 = vmatprep.subr.bf16.mxu0 0
    %143 = vmatpush1.bf16.msra.mxu0 0
    %144 = vmatprep.subr.bf16.mxu0 0
    %145 = vmatpush1.bf16.msra.mxu0 0
    %146 = vmatprep.subr.bf16.mxu0 0
    %147 = vmatpush1.bf16.msra.mxu0 0
    %148 = vmatprep.subr.bf16.mxu0 0
    %149 = vmatpush1.bf16.msra.mxu0 0
    %150 = vmatprep.subr.bf16.mxu0 0
    %151 = vmatpush1.bf16.msra.mxu0 0
    %152 = vmatprep.subr.bf16.mxu0 0
    %153 = vmatpush1.bf16.msra.mxu0 0
    %154 = vmatprep.subr.bf16.mxu0 0
    %155 = vmatpush1.bf16.msra.mxu0 0
    %156 = vmatprep.subr.bf16.mxu0 0
    %157 = vmatpush1.bf16.msra.mxu0 0
    %158 = vmatprep.mubr.bf16.mxu0 0
    %159 = vmatmul.mubr.bf16.gmra.mrb[0].mxu0 %v115
    %v160 = vpop.f32.mrb[0].mxu0
    %v161 = vadd.f32 0.0, %v160
    %v162 = vpop.f32.mrb[0].mxu0
    %v163 = vpop.f32.mrb[0].mxu0
    %v164 = vadd.f32 0.0, %v163
    %v165 = vpop.f32.mrb[0].mxu0
    %166 = vmatprep.mubr.bf16.mxu0 0
    %167 = vmatmul.mubr.bf16.gmra.mrb[0].mxu0 %v118
    %v168 = vpop.f32.mrb[0].mxu0
    %v169 = vadd.f32 0.0, %v168
    %v170 = vpop.f32.mrb[0].mxu0
    %v171 = vpop.f32.mrb[0].mxu0
    %v172 = vadd.f32 0.0, %v171
    %v173 = vpop.f32.mrb[0].mxu0
    %174 = vmatprep.mubr.bf16.mxu0 0
    %175 = vmatmul.mubr.bf16.gmra.mrb[0].mxu0 %v121
    %v176 = vpop.f32.mrb[0].mxu0
    %v177 = vadd.f32 0.0, %v176
    %v178 = vpop.f32.mrb[0].mxu0
    %v179 = vpop.f32.mrb[0].mxu0
    %v180 = vadd.f32 0.0, %v179
    %v181 = vpop.f32.mrb[0].mxu0
    %182 = vmatprep.mubr.bf16.mxu0 0
    %183 = vmatmul.mubr.bf16.gmra.mrb[0].mxu0 %v124
    %v184 = vpop.f32.mrb[0].mxu0
    %v185 = vadd.f32 0.0, %v184
    %v186 = vpop.f32.mrb[0].mxu0
    %v187 = vpop.f32.mrb[0].mxu0
    %v188 = vadd.f32 0.0, %v187
    %v189 = vpop.f32.mrb[0].mxu0
    %190 = vdwg.mxu0
    %v199 = vunpack.c.l.b16 %v37
    %v200 = vunpack.c.l.b16 %v38
    %v201 = vunpack.c.l.b16 %v39
    %v202 = vunpack.c.l.b16 %v40
    %v203 = vunpack.c.l.b16 %v41
    %v204 = vunpack.c.l.b16 %v42
    %v205 = vunpack.c.l.b16 %v43
    %v206 = vunpack.c.l.b16 %v44
    %v207 = vpack.c.b16 %v200, %v199
    %v208 = vpack.c.b16 %v202, %v201
    %v209 = vpack.c.b16 %v204, %v203
    %v210 = vpack.c.b16 %v206, %v205
    %v219 = vunpack.c.l.b16 %v45
    %v220 = vunpack.c.l.b16 %v46
    %v221 = vunpack.c.l.b16 %v47
    %v222 = vunpack.c.l.b16 %v48
    %v223 = vunpack.c.l.b16 %v49
    %v224 = vunpack.c.l.b16 %v50
    %v225 = vunpack.c.l.b16 %v51
    %v226 = vunpack.c.l.b16 %v52
    %v227 = vpack.c.b16 %v220, %v219
    %v228 = vpack.c.b16 %v222, %v221
    %v229 = vpack.c.b16 %v224, %v223
    %v230 = vpack.c.b16 %v226, %v225
    %v236 = vsel %vm113, %v207, 0
    %v239 = vsel %vm113, %v208, 0
    %v242 = vsel %vm113, %v209, 0
    %v245 = vsel %vm113, %v210, 0
    %247 = vmatprep.subr.bf16.mxu0 0
    %248 = vmatpush1.bf16.msra.mxu0 %v227
    %249 = vmatprep.subr.bf16.mxu0 0
    %250 = vmatpush1.bf16.msra.mxu0 %v228
    %251 = vmatprep.subr.bf16.mxu0 0
    %252 = vmatpush1.bf16.msra.mxu0 %v229
    %253 = vmatprep.subr.bf16.mxu0 0
    %254 = vmatpush1.bf16.msra.mxu0 %v230
    %255 = vmatprep.subr.bf16.mxu0 0
    %256 = vmatpush1.bf16.msra.mxu0 0
    %257 = vmatprep.subr.bf16.mxu0 0
    %258 = vmatpush1.bf16.msra.mxu0 0
    %259 = vmatprep.subr.bf16.mxu0 0
    %260 = vmatpush1.bf16.msra.mxu0 0
    %261 = vmatprep.subr.bf16.mxu0 0
    %262 = vmatpush1.bf16.msra.mxu0 0
    %263 = vmatprep.subr.bf16.mxu0 0
    %264 = vmatpush1.bf16.msra.mxu0 0
    %265 = vmatprep.subr.bf16.mxu0 0
    %266 = vmatpush1.bf16.msra.mxu0 0
    %267 = vmatprep.subr.bf16.mxu0 0
    %268 = vmatpush1.bf16.msra.mxu0 0
    %269 = vmatprep.subr.bf16.mxu0 0
    %270 = vmatpush1.bf16.msra.mxu0 0
    %271 = vmatprep.subr.bf16.mxu0 0
    %272 = vmatpush1.bf16.msra.mxu0 0
    %273 = vmatprep.subr.bf16.mxu0 0
    %274 = vmatpush1.bf16.msra.mxu0 0
    %275 = vmatprep.subr.bf16.mxu0 0
    %276 = vmatpush1.bf16.msra.mxu0 0
    %277 = vmatprep.subr.bf16.mxu0 0
    %278 = vmatpush1.bf16.msra.mxu0 0
    %279 = vmatprep.mubr.bf16.mxu0 0
    %280 = vmatmul.mubr.bf16.gmra.mrb[0].mxu0 %v236
    %v281 = vpop.f32.mrb[0].mxu0
    %v282 = vadd.f32 %v161, %v281
    %v283 = vpop.f32.mrb[0].mxu0
    %v284 = vpop.f32.mrb[0].mxu0
    %v285 = vadd.f32 %v164, %v284
    %v286 = vpop.f32.mrb[0].mxu0
    %287 = vmatprep.mubr.bf16.mxu0 0
    %288 = vmatmul.mubr.bf16.gmra.mrb[0].mxu0 %v239
    %v289 = vpop.f32.mrb[0].mxu0
    %v290 = vadd.f32 %v169, %v289
    %v291 = vpop.f32.mrb[0].mxu0
    %v292 = vpop.f32.mrb[0].mxu0
    %v293 = vadd.f32 %v172, %v292
    %v294 = vpop.f32.mrb[0].mxu0
    %295 = vmatprep.mubr.bf16.mxu0 0
    %296 = vmatmul.mubr.bf16.gmra.mrb[0].mxu0 %v242
    %v297 = vpop.f32.mrb[0].mxu0
    %v298 = vadd.f32 %v177, %v297
    %v299 = vpop.f32.mrb[0].mxu0
    %v300 = vpop.f32.mrb[0].mxu0
    %v301 = vadd.f32 %v180, %v300
    %v302 = vpop.f32.mrb[0].mxu0
    %303 = vmatprep.mubr.bf16.mxu0 0
    %304 = vmatmul.mubr.bf16.gmra.mrb[0].mxu0 %v245
    %v305 = vpop.f32.mrb[0].mxu0
    %v306 = vadd.f32 %v185, %v305
    %v307 = vpop.f32.mrb[0].mxu0
    %v308 = vpop.f32.mrb[0].mxu0
    %v309 = vadd.f32 %v188, %v308
    %v310 = vpop.f32.mrb[0].mxu0
    %311 = vdwg.mxu0
    %v312 = vld [vmem:[%s2] sm:$0xf]
    %v313 = vld [vmem:[%s2 + $0x4] sm:$0xf]
    %v314 = vld [vmem:[%s2 + $0x8] sm:$0xf]
    %v315 = vld [vmem:[%s2 + $0xc] sm:$0xf]
    %v316 = vld [vmem:[%s2 + $0x10] sm:$0xf]
    %v317 = vld [vmem:[%s2 + $0x14] sm:$0xf]
    %v318 = vld [vmem:[%s2 + $0x18] sm:$0xf]
    %v319 = vld [vmem:[%s2 + $0x1c] sm:$0xf]
    %v320 = vld [vmem:[%s6] sm:$0xf]
    %v321 = vld [vmem:[%s6 + $0x4] sm:$0xf]
    %v322 = vld [vmem:[%s6 + $0x8] sm:$0xf]
    %v323 = vld [vmem:[%s6 + $0xc] sm:$0xf]
    %v324 = vld [vmem:[%s6 + $0x10] sm:$0xf]
    %v325 = vld [vmem:[%s6 + $0x14] sm:$0xf]
    %v326 = vld [vmem:[%s6 + $0x18] sm:$0xf]
    %v327 = vld [vmem:[%s6 + $0x1c] sm:$0xf]
    %v328 = vld [vmem:[%s6 + $0x20] sm:$0xf]
    %v329 = vld [vmem:[%s6 + $0x24] sm:$0xf]
    %v330 = vld [vmem:[%s6 + $0x28] sm:$0xf]
    %v331 = vld [vmem:[%s6 + $0x2c] sm:$0xf]
    %v332 = vld [vmem:[%s6 + $0x30] sm:$0xf]
    %v333 = vld [vmem:[%s6 + $0x34] sm:$0xf]
    %v334 = vld [vmem:[%s6 + $0x38] sm:$0xf]
    %v335 = vld [vmem:[%s6 + $0x3c] sm:$0xf]
    %v344 = vunpack.c.l.b16 %v312
    %v345 = vunpack.c.l.b16 %v313
    %v346 = vunpack.c.l.b16 %v314
    %v347 = vunpack.c.l.b16 %v315
    %v348 = vunpack.c.l.b16 %v316
    %v349 = vunpack.c.l.b16 %v317
    %v350 = vunpack.c.l.b16 %v318
    %v351 = vunpack.c.l.b16 %v319
    %v352 = vpack.c.b16 %v345, %v344
    %v353 = vpack.c.b16 %v347, %v346
    %v354 = vpack.c.b16 %v349, %v348
    %v355 = vpack.c.b16 %v351, %v350
    %v376 = vunpack.c.l.b16 %v320
    %v377 = vunpack.c.l.b16 %v321
    %v378 = vunpack.c.l.b16 %v322
    %v379 = vunpack.c.l.b16 %v323
    %v380 = vunpack.c.l.b16 %v324
    %v381 = vunpack.c.l.b16 %v325
    %v382 = vunpack.c.l.b16 %v326
    %v383 = vunpack.c.l.b16 %v327
    %v384 = vunpack.c.l.b16 %v328
    %v385 = vunpack.c.l.b16 %v329
    %v386 = vunpack.c.l.b16 %v330
    %v387 = vunpack.c.l.b16 %v331
    %v388 = vunpack.c.l.b16 %v332
    %v389 = vunpack.c.l.b16 %v333
    %v390 = vunpack.c.l.b16 %v334
    %v391 = vunpack.c.l.b16 %v335
    %v392 = vpack.c.b16 %v377, %v376
    %v393 = vpack.c.b16 %v379, %v378
    %v394 = vpack.c.b16 %v381, %v380
    %v395 = vpack.c.b16 %v383, %v382
    %v396 = vpack.c.b16 %v385, %v384
    %v397 = vpack.c.b16 %v387, %v386
    %v398 = vpack.c.b16 %v389, %v388
    %v399 = vpack.c.b16 %v391, %v390
    %408 = vmatprep.subr.bf16.mxu0 0
    %409 = vmatpush1.bf16.msra.mxu0 %v392
    %410 = vmatprep.subr.bf16.mxu0 0
    %411 = vmatpush1.bf16.msra.mxu0 %v393
    %412 = vmatprep.subr.bf16.mxu0 0
    %413 = vmatpush1.bf16.msra.mxu0 %v394
    %414 = vmatprep.subr.bf16.mxu0 0
    %415 = vmatpush1.bf16.msra.mxu0 %v395
    %416 = vmatprep.subr.bf16.mxu0 0
    %417 = vmatpush1.bf16.msra.mxu0 %v396
    %418 = vmatprep.subr.bf16.mxu0 0
    %419 = vmatpush1.bf16.msra.mxu0 %v397
    %420 = vmatprep.subr.bf16.mxu0 0
    %421 = vmatpush1.bf16.msra.mxu0 %v398
    %422 = vmatprep.subr.bf16.mxu0 0
    %423 = vmatpush1.bf16.msra.mxu0 %v399
    %424 = vmatprep.subr.bf16.mxu0 0
    %425 = vmatpush1.bf16.msra.mxu0 0
    %426 = vmatprep.subr.bf16.mxu0 0
    %427 = vmatpush1.bf16.msra.mxu0 0
    %428 = vmatprep.subr.bf16.mxu0 0
    %429 = vmatpush1.bf16.msra.mxu0 0
    %430 = vmatprep.subr.bf16.mxu0 0
    %431 = vmatpush1.bf16.msra.mxu0 0
    %432 = vmatprep.subr.bf16.mxu0 0
    %433 = vmatpush1.bf16.msra.mxu0 0
    %434 = vmatprep.subr.bf16.mxu0 0
    %435 = vmatpush1.bf16.msra.mxu0 0
    %436 = vmatprep.subr.bf16.mxu0 0
    %437 = vmatpush1.bf16.msra.mxu0 0
    %438 = vmatprep.subr.bf16.mxu0 0
    %439 = vmatpush1.bf16.msra.mxu0 0
    %440 = vmatprep.mubr.bf16.mxu0 0
    %441 = vmatmul.mubr.bf16.gmra.mrb[0].mxu0 %v352
    %v442 = vpop.f32.mrb[0].mxu0
    %v443 = vadd.f32 0.0, %v442
    %v444 = vpop.f32.mrb[0].mxu0
    %v445 = vpop.f32.mrb[0].mxu0
    %v446 = vadd.f32 0.0, %v445
    %v447 = vpop.f32.mrb[0].mxu0
    %448 = vmatprep.mubr.bf16.mxu0 0
    %449 = vmatmul.mubr.bf16.gmra.mrb[0].mxu0 %v353
    %v450 = vpop.f32.mrb[0].mxu0
    %v451 = vadd.f32 0.0, %v450
    %v452 = vpop.f32.mrb[0].mxu0
    %v453 = vpop.f32.mrb[0].mxu0
    %v454 = vadd.f32 0.0, %v453
    %v455 = vpop.f32.mrb[0].mxu0
    %456 = vmatprep.mubr.bf16.mxu0 0
    %457 = vmatmul.mubr.bf16.gmra.mrb[0].mxu0 %v354
    %v458 = vpop.f32.mrb[0].mxu0
    %v459 = vadd.f32 0.0, %v458
    %v460 = vpop.f32.mrb[0].mxu0
    %v461 = vpop.f32.mrb[0].mxu0
    %v462 = vadd.f32 0.0, %v461
    %v463 = vpop.f32.mrb[0].mxu0
    %464 = vmatprep.mubr.bf16.mxu0 0
    %465 = vmatmul.mubr.bf16.gmra.mrb[0].mxu0 %v355
    %v466 = vpop.f32.mrb[0].mxu0
    %v467 = vadd.f32 0.0, %v466
    %v468 = vpop.f32.mrb[0].mxu0
    %v469 = vpop.f32.mrb[0].mxu0
    %v470 = vadd.f32 0.0, %v469
    %v471 = vpop.f32.mrb[0].mxu0
    %472 = vdwg.mxu0
    %v473 = vadd.f32 %v282, %v443
    %v474 = vadd.f32 %v285, %v446
    %v475 = vadd.f32 %v290, %v451
    %v476 = vadd.f32 %v293, %v454
    %v477 = vadd.f32 %v298, %v459
    %v478 = vadd.f32 %v301, %v462
    %v479 = vadd.f32 %v306, %v467
    %v480 = vadd.f32 %v309, %v470
    %v481 = vld [vmem:[%s3] sm:$0xff]
    %v482 = vld [vmem:[%s3 + $0x8] sm:$0xff]
    %v483 = vld [vmem:[%s3 + $0x10] sm:$0xff]
    %v484 = vld [vmem:[%s3 + $0x18] sm:$0xff]
    %v485 = vld [vmem:[%s3 + $0x20] sm:$0xff]
    %v486 = vld [vmem:[%s3 + $0x28] sm:$0xff]
    %v487 = vld [vmem:[%s3 + $0x30] sm:$0xff]
    %v488 = vld [vmem:[%s3 + $0x38] sm:$0xff]
    %v489 = vld [vmem:[%s7] sm:$0xf]
    %v490 = vld [vmem:[%s7 + $0x4] sm:$0xf]
    %v491 = vld [vmem:[%s7 + $0x8] sm:$0xf]
    %v492 = vld [vmem:[%s7 + $0xc] sm:$0xf]
    %v493 = vld [vmem:[%s7 + $0x10] sm:$0xf]
    %v494 = vld [vmem:[%s7 + $0x14] sm:$0xf]
    %v495 = vld [vmem:[%s7 + $0x18] sm:$0xf]
    %v496 = vld [vmem:[%s7 + $0x1c] sm:$0xf]
    %v497 = vld [vmem:[%s7 + $0x20] sm:$0xf]
    %v498 = vld [vmem:[%s7 + $0x24] sm:$0xf]
    %v499 = vld [vmem:[%s7 + $0x28] sm:$0xf]
    %v500 = vld [vmem:[%s7 + $0x2c] sm:$0xf]
    %v501 = vld [vmem:[%s7 + $0x30] sm:$0xf]
    %v502 = vld [vmem:[%s7 + $0x34] sm:$0xf]
    %v503 = vld [vmem:[%s7 + $0x38] sm:$0xf]
    %v504 = vld [vmem:[%s7 + $0x3c] sm:$0xf]
    %v505 = vld [vmem:[%s7 + $0x40] sm:$0xf]
    %v506 = vld [vmem:[%s7 + $0x44] sm:$0xf]
    %v507 = vld [vmem:[%s7 + $0x48] sm:$0xf]
    %v508 = vld [vmem:[%s7 + $0x4c] sm:$0xf]
    %v509 = vld [vmem:[%s7 + $0x50] sm:$0xf]
    %v510 = vld [vmem:[%s7 + $0x54] sm:$0xf]
    %v511 = vld [vmem:[%s7 + $0x58] sm:$0xf]
    %v512 = vld [vmem:[%s7 + $0x5c] sm:$0xf]
    %v513 = vld [vmem:[%s7 + $0x60] sm:$0xf]
    %v514 = vld [vmem:[%s7 + $0x64] sm:$0xf]
    %v515 = vld [vmem:[%s7 + $0x68] sm:$0xf]
    %v516 = vld [vmem:[%s7 + $0x6c] sm:$0xf]
    %v517 = vld [vmem:[%s7 + $0x70] sm:$0xf]
    %v518 = vld [vmem:[%s7 + $0x74] sm:$0xf]
    %v519 = vld [vmem:[%s7 + $0x78] sm:$0xf]
    %v520 = vld [vmem:[%s7 + $0x7c] sm:$0xf]
    %v529 = vunpack.c.l.b16 %v481
    %v530 = vunpack.c.h.b16 %v481
    %v531 = vunpack.c.l.b16 %v482
    %v532 = vunpack.c.h.b16 %v482
    %v533 = vunpack.c.l.b16 %v483
    %v534 = vunpack.c.h.b16 %v483
    %v535 = vunpack.c.l.b16 %v484
    %v536 = vunpack.c.h.b16 %v484
    %v537 = vunpack.c.l.b16 %v485
    %v538 = vunpack.c.h.b16 %v485
    %v539 = vunpack.c.l.b16 %v486
    %v540 = vunpack.c.h.b16 %v486
    %v541 = vunpack.c.l.b16 %v487
    %v542 = vunpack.c.h.b16 %v487
    %v543 = vunpack.c.l.b16 %v488
    %v544 = vunpack.c.h.b16 %v488
    %v545 = vpack.c.b16 %v531, %v529
    %v546 = vpack.c.b16 %v532, %v530
    %v547 = vpack.c.b16 %v535, %v533
    %v548 = vpack.c.b16 %v536, %v534
    %v549 = vpack.c.b16 %v539, %v537
    %v550 = vpack.c.b16 %v540, %v538
    %v551 = vpack.c.b16 %v543, %v541
    %v552 = vpack.c.b16 %v544, %v542
    %v593 = vunpack.c.l.b16 %v489
    %v594 = vunpack.c.l.b16 %v490
    %v595 = vunpack.c.l.b16 %v491
    %v596 = vunpack.c.l.b16 %v492
    %v597 = vunpack.c.l.b16 %v493
    %v598 = vunpack.c.l.b16 %v494
    %v599 = vunpack.c.l.b16 %v495
    %v600 = vunpack.c.l.b16 %v496
    %v601 = vunpack.c.l.b16 %v497
    %v602 = vunpack.c.l.b16 %v498
    %v603 = vunpack.c.l.b16 %v499
    %v604 = vunpack.c.l.b16 %v500
    %v605 = vunpack.c.l.b16 %v501
    %v606 = vunpack.c.l.b16 %v502
    %v607 = vunpack.c.l.b16 %v503
    %v608 = vunpack.c.l.b16 %v504
    %v609 = vunpack.c.l.b16 %v505
    %v610 = vunpack.c.l.b16 %v506
    %v611 = vunpack.c.l.b16 %v507
    %v612 = vunpack.c.l.b16 %v508
    %v613 = vunpack.c.l.b16 %v509
    %v614 = vunpack.c.l.b16 %v510
    %v615 = vunpack.c.l.b16 %v511
    %v616 = vunpack.c.l.b16 %v512
    %v617 = vunpack.c.l.b16 %v513
    %v618 = vunpack.c.l.b16 %v514
    %v619 = vunpack.c.l.b16 %v515
    %v620 = vunpack.c.l.b16 %v516
    %v621 = vunpack.c.l.b16 %v517
    %v622 = vunpack.c.l.b16 %v518
    %v623 = vunpack.c.l.b16 %v519
    %v624 = vunpack.c.l.b16 %v520
    %v625 = vpack.c.b16 %v594, %v593
    %v626 = vpack.c.b16 %v596, %v595
    %v627 = vpack.c.b16 %v598, %v597
    %v628 = vpack.c.b16 %v600, %v599
    %v629 = vpack.c.b16 %v602, %v601
    %v630 = vpack.c.b16 %v604, %v603
    %v631 = vpack.c.b16 %v606, %v605
    %v632 = vpack.c.b16 %v608, %v607
    %v633 = vpack.c.b16 %v610, %v609
    %v634 = vpack.c.b16 %v612, %v611
    %v635 = vpack.c.b16 %v614, %v613
    %v636 = vpack.c.b16 %v616, %v615
    %v637 = vpack.c.b16 %v618, %v617
    %v638 = vpack.c.b16 %v620, %v619
    %v639 = vpack.c.b16 %v622, %v621
    %v640 = vpack.c.b16 %v624, %v623
    %657 = vmatprep.subr.bf16.mxu0 0
    %658 = vmatpush1.bf16.msra.mxu0 %v625
    %659 = vmatprep.subr.bf16.mxu0 0
    %660 = vmatpush1.bf16.msra.mxu0 %v626
    %661 = vmatprep.subr.bf16.mxu0 0
    %662 = vmatpush1.bf16.msra.mxu0 %v627
    %663 = vmatprep.subr.bf16.mxu0 0
    %664 = vmatpush1.bf16.msra.mxu0 %v628
    %665 = vmatprep.subr.bf16.mxu0 0
    %666 = vmatpush1.bf16.msra.mxu0 %v629
    %667 = vmatprep.subr.bf16.mxu0 0
    %668 = vmatpush1.bf16.msra.mxu0 %v630
    %669 = vmatprep.subr.bf16.mxu0 0
    %670 = vmatpush1.bf16.msra.mxu0 %v631
    %671 = vmatprep.subr.bf16.mxu0 0
    %672 = vmatpush1.bf16.msra.mxu0 %v632
    %673 = vmatprep.subr.bf16.mxu0 0
    %674 = vmatpush1.bf16.msra.mxu0 %v633
    %675 = vmatprep.subr.bf16.mxu0 0
    %676 = vmatpush1.bf16.msra.mxu0 %v634
    %677 = vmatprep.subr.bf16.mxu0 0
    %678 = vmatpush1.bf16.msra.mxu0 %v635
    %679 = vmatprep.subr.bf16.mxu0 0
    %680 = vmatpush1.bf16.msra.mxu0 %v636
    %681 = vmatprep.subr.bf16.mxu0 0
    %682 = vmatpush1.bf16.msra.mxu0 %v637
    %683 = vmatprep.subr.bf16.mxu0 0
    %684 = vmatpush1.bf16.msra.mxu0 %v638
    %685 = vmatprep.subr.bf16.mxu0 0
    %686 = vmatpush1.bf16.msra.mxu0 %v639
    %687 = vmatprep.subr.bf16.mxu0 0
    %688 = vmatpush1.bf16.msra.mxu0 %v640
    %689 = vmatprep.mubr.bf16.mxu0 %v546
    %690 = vmatmul.mubr.bf16.gmra.mrb[0].mxu0 %v545
    %v691 = vpop.f32.mrb[0].mxu0
    %v692 = vadd.f32 0.0, %v691
    %v693 = vpop.f32.mrb[0].mxu0
    %v694 = vpop.f32.mrb[0].mxu0
    %v695 = vadd.f32 0.0, %v694
    %v696 = vpop.f32.mrb[0].mxu0
    %697 = vmatprep.mubr.bf16.mxu0 %v548
    %698 = vmatmul.mubr.bf16.gmra.mrb[0].mxu0 %v547
    %v699 = vpop.f32.mrb[0].mxu0
    %v700 = vadd.f32 0.0, %v699
    %v701 = vpop.f32.mrb[0].mxu0
    %v702 = vpop.f32.mrb[0].mxu0
    %v703 = vadd.f32 0.0, %v702
    %v704 = vpop.f32.mrb[0].mxu0
    %705 = vmatprep.mubr.bf16.mxu0 %v550
    %706 = vmatmul.mubr.bf16.gmra.mrb[0].mxu0 %v549
    %v707 = vpop.f32.mrb[0].mxu0
    %v708 = vadd.f32 0.0, %v707
    %v709 = vpop.f32.mrb[0].mxu0
    %v710 = vpop.f32.mrb[0].mxu0
    %v711 = vadd.f32 0.0, %v710
    %v712 = vpop.f32.mrb[0].mxu0
    %713 = vmatprep.mubr.bf16.mxu0 %v552
    %714 = vmatmul.mubr.bf16.gmra.mrb[0].mxu0 %v551
    %v715 = vpop.f32.mrb[0].mxu0
    %v716 = vadd.f32 0.0, %v715
    %v717 = vpop.f32.mrb[0].mxu0
    %v718 = vpop.f32.mrb[0].mxu0
    %v719 = vadd.f32 0.0, %v718
    %v720 = vpop.f32.mrb[0].mxu0
    %721 = vdwg.mxu0
    %v722 = vadd.f32 %v473, %v692
    %v723 = vadd.f32 %v474, %v695
    %v724 = vadd.f32 %v475, %v700
    %v725 = vadd.f32 %v476, %v703
    %v726 = vadd.f32 %v477, %v708
    %v727 = vadd.f32 %v478, %v711
    %v728 = vadd.f32 %v479, %v716
    %v729 = vadd.f32 %v480, %v719
    %v730 = vld [vmem:[%s8] sm:$0x1]
    %v732 = vlaneseq
    %v733 = vshrl.u32 %v732, 7
    %v734 = vsub.s32 0, %v733
    %v735 = vrot.slane %v730, %v734
    %v737 = vmul.f32 %v722, %v735
    %v738 = vmul.f32 %v723, %v735
    %v739 = vmul.f32 %v724, %v735
    %v740 = vmul.f32 %v725, %v735
    %v741 = vmul.f32 %v726, %v735
    %v742 = vmul.f32 %v727, %v735
    %v743 = vmul.f32 %v728, %v735
    %v744 = vmul.f32 %v729, %v735
    %v745 = vld [vmem:[%s9] sm:$0x1]
    %v747 = vlaneseq
    %v748 = vshrl.u32 %v747, 7
    %v749 = vsub.s32 0, %v748
    %v750 = vrot.slane %v745, %v749
    %v752 = vadd.f32 %v737, %v750
    %v753 = vadd.f32 %v738, %v750
    %v754 = vadd.f32 %v739, %v750
    %v755 = vadd.f32 %v740, %v750
    %v756 = vadd.f32 %v741, %v750
    %v757 = vadd.f32 %v742, %v750
    %v758 = vadd.f32 %v743, %v750
    %v759 = vadd.f32 %v744, %v750
    %vm760 = vcmp.ge.f32.partialorder %v752, 0.0
    %vm761 = vcmp.ge.f32.partialorder %v753, 0.0
    %vm762 = vcmp.ge.f32.partialorder %v754, 0.0
    %vm763 = vcmp.ge.f32.partialorder %v755, 0.0
    %vm764 = vcmp.ge.f32.partialorder %v756, 0.0
    %vm765 = vcmp.ge.f32.partialorder %v757, 0.0
    %vm766 = vcmp.ge.f32.partialorder %v758, 0.0
    %vm767 = vcmp.ge.f32.partialorder %v759, 0.0
    %v768 = vmul.f32 %v752, 0.2
    %v769 = vmul.f32 %v753, 0.2
    %v770 = vmul.f32 %v754, 0.2
    %v771 = vmul.f32 %v755, 0.2
    %v772 = vmul.f32 %v756, 0.2
    %v773 = vmul.f32 %v757, 0.2
    %v774 = vmul.f32 %v758, 0.2
    %v775 = vmul.f32 %v759, 0.2
    %v776 = vsel %vm760, %v752, %v768
    %v777 = vsel %vm761, %v753, %v769
    %v778 = vsel %vm762, %v754, %v770
    %v779 = vsel %vm763, %v755, %v771
    %v780 = vsel %vm764, %v756, %v772
    %v781 = vsel %vm765, %v757, %v773
    %v782 = vsel %vm766, %v758, %v774
    %v783 = vsel %vm767, %v759, %v775
    %784 = vst.msk [vmem:[#allocation2] sm:$0xff] %vm113, %v776
    %785 = vst.msk [vmem:[#allocation2 + $0x8] sm:$0xff] %vm113, %v777
    %786 = vst.msk [vmem:[#allocation2 + $0x10] sm:$0xff] %vm113, %v778
    %787 = vst.msk [vmem:[#allocation2 + $0x18] sm:$0xff] %vm113, %v779
    %788 = vst.msk [vmem:[#allocation2 + $0x20] sm:$0xff] %vm113, %v780
    %789 = vst.msk [vmem:[#allocation2 + $0x28] sm:$0xff] %vm113, %v781
    %790 = vst.msk [vmem:[#allocation2 + $0x30] sm:$0xff] %vm113, %v782
    %791 = vst.msk [vmem:[#allocation2 + $0x38] sm:$0xff] %vm113, %v783
    // Predicated region
    $region42: #{dgcnn_encoder.17} parent=1 // pred_check
      _
    $region43: #{dgcnn_encoder.17} parent=1 // pred_check_branch
      %793 = sbr.rel (0) target = $region45
    $region44: #{dgcnn_encoder.17} parent=1 // pred_region
      %s795 = ssub.s32 1024, 1024
      %796 = vsyncadd [#allocation3], %s795
      %s797 = sshll.u32 [#allocation2], 4
      %s798 = int_to_ptr.vmem [resolvable:$true] %s797
      %803 = dma.vmem_to_hbm [thread:$0]  %s798, 1024, %s10, [#allocation3], 128, 128, 8
    $region45: #{dgcnn_encoder.17} parent=1 // pred_fallthru
      _
    // Predicated region
    $region46: #{dgcnn_encoder.17} parent=1 // pred_check
      _
    $region47: #{dgcnn_encoder.17} parent=1 // pred_check_branch
      %805 = sbr.rel (0) target = $region49
    $region48: #{dgcnn_encoder.17} parent=1 // pred_region
      %806 = dma.done [#allocation3], 1024
    $region49: #{dgcnn_encoder.17} parent=1 // pred_fallthru
      _
    %807 = vsyncpa [#allocation3], 1

</llo_original>
